<compile_context>
chip_gen: v7x
topology: tpu7x:2x2x1
jax: 0.10.0
libtpu: 0.0.40
codegen_flags: <defaults>
</compile_context>

<pallas_src>
import jax
import jax.numpy as jnp
from jax.experimental import pallas as pl
from jax.experimental.pallas import tpu as pltpu


# --------------------------------- kernel ---------------------------------- #

def _decoder_bottleneck_kernel(x_ref, w1_ref, b1_ref, w2_ref, b2_ref,
                               w3u_ref, bf_ref, o_ref, padcat_ref, cat_ref):
    # x_ref    : (1, H, W, Cin)        low-res input, NHWC, bf16
    # w1_ref   : (Cin, width)          conv1 (1x1), bn1 scale folded        bf16
    # b1_ref   : (1, width)            bn1 shift                            f32
    # w2_ref   : (4, 4*width, width)   per-sub-pixel tap-concatenated stencils
    #                                  of nearest_up2 + conv3x3, bn2 folded bf16
    # b2_ref   : (1, width)            bn2 shift                            f32
    # w3u_ref  : (width+Cin, Cout)     stacked [w3 ; wu] (1x1 convs, BN folded)
    # bf_ref   : (1, Cout)             bn3 shift + bn_u shift               f32
    # o_ref    : (1, 4, H, W, Cout)    sub-pixel outputs, index = 2*dy + dx
    # padcat_ref: VMEM (H+1, W+1, 4*width) bf16 -- conv1 activation replicated
    #             into 4 shifted channel blocks (tap concat for conv2)
    # cat_ref  : VMEM (H, W, width+Cin) bf16    -- [a2 | x] LHS for fused conv3+shortcut
    H = x_ref.shape[1]
    W = x_ref.shape[2]
    width = b2_ref.shape[-1]
    f32 = jnp.float32
    bf16 = jnp.bfloat16

    xb = x_ref[0]                                                   # (H, W, Cin) bf16

    # ---- conv1 (1x1) + bn1 + relu ------------------------------------------
    a1 = jnp.einsum('hwc,cd->hwd', xb, w1_ref[...],
                    preferred_element_type=f32)
    a1 = jnp.maximum(a1 + b1_ref[...], 0.0).astype(bf16)            # (H, W, width)

    # ---- zero only the 1-element halo of padcat (the interior is fully
    # rewritten below).  Done every step -- it is a handful of small stores --
    # instead of a program_id==0 guard, so a multi-TensorCore "parallel" batch
    # axis stays correct (scratch persists per core, not per grid point).
    zrow = jnp.zeros((1, W + 1, 4 * width), bf16)
    zcol = jnp.zeros((H + 1, 1, 4 * width), bf16)
    padcat_ref[0:1, :, :] = zrow
    padcat_ref[H:H + 1, :, :] = zrow
    padcat_ref[:, 0:1, :] = zcol
    padcat_ref[:, W:W + 1, :] = zcol

    # ---- scatter a1 into 4 shifted channel blocks:
    #        padcat[p, q, blk(a,b)*width : ...] = a1[p + a - 1, q + b - 1]
    # (zeros outside).  The conv2 LHS for sub-pixel (dy, dx) is then the single
    # lane-dense (K=4*width=128) window padcat[dy:dy+H, dx:dx+W, :].
    padcat_ref[1:H + 1, 1:W + 1, 0 * width:1 * width] = a1          # (a,b)=(0,0)
    padcat_ref[1:H + 1, 0:W,     1 * width:2 * width] = a1          # (a,b)=(0,1)
    padcat_ref[0:H,     1:W + 1, 2 * width:3 * width] = a1          # (a,b)=(1,0)
    padcat_ref[0:H,     0:W,     3 * width:4 * width] = a1          # (a,b)=(1,1)

    # ---- shortcut input into the tail channels of the conv3 LHS (once).
    # nearest-up2 commutes with the 1x1 shortcut conv, so the shortcut runs at
    # low resolution; replication is implicit in the sub-pixel output layout.
    cat_ref[:, :, width:] = xb

    w3u = w3u_ref[...]
    b2 = b2_ref[...]
    bf = bf_ref[...]

    # ---- four sub-pixel outputs ---------------------------------------------
    # TODO(synk): if row tiles ever grow enough to spill, switch this static
    # 4-way unroll to a lax.fori_loop to bound live ranges.
    for dy in range(2):
        for dx in range(2):
            s = 2 * dy + dx
            win = padcat_ref[dy:dy + H, dx:dx + W, :]               # (H, W, 4*width)
            a2 = jnp.einsum('hwc,cd->hwd', win, w2_ref[s],
                            preferred_element_type=f32)
            a2 = jnp.maximum(a2 + b2, 0.0).astype(bf16)
            cat_ref[:, :, :width] = a2
            # conv3 (1x1) + bn3 + shortcut conv + bn_u in one K=96 matmul.
            y = jnp.einsum('hwc,cd->hwd', cat_ref[...], w3u,
                           preferred_element_type=f32)
            o_ref[0, s] = jnp.maximum(y + bf, 0.0).astype(o_ref.dtype)


# --------------------------------- wrapper --------------------------------- #

def decoder_bottleneck_forward(x_nchw, kparams, scale=2):
    """Fused DecoderBottleneck forward.  x_nchw: (N, Cin, H, W) float32 (NCHW)."""
    assert scale == 2, "fused sub-pixel kernel implements the decoder's scale=2"
    # TODO(synk): for production spatial sizes (and v7x's 64 MiB VMEM) add a
    # row-tile grid axis with a 1-row conv1 halo, size tiles against an explicit
    # vmem_limit_bytes, and mark both (N, row) axes "parallel"; at these toy
    # sizes grid=(N,) fits comfortably under the default scoped VMEM limit.
    N, Cin, H, W = x_nchw.shape
    width = kparams['w1'].shape[1]
    cout = kparams['w3u'].shape[1]

    # NCHW -> NHWC and cast to bf16 here (halves the input HBM write + DMA).
    x = jnp.transpose(x_nchw, (0, 2, 3, 1)).astype(jnp.bfloat16)

    out = pl.pallas_call(
        _decoder_bottleneck_kernel,
        out_shape=jax.ShapeDtypeStruct((N, 4, H, W, cout), jnp.float32),
        grid_spec=pltpu.PrefetchScalarGridSpec(
            num_scalar_prefetch=0,
            grid=(N,),
            in_specs=[
                pl.BlockSpec((1, H, W, Cin), lambda n: (n, 0, 0, 0)),
                pl.BlockSpec((Cin, width), lambda n: (0, 0)),
                pl.BlockSpec((1, width), lambda n: (0, 0)),
                pl.BlockSpec((4, 4 * width, width), lambda n: (0, 0, 0)),
                pl.BlockSpec((1, width), lambda n: (0, 0)),
                pl.BlockSpec((width + Cin, cout), lambda n: (0, 0)),
                pl.BlockSpec((1, cout), lambda n: (0, 0)),
            ],
            out_specs=pl.BlockSpec((1, 4, H, W, cout),
                                   lambda n: (n, 0, 0, 0, 0)),
            scratch_shapes=[
                pltpu.VMEM((H + 1, W + 1, 4 * width), jnp.bfloat16),
                pltpu.VMEM((H, W, width + Cin), jnp.bfloat16),
            ],
        ),
        compiler_params=pltpu.CompilerParams(
            dimension_semantics=("parallel",)),
    )(x, kparams['w1'], kparams['b1'], kparams['w2pack'], kparams['b2'],
      kparams['w3u'], kparams['bfin'])

    # sub-pixel (n, 2*dy+dx, y, x, c) -> NCHW (n, c, 2y+dy, 2x+dx).
    # TODO(synk): in a real pipeline fuse this relayout into the consumer (or
    # emit NHWC via stride-2 sublane stores); kept here since the PyTorch
    # interface and the reference are NCHW.
    out = out.reshape(N, 2, 2, H, W, cout)
    out = jnp.transpose(out, (0, 5, 3, 1, 4, 2)).reshape(N, cout, 2 * H, 2 * W)
    return out


# --------------------------- parameter preparation -------------------------- #

def init_raw_params(key, inplanes, planes):
    """Synthetic PyTorch-layout params (convs OIHW, BN = (gamma, beta, mean, var))."""
    width = planes
    outp = planes * 4                                 # expansion = 4
    ks = jax.random.split(key, 8)
    raw = {
        'w1': 0.1 * jax.random.normal(ks[0], (width, inplanes, 1, 1), jnp.float32),
        'w2': 0.1 * jax.random.normal(ks[1], (width, width, 3, 3), jnp.float32),
        'w3': 0.1 * jax.random.normal(ks[2], (outp, width, 1, 1), jnp.float32),
        'wu': 0.1 * jax.random.normal(ks[3], (outp, inplanes, 1, 1), jnp.float32),
    }
    for name, c, k in (('bn1', width, ks[4]), ('bn2', width, ks[5]),
                       ('bn3', outp, ks[6]), ('bnu', outp, ks[7])):
        k1, k2, k3, k4 = jax.random.split(k, 4)
        raw[name] = (1.0 + 0.1 * jax.random.normal(k1, (c,), jnp.float32),
                     0.1 * jax.random.normal(k2, (c,), jnp.float32),
                     0.1 * jax.random.normal(k3, (c,), jnp.float32),
                     0.5 + jnp.abs(jax.random.normal(k4, (c,), jnp.float32)))
    return raw


def fold_params(raw, eps=1e-5):
    """Fold inference-mode BN into conv weights/biases (host-side), pre-combine
    the 3x3 taps into per-sub-pixel tap-concatenated (K=4*width) stencils, and
    stack [w3; wu] for the fused conv3+shortcut matmul."""
    def sc_sh(bn):
        g, b, m, v = bn
        sc = g / jnp.sqrt(v + eps)
        return sc, b - m * sc

    sc1, sh1 = sc_sh(raw['bn1'])
    sc2, sh2 = sc_sh(raw['bn2'])
    sc3, sh3 = sc_sh(raw['bn3'])
    scu, shu = sc_sh(raw['bnu'])

    # 1x1 convs: OIHW -> (Cin, Cout); BN scale folded into the output channel.
    def fold1x1(w_oihw, sc):
        return jnp.transpose(w_oihw[:, :, 0, 0] * sc[:, None], (1, 0))

    w1 = fold1x1(raw['w1'], sc1)
    w3 = fold1x1(raw['w3'], sc3)
    wu = fold1x1(raw['wu'], scu)
    w3u = jnp.concatenate([w3, wu], axis=0)               # (width+Cin, Cout)

    # 3x3 conv: OIHW -> (ky, kx, Cin, Cout), BN scale folded; merge taps that
    # hit the same low-res pixel for each high-res sub-pixel (dy, dx):
    #   dy=0: low row +0 <- ky=0,  low row +1 <- ky=1,2
    #   dy=1: low row +1 <- ky=0,1, low row +2 <- ky=2     (same for columns)
    # Then concatenate the 4 (a,b) tap-blocks along Cin -> K = 4*width per
    # sub-pixel, matching the channel layout of the padcat scratch (blk=2a+b).
    w2 = jnp.transpose(raw['w2'], (2, 3, 1, 0)) * sc2
    taps = (((0,), (1, 2)), ((0, 1), (2,)))               # taps[d][offset]
    subpix = []
    for dy in range(2):
        for dx in range(2):
            blocks = []
            for a in range(2):
                for b in range(2):
                    wk = sum(w2[ky, kx] for ky in taps[dy][a]
                             for kx in taps[dx][b])        # (width, width)
                    blocks.append(wk)
            subpix.append(jnp.concatenate(blocks, axis=0))  # (4*width, width)
    w2pack = jnp.stack(subpix, axis=0)                       # (4, 4*width, width)

    bf16 = jnp.bfloat16
    return {
        'w1': w1.astype(bf16), 'w2pack': w2pack.astype(bf16),
        'w3u': w3u.astype(bf16),
        'b1': sh1.reshape(1, -1), 'b2': sh2.reshape(1, -1),
        'bfin': (sh3 + shu).reshape(1, -1),
    }


# -------------------------------- reference --------------------------------- #

def _ref_forward(x_nchw, raw, scale, eps=1e-5):
    """Pure-JAX f32 reference of the PyTorch module (inference-mode BN)."""
    def bn(x, p):
        g, b, m, v = p
        return (x - m) / jnp.sqrt(v + eps) * g + b

    def conv(x, w_oihw, padding):
        w = jnp.transpose(w_oihw, (2, 3, 1, 0))           # OIHW -> HWIO
        return jax.lax.conv_general_dilated(
            x, w, (1, 1), padding,
            dimension_numbers=('NHWC', 'HWIO', 'NHWC'),
            precision=jax.lax.Precision.HIGHEST)

    def up(x):
        return jnp.repeat(jnp.repeat(x, scale, axis=1), scale, axis=2)

    x = jnp.transpose(x_nchw, (0, 2, 3, 1))
    out = jax.nn.relu(bn(conv(x, raw['w1'], 'VALID'), raw['bn1']))
    out = jax.nn.relu(bn(conv(up(out), raw['w2'], ((1, 1), (1, 1))), raw['bn2']))
    idt = bn(conv(up(x), raw['wu'], 'VALID'), raw['bnu'])
    out = jax.nn.relu(bn(conv(out, raw['w3'], 'VALID'), raw['bn3']) + idt)
    return jnp.transpose(out, (0, 3, 1, 2))


# ----------------------------------- main ----------------------------------- #

if __name__ == "__main__":
    # width=32, out channels = 128 -> lane-dense output; spatial 16 -> 32.
    N, inplanes, H, W = 2, 64, 16, 16
    planes, scale = 32, 2

    key = jax.random.PRNGKey(0)
    kx, kp = jax.random.split(key)
    x = jax.random.normal(kx, (N, inplanes, H, W), jnp.float32)   # NCHW, like PyTorch
    raw = init_raw_params(kp, inplanes, planes)
    kparams = fold_params(raw)

    out = jax.block_until_ready(decoder_bottleneck_forward(x, kparams, scale))
    assert out.shape == (N, planes * 4, H * scale, W * scale), out.shape

    ref = jax.block_until_ready(_ref_forward(x, raw, scale))
    max_err = float(jnp.max(jnp.abs(out - ref)))
    mean_err = float(jnp.mean(jnp.abs(out - ref)))
    # bf16 MXU math vs f32 reference -> loose-ish but structure-sensitive bounds.
    assert max_err < 1e-1 and mean_err < 2e-2, (max_err, mean_err)

    print("KERNEL_OK")
</pallas_src>

<mosaic_0001>
module attributes {stable_mosaic.version = 11 : i64} {
  func.func @_decoder_bottleneck_kernel(%arg0: i32, %arg1: memref<1x16x16x64xbf16, #tpu.memory_space<vmem>>, %arg2: memref<64x32xbf16, #tpu.memory_space<vmem>>, %arg3: memref<1x32xf32, #tpu.memory_space<vmem>>, %arg4: memref<4x128x32xbf16, #tpu.memory_space<vmem>>, %arg5: memref<1x32xf32, #tpu.memory_space<vmem>>, %arg6: memref<96x128xbf16, #tpu.memory_space<vmem>>, %arg7: memref<1x128xf32, #tpu.memory_space<vmem>>, %arg8: memref<1x4x16x16x128xf32, #tpu.memory_space<vmem>>, %arg9: memref<17x17x128xbf16, #tpu.memory_space<vmem>>, %arg10: memref<16x16x96xbf16, #tpu.memory_space<vmem>>) attributes {dimension_semantics = [#tpu.dimension_semantics<parallel>], iteration_bounds = array<i64: 2>, scalar_prefetch = 0 : i64, scratch_operands = 2 : i64, tpu.core_type = #tpu.core_type<tc>, window_params = [{transform_indices = @transform_0, window_bounds = array<i64: 1, 16, 16, 64>}, {pipeline_mode = #tpu.pipeline_mode<synchronous>, transform_indices = @transform_1, window_bounds = array<i64: 64, 32>}, {pipeline_mode = #tpu.pipeline_mode<synchronous>, transform_indices = @transform_2, window_bounds = array<i64: 1, 32>}, {pipeline_mode = #tpu.pipeline_mode<synchronous>, transform_indices = @transform_3, window_bounds = array<i64: 4, 128, 32>}, {pipeline_mode = #tpu.pipeline_mode<synchronous>, transform_indices = @transform_4, window_bounds = array<i64: 1, 32>}, {pipeline_mode = #tpu.pipeline_mode<synchronous>, transform_indices = @transform_5, window_bounds = array<i64: 96, 128>}, {pipeline_mode = #tpu.pipeline_mode<synchronous>, transform_indices = @transform_6, window_bounds = array<i64: 1, 128>}, {transform_indices = @transform_7, window_bounds = array<i64: 1, 4, 16, 16, 128>}]} {
    %c0 = arith.constant 0 : index
    %c0_0 = arith.constant 0 : index
    %c0_1 = arith.constant 0 : index
    %c0_2 = arith.constant 0 : index
    %0 = vector.load %arg1[%c0, %c0_0, %c0_1, %c0_2] : memref<1x16x16x64xbf16, #tpu.memory_space<vmem>>, vector<1x16x16x64xbf16>
    %1 = vector.shape_cast %0 : vector<1x16x16x64xbf16> to vector<16x16x64xbf16>
    %c0_3 = arith.constant 0 : index
    %c0_4 = arith.constant 0 : index
    %2 = vector.load %arg2[%c0_3, %c0_4] : memref<64x32xbf16, #tpu.memory_space<vmem>>, vector<64x32xbf16>
    "tpu.trace_start"() <{level = 10 : i32, message = "hwc,cd->hwd"}> : () -> ()
    %cst = arith.constant dense<0.000000e+00> : vector<16x16x32xf32>
    %3 = tpu.matmul %1, %2, %cst {dimension_numbers = #tpu.dot_dimension_numbers<[2], [0], [0, 1], [1], [0, 0, 0, 1, 1, 1], [], []>} : vector<16x16x64xbf16>, vector<64x32xbf16>, vector<16x16x32xf32> -> vector<16x16x32xf32>
    "tpu.trace_stop"() : () -> ()
    %c0_5 = arith.constant 0 : index
    %c0_6 = arith.constant 0 : index
    %4 = vector.load %arg3[%c0_5, %c0_6] : memref<1x32xf32, #tpu.memory_space<vmem>>, vector<1x32xf32>
    %5 = vector.shape_cast %4 : vector<1x32xf32> to vector<1x1x32xf32>
    %6 = vector.broadcast %5 : vector<1x1x32xf32> to vector<16x16x32xf32>
    %7 = arith.addf %3, %6 : vector<16x16x32xf32>
    %cst_7 = arith.constant 0.000000e+00 : f32
    %8 = vector.broadcast %cst_7 : f32 to vector<16x16x32xf32>
    %9 = arith.maximumf %7, %8 : vector<16x16x32xf32>
    %10 = arith.truncf %9 : vector<16x16x32xf32> to vector<16x16x32xbf16>
    %cst_8 = arith.constant 0.000000e+00 : bf16
    %11 = vector.broadcast %cst_8 : bf16 to vector<1x17x128xbf16>
    %cst_9 = arith.constant 0.000000e+00 : bf16
    %12 = vector.broadcast %cst_9 : bf16 to vector<17x1x128xbf16>
    %c0_10 = arith.constant 0 : index
    %c0_11 = arith.constant 0 : index
    %c0_12 = arith.constant 0 : index
    %13 = vector.load %arg9[%c0_10, %c0_11, %c0_12] : memref<17x17x128xbf16, #tpu.memory_space<vmem>>, vector<1x17x128xbf16>
    tpu.vector_store %arg9[%c0_10, %c0_11, %c0_12], %11 {strides = array<i32>} : memref<17x17x128xbf16, #tpu.memory_space<vmem>>, vector<1x17x128xbf16>,
    %c16 = arith.constant 16 : index
    %c0_13 = arith.constant 0 : index
    %c0_14 = arith.constant 0 : index
    %14 = vector.load %arg9[%c16, %c0_13, %c0_14] : memref<17x17x128xbf16, #tpu.memory_space<vmem>>, vector<1x17x128xbf16>
    tpu.vector_store %arg9[%c16, %c0_13, %c0_14], %11 {strides = array<i32>} : memref<17x17x128xbf16, #tpu.memory_space<vmem>>, vector<1x17x128xbf16>,
    %c0_15 = arith.constant 0 : index
    %c0_16 = arith.constant 0 : index
    %c0_17 = arith.constant 0 : index
    %15 = vector.load %arg9[%c0_15, %c0_16, %c0_17] : memref<17x17x128xbf16, #tpu.memory_space<vmem>>, vector<17x1x128xbf16>
    tpu.vector_store %arg9[%c0_15, %c0_16, %c0_17], %12 {strides = array<i32>} : memref<17x17x128xbf16, #tpu.memory_space<vmem>>, vector<17x1x128xbf16>,
    %c0_18 = arith.constant 0 : index
    %c16_19 = arith.constant 16 : index
    %c0_20 = arith.constant 0 : index
    %16 = vector.load %arg9[%c0_18, %c16_19, %c0_20] : memref<17x17x128xbf16, #tpu.memory_space<vmem>>, vector<17x1x128xbf16>
    tpu.vector_store %arg9[%c0_18, %c16_19, %c0_20], %12 {strides = array<i32>} : memref<17x17x128xbf16, #tpu.memory_space<vmem>>, vector<17x1x128xbf16>,
    %c1 = arith.constant 1 : index
    %c1_21 = arith.constant 1 : index
    %c0_22 = arith.constant 0 : index
    %17 = vector.load %arg9[%c1, %c1_21, %c0_22] : memref<17x17x128xbf16, #tpu.memory_space<vmem>>, vector<16x16x32xbf16>
    tpu.vector_store %arg9[%c1, %c1_21, %c0_22], %10 {strides = array<i32>} : memref<17x17x128xbf16, #tpu.memory_space<vmem>>, vector<16x16x32xbf16>,
    %c1_23 = arith.constant 1 : index
    %c0_24 = arith.constant 0 : index
    %c32 = arith.constant 32 : index
    %18 = vector.load %arg9[%c1_23, %c0_24, %c32] : memref<17x17x128xbf16, #tpu.memory_space<vmem>>, vector<16x16x32xbf16>
    tpu.vector_store %arg9[%c1_23, %c0_24, %c32], %10 {strides = array<i32>} : memref<17x17x128xbf16, #tpu.memory_space<vmem>>, vector<16x16x32xbf16>,
    %c0_25 = arith.constant 0 : index
    %c1_26 = arith.constant 1 : index
    %c64 = arith.constant 64 : index
    %19 = vector.load %arg9[%c0_25, %c1_26, %c64] : memref<17x17x128xbf16, #tpu.memory_space<vmem>>, vector<16x16x32xbf16>
    tpu.vector_store %arg9[%c0_25, %c1_26, %c64], %10 {strides = array<i32>} : memref<17x17x128xbf16, #tpu.memory_space<vmem>>, vector<16x16x32xbf16>,
    %c0_27 = arith.constant 0 : index
    %c0_28 = arith.constant 0 : index
    %c96 = arith.constant 96 : index
    %20 = vector.load %arg9[%c0_27, %c0_28, %c96] : memref<17x17x128xbf16, #tpu.memory_space<vmem>>, vector<16x16x32xbf16>
    tpu.vector_store %arg9[%c0_27, %c0_28, %c96], %10 {strides = array<i32>} : memref<17x17x128xbf16, #tpu.memory_space<vmem>>, vector<16x16x32xbf16>,
    %c0_29 = arith.constant 0 : index
    %c0_30 = arith.constant 0 : index
    %c32_31 = arith.constant 32 : index
    %21 = vector.load %arg10[%c0_29, %c0_30, %c32_31] : memref<16x16x96xbf16, #tpu.memory_space<vmem>>, vector<16x16x64xbf16>
    tpu.vector_store %arg10[%c0_29, %c0_30, %c32_31], %1 {strides = array<i32>} : memref<16x16x96xbf16, #tpu.memory_space<vmem>>, vector<16x16x64xbf16>,
    %c0_32 = arith.constant 0 : index
    %c0_33 = arith.constant 0 : index
    %22 = vector.load %arg6[%c0_32, %c0_33] : memref<96x128xbf16, #tpu.memory_space<vmem>>, vector<96x128xbf16>
    %c0_34 = arith.constant 0 : index
    %c0_35 = arith.constant 0 : index
    %23 = vector.load %arg5[%c0_34, %c0_35] : memref<1x32xf32, #tpu.memory_space<vmem>>, vector<1x32xf32>
    %c0_36 = arith.constant 0 : index
    %c0_37 = arith.constant 0 : index
    %24 = vector.load %arg7[%c0_36, %c0_37] : memref<1x128xf32, #tpu.memory_space<vmem>>, vector<1x128xf32>
    %c0_38 = arith.constant 0 : index
    %c0_39 = arith.constant 0 : index
    %c0_40 = arith.constant 0 : index
    %25 = vector.load %arg9[%c0_38, %c0_39, %c0_40] : memref<17x17x128xbf16, #tpu.memory_space<vmem>>, vector<16x16x128xbf16>
    %c0_41 = arith.constant 0 : index
    %c0_42 = arith.constant 0 : index
    %c0_43 = arith.constant 0 : index
    %26 = vector.load %arg4[%c0_41, %c0_42, %c0_43] : memref<4x128x32xbf16, #tpu.memory_space<vmem>>, vector<1x128x32xbf16>
    %27 = vector.shape_cast %26 : vector<1x128x32xbf16> to vector<128x32xbf16>
    "tpu.trace_start"() <{level = 10 : i32, message = "hwc,cd->hwd"}> : () -> ()
    %cst_44 = arith.constant dense<0.000000e+00> : vector<16x16x32xf32>
    %28 = tpu.matmul %25, %27, %cst_44 {dimension_numbers = #tpu.dot_dimension_numbers<[2], [0], [0, 1], [1], [0, 0, 0, 1, 1, 1], [], []>} : vector<16x16x128xbf16>, vector<128x32xbf16>, vector<16x16x32xf32> -> vector<16x16x32xf32>
    "tpu.trace_stop"() : () -> ()
    %29 = vector.shape_cast %23 : vector<1x32xf32> to vector<1x1x32xf32>
    %30 = vector.broadcast %29 : vector<1x1x32xf32> to vector<16x16x32xf32>
    %31 = arith.addf %28, %30 : vector<16x16x32xf32>
    %cst_45 = arith.constant 0.000000e+00 : f32
    %32 = vector.broadcast %cst_45 : f32 to vector<16x16x32xf32>
    %33 = arith.maximumf %31, %32 : vector<16x16x32xf32>
    %34 = arith.truncf %33 : vector<16x16x32xf32> to vector<16x16x32xbf16>
    %c0_46 = arith.constant 0 : index
    %c0_47 = arith.constant 0 : index
    %c0_48 = arith.constant 0 : index
    %35 = vector.load %arg10[%c0_46, %c0_47, %c0_48] : memref<16x16x96xbf16, #tpu.memory_space<vmem>>, vector<16x16x32xbf16>
    tpu.vector_store %arg10[%c0_46, %c0_47, %c0_48], %34 {strides = array<i32>} : memref<16x16x96xbf16, #tpu.memory_space<vmem>>, vector<16x16x32xbf16>,
    %c0_49 = arith.constant 0 : index
    %c0_50 = arith.constant 0 : index
    %c0_51 = arith.constant 0 : index
    %36 = vector.load %arg10[%c0_49, %c0_50, %c0_51] : memref<16x16x96xbf16, #tpu.memory_space<vmem>>, vector<16x16x96xbf16>
    "tpu.trace_start"() <{level = 10 : i32, message = "hwc,cd->hwd"}> : () -> ()
    %cst_52 = arith.constant dense<0.000000e+00> : vector<16x16x128xf32>
    %37 = tpu.matmul %36, %22, %cst_52 {dimension_numbers = #tpu.dot_dimension_numbers<[2], [0], [0, 1], [1], [0, 0, 0, 1, 1, 1], [], []>} : vector<16x16x96xbf16>, vector<96x128xbf16>, vector<16x16x128xf32> -> vector<16x16x128xf32>
    "tpu.trace_stop"() : () -> ()
    %38 = vector.shape_cast %24 : vector<1x128xf32> to vector<1x1x128xf32>
    %39 = vector.broadcast %38 : vector<1x1x128xf32> to vector<16x16x128xf32>
    %40 = arith.addf %37, %39 : vector<16x16x128xf32>
    %cst_53 = arith.constant 0.000000e+00 : f32
    %41 = vector.broadcast %cst_53 : f32 to vector<16x16x128xf32>
    %42 = arith.maximumf %40, %41 : vector<16x16x128xf32>
    %c0_54 = arith.constant 0 : index
    %c0_55 = arith.constant 0 : index
    %c0_56 = arith.constant 0 : index
    %c0_57 = arith.constant 0 : index
    %c0_58 = arith.constant 0 : index
    %43 = vector.load %arg8[%c0_54, %c0_55, %c0_56, %c0_57, %c0_58] : memref<1x4x16x16x128xf32, #tpu.memory_space<vmem>>, vector<1x1x16x16x128xf32>
    %44 = vector.shape_cast %43 : vector<1x1x16x16x128xf32> to vector<16x16x128xf32>
    %45 = vector.shape_cast %42 : vector<16x16x128xf32> to vector<1x1x16x16x128xf32>
    tpu.vector_store %arg8[%c0_54, %c0_55, %c0_56, %c0_57, %c0_58], %45 {strides = array<i32>} : memref<1x4x16x16x128xf32, #tpu.memory_space<vmem>>, vector<1x1x16x16x128xf32>,
    %c0_59 = arith.constant 0 : index
    %c1_60 = arith.constant 1 : index
    %c0_61 = arith.constant 0 : index
    %46 = vector.load %arg9[%c0_59, %c1_60, %c0_61] : memref<17x17x128xbf16, #tpu.memory_space<vmem>>, vector<16x16x128xbf16>
    %c1_62 = arith.constant 1 : index
    %c0_63 = arith.constant 0 : index
    %c0_64 = arith.constant 0 : index
    %47 = vector.load %arg4[%c1_62, %c0_63, %c0_64] : memref<4x128x32xbf16, #tpu.memory_space<vmem>>, vector<1x128x32xbf16>
    %48 = vector.shape_cast %47 : vector<1x128x32xbf16> to vector<128x32xbf16>
    "tpu.trace_start"() <{level = 10 : i32, message = "hwc,cd->hwd"}> : () -> ()
    %cst_65 = arith.constant dense<0.000000e+00> : vector<16x16x32xf32>
    %49 = tpu.matmul %46, %48, %cst_65 {dimension_numbers = #tpu.dot_dimension_numbers<[2], [0], [0, 1], [1], [0, 0, 0, 1, 1, 1], [], []>} : vector<16x16x128xbf16>, vector<128x32xbf16>, vector<16x16x32xf32> -> vector<16x16x32xf32>
    "tpu.trace_stop"() : () -> ()
    %50 = vector.shape_cast %23 : vector<1x32xf32> to vector<1x1x32xf32>
    %51 = vector.broadcast %50 : vector<1x1x32xf32> to vector<16x16x32xf32>
    %52 = arith.addf %49, %51 : vector<16x16x32xf32>
    %cst_66 = arith.constant 0.000000e+00 : f32
    %53 = vector.broadcast %cst_66 : f32 to vector<16x16x32xf32>
    %54 = arith.maximumf %52, %53 : vector<16x16x32xf32>
    %55 = arith.truncf %54 : vector<16x16x32xf32> to vector<16x16x32xbf16>
    %c0_67 = arith.constant 0 : index
    %c0_68 = arith.constant 0 : index
    %c0_69 = arith.constant 0 : index
    %56 = vector.load %arg10[%c0_67, %c0_68, %c0_69] : memref<16x16x96xbf16, #tpu.memory_space<vmem>>, vector<16x16x32xbf16>
    tpu.vector_store %arg10[%c0_67, %c0_68, %c0_69], %55 {strides = array<i32>} : memref<16x16x96xbf16, #tpu.memory_space<vmem>>, vector<16x16x32xbf16>,
    %c0_70 = arith.constant 0 : index
    %c0_71 = arith.constant 0 : index
    %c0_72 = arith.constant 0 : index
    %57 = vector.load %arg10[%c0_70, %c0_71, %c0_72] : memref<16x16x96xbf16, #tpu.memory_space<vmem>>, vector<16x16x96xbf16>
    "tpu.trace_start"() <{level = 10 : i32, message = "hwc,cd->hwd"}> : () -> ()
    %cst_73 = arith.constant dense<0.000000e+00> : vector<16x16x128xf32>
    %58 = tpu.matmul %57, %22, %cst_73 {dimension_numbers = #tpu.dot_dimension_numbers<[2], [0], [0, 1], [1], [0, 0, 0, 1, 1, 1], [], []>} : vector<16x16x96xbf16>, vector<96x128xbf16>, vector<16x16x128xf32> -> vector<16x16x128xf32>
    "tpu.trace_stop"() : () -> ()
    %59 = vector.shape_cast %24 : vector<1x128xf32> to vector<1x1x128xf32>
    %60 = vector.broadcast %59 : vector<1x1x128xf32> to vector<16x16x128xf32>
    %61 = arith.addf %58, %60 : vector<16x16x128xf32>
    %cst_74 = arith.constant 0.000000e+00 : f32
    %62 = vector.broadcast %cst_74 : f32 to vector<16x16x128xf32>
    %63 = arith.maximumf %61, %62 : vector<16x16x128xf32>
    %c0_75 = arith.constant 0 : index
    %c1_76 = arith.constant 1 : index
    %c0_77 = arith.constant 0 : index
    %c0_78 = arith.constant 0 : index
    %c0_79 = arith.constant 0 : index
    %64 = vector.load %arg8[%c0_75, %c1_76, %c0_77, %c0_78, %c0_79] : memref<1x4x16x16x128xf32, #tpu.memory_space<vmem>>, vector<1x1x16x16x128xf32>
    %65 = vector.shape_cast %64 : vector<1x1x16x16x128xf32> to vector<16x16x128xf32>
    %66 = vector.shape_cast %63 : vector<16x16x128xf32> to vector<1x1x16x16x128xf32>
    tpu.vector_store %arg8[%c0_75, %c1_76, %c0_77, %c0_78, %c0_79], %66 {strides = array<i32>} : memref<1x4x16x16x128xf32, #tpu.memory_space<vmem>>, vector<1x1x16x16x128xf32>,
    %c1_80 = arith.constant 1 : index
    %c0_81 = arith.constant 0 : index
    %c0_82 = arith.constant 0 : index
    %67 = vector.load %arg9[%c1_80, %c0_81, %c0_82] : memref<17x17x128xbf16, #tpu.memory_space<vmem>>, vector<16x16x128xbf16>
    %c2 = arith.constant 2 : index
    %c0_83 = arith.constant 0 : index
    %c0_84 = arith.constant 0 : index
    %68 = vector.load %arg4[%c2, %c0_83, %c0_84] : memref<4x128x32xbf16, #tpu.memory_space<vmem>>, vector<1x128x32xbf16>
    %69 = vector.shape_cast %68 : vector<1x128x32xbf16> to vector<128x32xbf16>
    "tpu.trace_start"() <{level = 10 : i32, message = "hwc,cd->hwd"}> : () -> ()
    %cst_85 = arith.constant dense<0.000000e+00> : vector<16x16x32xf32>
    %70 = tpu.matmul %67, %69, %cst_85 {dimension_numbers = #tpu.dot_dimension_numbers<[2], [0], [0, 1], [1], [0, 0, 0, 1, 1, 1], [], []>} : vector<16x16x128xbf16>, vector<128x32xbf16>, vector<16x16x32xf32> -> vector<16x16x32xf32>
    "tpu.trace_stop"() : () -> ()
    %71 = vector.shape_cast %23 : vector<1x32xf32> to vector<1x1x32xf32>
    %72 = vector.broadcast %71 : vector<1x1x32xf32> to vector<16x16x32xf32>
    %73 = arith.addf %70, %72 : vector<16x16x32xf32>
    %cst_86 = arith.constant 0.000000e+00 : f32
    %74 = vector.broadcast %cst_86 : f32 to vector<16x16x32xf32>
    %75 = arith.maximumf %73, %74 : vector<16x16x32xf32>
    %76 = arith.truncf %75 : vector<16x16x32xf32> to vector<16x16x32xbf16>
    %c0_87 = arith.constant 0 : index
    %c0_88 = arith.constant 0 : index
    %c0_89 = arith.constant 0 : index
    %77 = vector.load %arg10[%c0_87, %c0_88, %c0_89] : memref<16x16x96xbf16, #tpu.memory_space<vmem>>, vector<16x16x32xbf16>
    tpu.vector_store %arg10[%c0_87, %c0_88, %c0_89], %76 {strides = array<i32>} : memref<16x16x96xbf16, #tpu.memory_space<vmem>>, vector<16x16x32xbf16>,
    %c0_90 = arith.constant 0 : index
    %c0_91 = arith.constant 0 : index
    %c0_92 = arith.constant 0 : index
    %78 = vector.load %arg10[%c0_90, %c0_91, %c0_92] : memref<16x16x96xbf16, #tpu.memory_space<vmem>>, vector<16x16x96xbf16>
    "tpu.trace_start"() <{level = 10 : i32, message = "hwc,cd->hwd"}> : () -> ()
    %cst_93 = arith.constant dense<0.000000e+00> : vector<16x16x128xf32>
    %79 = tpu.matmul %78, %22, %cst_93 {dimension_numbers = #tpu.dot_dimension_numbers<[2], [0], [0, 1], [1], [0, 0, 0, 1, 1, 1], [], []>} : vector<16x16x96xbf16>, vector<96x128xbf16>, vector<16x16x128xf32> -> vector<16x16x128xf32>
    "tpu.trace_stop"() : () -> ()
    %80 = vector.shape_cast %24 : vector<1x128xf32> to vector<1x1x128xf32>
    %81 = vector.broadcast %80 : vector<1x1x128xf32> to vector<16x16x128xf32>
    %82 = arith.addf %79, %81 : vector<16x16x128xf32>
    %cst_94 = arith.constant 0.000000e+00 : f32
    %83 = vector.broadcast %cst_94 : f32 to vector<16x16x128xf32>
    %84 = arith.maximumf %82, %83 : vector<16x16x128xf32>
    %c0_95 = arith.constant 0 : index
    %c2_96 = arith.constant 2 : index
    %c0_97 = arith.constant 0 : index
    %c0_98 = arith.constant 0 : index
    %c0_99 = arith.constant 0 : index
    %85 = vector.load %arg8[%c0_95, %c2_96, %c0_97, %c0_98, %c0_99] : memref<1x4x16x16x128xf32, #tpu.memory_space<vmem>>, vector<1x1x16x16x128xf32>
    %86 = vector.shape_cast %85 : vector<1x1x16x16x128xf32> to vector<16x16x128xf32>
    %87 = vector.shape_cast %84 : vector<16x16x128xf32> to vector<1x1x16x16x128xf32>
    tpu.vector_store %arg8[%c0_95, %c2_96, %c0_97, %c0_98, %c0_99], %87 {strides = array<i32>} : memref<1x4x16x16x128xf32, #tpu.memory_space<vmem>>, vector<1x1x16x16x128xf32>,
    %c1_100 = arith.constant 1 : index
    %c1_101 = arith.constant 1 : index
    %c0_102 = arith.constant 0 : index
    %88 = vector.load %arg9[%c1_100, %c1_101, %c0_102] : memref<17x17x128xbf16, #tpu.memory_space<vmem>>, vector<16x16x128xbf16>
    %c3 = arith.constant 3 : index
    %c0_103 = arith.constant 0 : index
    %c0_104 = arith.constant 0 : index
    %89 = vector.load %arg4[%c3, %c0_103, %c0_104] : memref<4x128x32xbf16, #tpu.memory_space<vmem>>, vector<1x128x32xbf16>
    %90 = vector.shape_cast %89 : vector<1x128x32xbf16> to vector<128x32xbf16>
    "tpu.trace_start"() <{level = 10 : i32, message = "hwc,cd->hwd"}> : () -> ()
    %cst_105 = arith.constant dense<0.000000e+00> : vector<16x16x32xf32>
    %91 = tpu.matmul %88, %90, %cst_105 {dimension_numbers = #tpu.dot_dimension_numbers<[2], [0], [0, 1], [1], [0, 0, 0, 1, 1, 1], [], []>} : vector<16x16x128xbf16>, vector<128x32xbf16>, vector<16x16x32xf32> -> vector<16x16x32xf32>
    "tpu.trace_stop"() : () -> ()
    %92 = vector.shape_cast %23 : vector<1x32xf32> to vector<1x1x32xf32>
    %93 = vector.broadcast %92 : vector<1x1x32xf32> to vector<16x16x32xf32>
    %94 = arith.addf %91, %93 : vector<16x16x32xf32>
    %cst_106 = arith.constant 0.000000e+00 : f32
    %95 = vector.broadcast %cst_106 : f32 to vector<16x16x32xf32>
    %96 = arith.maximumf %94, %95 : vector<16x16x32xf32>
    %97 = arith.truncf %96 : vector<16x16x32xf32> to vector<16x16x32xbf16>
    %c0_107 = arith.constant 0 : index
    %c0_108 = arith.constant 0 : index
    %c0_109 = arith.constant 0 : index
    %98 = vector.load %arg10[%c0_107, %c0_108, %c0_109] : memref<16x16x96xbf16, #tpu.memory_space<vmem>>, vector<16x16x32xbf16>
    tpu.vector_store %arg10[%c0_107, %c0_108, %c0_109], %97 {strides = array<i32>} : memref<16x16x96xbf16, #tpu.memory_space<vmem>>, vector<16x16x32xbf16>,
    %c0_110 = arith.constant 0 : index
    %c0_111 = arith.constant 0 : index
    %c0_112 = arith.constant 0 : index
    %99 = vector.load %arg10[%c0_110, %c0_111, %c0_112] : memref<16x16x96xbf16, #tpu.memory_space<vmem>>, vector<16x16x96xbf16>
    "tpu.trace_start"() <{level = 10 : i32, message = "hwc,cd->hwd"}> : () -> ()
    %cst_113 = arith.constant dense<0.000000e+00> : vector<16x16x128xf32>
    %100 = tpu.matmul %99, %22, %cst_113 {dimension_numbers = #tpu.dot_dimension_numbers<[2], [0], [0, 1], [1], [0, 0, 0, 1, 1, 1], [], []>} : vector<16x16x96xbf16>, vector<96x128xbf16>, vector<16x16x128xf32> -> vector<16x16x128xf32>
    "tpu.trace_stop"() : () -> ()
    %101 = vector.shape_cast %24 : vector<1x128xf32> to vector<1x1x128xf32>
    %102 = vector.broadcast %101 : vector<1x1x128xf32> to vector<16x16x128xf32>
    %103 = arith.addf %100, %102 : vector<16x16x128xf32>
    %cst_114 = arith.constant 0.000000e+00 : f32
    %104 = vector.broadcast %cst_114 : f32 to vector<16x16x128xf32>
    %105 = arith.maximumf %103, %104 : vector<16x16x128xf32>
    %c0_115 = arith.constant 0 : index
    %c3_116 = arith.constant 3 : index
    %c0_117 = arith.constant 0 : index
    %c0_118 = arith.constant 0 : index
    %c0_119 = arith.constant 0 : index
    %106 = vector.load %arg8[%c0_115, %c3_116, %c0_117, %c0_118, %c0_119] : memref<1x4x16x16x128xf32, #tpu.memory_space<vmem>>, vector<1x1x16x16x128xf32>
    %107 = vector.shape_cast %106 : vector<1x1x16x16x128xf32> to vector<16x16x128xf32>
    %108 = vector.shape_cast %105 : vector<16x16x128xf32> to vector<1x1x16x16x128xf32>
    tpu.vector_store %arg8[%c0_115, %c3_116, %c0_117, %c0_118, %c0_119], %108 {strides = array<i32>} : memref<1x4x16x16x128xf32, #tpu.memory_space<vmem>>, vector<1x1x16x16x128xf32>,
    return
  }
  func.func @transform_0(%arg0: i32) -> (i32, i32, i32, i32) {
    %c0_i32 = arith.constant 0 : i32
    %c0_i32_0 = arith.constant 0 : i32
    %c0_i32_1 = arith.constant 0 : i32
    %c0_i32_2 = arith.constant 0 : i32
    return %arg0, %c0_i32, %c0_i32_0, %c0_i32_1 : i32, i32, i32, i32
  }
  func.func @transform_1(%arg0: i32) -> (i32, i32) {
    %c0_i32 = arith.constant 0 : i32
    %c0_i32_0 = arith.constant 0 : i32
    %c0_i32_1 = arith.constant 0 : i32
    return %c0_i32, %c0_i32_0 : i32, i32
  }
  func.func @transform_2(%arg0: i32) -> (i32, i32) {
    %c0_i32 = arith.constant 0 : i32
    %c0_i32_0 = arith.constant 0 : i32
    %c0_i32_1 = arith.constant 0 : i32
    return %c0_i32, %c0_i32_0 : i32, i32
  }
  func.func @transform_3(%arg0: i32) -> (i32, i32, i32) {
    %c0_i32 = arith.constant 0 : i32
    %c0_i32_0 = arith.constant 0 : i32
    %c0_i32_1 = arith.constant 0 : i32
    %c0_i32_2 = arith.constant 0 : i32
    return %c0_i32, %c0_i32_0, %c0_i32_1 : i32, i32, i32
  }
  func.func @transform_4(%arg0: i32) -> (i32, i32) {
    %c0_i32 = arith.constant 0 : i32
    %c0_i32_0 = arith.constant 0 : i32
    %c0_i32_1 = arith.constant 0 : i32
    return %c0_i32, %c0_i32_0 : i32, i32
  }
  func.func @transform_5(%arg0: i32) -> (i32, i32) {
    %c0_i32 = arith.constant 0 : i32
    %c0_i32_0 = arith.constant 0 : i32
    %c0_i32_1 = arith.constant 0 : i32
    return %c0_i32, %c0_i32_0 : i32, i32
  }
  func.func @transform_6(%arg0: i32) -> (i32, i32) {
    %c0_i32 = arith.constant 0 : i32
    %c0_i32_0 = arith.constant 0 : i32
    %c0_i32_1 = arith.constant 0 : i32
    return %c0_i32, %c0_i32_0 : i32, i32
  }
  func.func @transform_7(%arg0: i32) -> (i32, i32, i32, i32, i32) {
    %c0_i32 = arith.constant 0 : i32
    %c0_i32_0 = arith.constant 0 : i32
    %c0_i32_1 = arith.constant 0 : i32
    %c0_i32_2 = arith.constant 0 : i32
    %c0_i32_3 = arith.constant 0 : i32
    return %arg0, %c0_i32, %c0_i32_0, %c0_i32_1, %c0_i32_2 : i32, i32, i32, i32, i32
  }
}

</mosaic_0001>

<llo_original>
// kernel: tpu_custom_call.1
$region0: #{tpu_custom_call.1}
  #allocation0 [shape = 'u32[]', space=smem, size = 0x4, offset = 0x4, fixed_abs, tag = 'smem constant byte address 0x4 - core index']
  #allocation1 [shape = 'u32[144,128]{1,0:T(1,128)}', space=vmem, size = 0x12000, scoped, tag = 'internal scratch']
  #allocation2 [shape = 'bf16[17,17,128]{2,1,0:T(8,128)(2,1)}', space=vmem, size = 0x19800, scoped, tag = 'scratch operand']
  #allocation3 [shape = 'bf16[16,16,96]{2,1,0:T(16,128)(2,1)}', space=vmem, size = 0x10000, scoped, tag = 'scratch operand']
  %s0 = inlined_call_operand.vmem [shape: bf16[2,16,16,64], index: 0, kind: input, shape index: {}]
  %s1 = inlined_call_operand.vmem [shape: bf16[64,32], index: 1, kind: input, shape index: {}]
  %s2 = inlined_call_operand.vmem [shape: f32[1,32], index: 2, kind: input, shape index: {}]
  %s3 = inlined_call_operand.vmem [shape: bf16[4,128,32], index: 3, kind: input, shape index: {}]
  %s4 = inlined_call_operand.vmem [shape: f32[1,32], index: 4, kind: input, shape index: {}]
  %s5 = inlined_call_operand.vmem [shape: bf16[96,128], index: 5, kind: input, shape index: {}]
  %s6 = inlined_call_operand.vmem [shape: f32[1,128], index: 6, kind: input, shape index: {}]
  %s7 = inlined_call_operand.hbm [shape: f32[2,4,16,16,128], index: 7, kind: output, shape index: {}]
  %s8 = sld [smem:[#allocation0]]
  $region61: #{tpu_custom_call.1} parent=0
    _
  %s10 = ssub.s32 1, %s8
  %s11 = scalar_select 0, %s10, %s8
  $region1: #{tpu_custom_call.1} parent=0
    #allocation4 [shape = 'u8[1048576]{0}', space=vmem, size = 0x100000, scoped, tag = 'output window, operand 0']
    #allocation5 [shape = 's32[2]{0}', space=sflag, size = 0x8, scoped, tag = 'scoped memory for tpu_custom_call.1']
    %12 = vsyncpa [#allocation5], 0
    %s13 = scalar_lea.sflag [#allocation5], 1
    %14 = vsyncpa %s13, 0
    loop: start=0, step=1, limit=4
    $region2: #{tpu_custom_call.1} parent=1 // loop_pre_header
      _
    $region3: #{tpu_custom_call.1} parent=1 // loop_header
      %s16 = sphi 0, %s20
      %p17 = scmp.ge.s32.totalorder %s16, 4
      %s26 = sphi 0, %s28
      %s29 = sphi 0, %s26
      %s30 = sphi 0, %s29
      %s46 = sphi 0, %s30
      %s50 = sphi 0, %s50
      %s52 = sphi 0, %s50
      %s53 = sphi 0, %s52
      %s67 = sphi 0, %s53
      %s71 = sphi 0, %s71
      %s73 = sphi 0, %s71
      %s74 = sphi 0, %s73
      %s88 = sphi 0, %s74
      %s92 = sphi 0, %s92
      %s94 = sphi 0, %s92
      %s95 = sphi 0, %s94
      %s109 = sphi 0, %s95
      %s113 = sphi 0, %s113
      %s115 = sphi 0, %s113
      %s116 = sphi 0, %s115
      %s130 = sphi 0, %s116
      %s134 = sphi 0, %s134
      %s136 = sphi 0, %s134
      %s137 = sphi 0, %s136
      %s151 = sphi 0, %s137
      %s155 = sphi 0, %s155
      %s157 = sphi 0, %s155
      %s158 = sphi 0, %s157
      %s172 = sphi 0, %s158
      %s178 = sphi 0, %s180
      %s181 = sphi 0, %s178
      %s182 = sphi 0, %s181
      %s198 = sphi 0, %s182
    $region4: #{tpu_custom_call.1} parent=1 // loop_header_branch
      %19 = sbr.rel (%p17) target = $region8
    $region5: #{tpu_custom_call.1} parent=1 // loop_body
      %s21 = ssub.s32 %s16, 1
      %s22 = ssub.s32 %s16, 2
      %s23 = sadd.s32 %s16, 1
      %s24 = ssub.s32 %s16, %s23
      %p25 = scmp.eq.s32.totalorder %s24, 0
      %s27 = sadd.s32 %s26, 1
      %s28 = scalar_select %p25, %s26, %s27
      %p31 = pneg %p25
      %p32 = scmp.eq.s32.totalorder %s16, 1
      %p33 = por %p31, %p32
      %p34 = scmp.ne.s32.totalorder %s26, %s29
      %p35 = scmp.eq.s32.totalorder %s16, 0
      %p36 = por %p34, %p35
      %p37 = scmp.ne.s32.totalorder %s26, %s29
      %p38 = scmp.eq.s32.totalorder %s21, 1
      %p39 = por %p37, %p38
      %p40 = scmp.ne.s32.totalorder %s29, %s30
      %p41 = scmp.eq.s32.totalorder %s21, 0
      %p42 = por %p40, %p41
      %p43 = scmp.ne.s32.totalorder %s29, %s30
      %p44 = scmp.eq.s32.totalorder %s22, 1
      %p45 = por %p43, %p44
      %p47 = scmp.ne.s32.totalorder %s30, %s46
      %p48 = scmp.eq.s32.totalorder %s22, 0
      %p49 = por %p47, %p48
      %s51 = sadd.s32 %s50, 1
      %p54 = scmp.eq.s32.totalorder %s16, 1
      %p55 = scmp.ne.s32.totalorder %s50, %s52
      %p56 = scmp.eq.s32.totalorder %s16, 0
      %p57 = por %p55, %p56
      %p58 = scmp.ne.s32.totalorder %s50, %s52
      %p59 = scmp.eq.s32.totalorder %s21, 1
      %p60 = por %p58, %p59
      %p61 = scmp.ne.s32.totalorder %s52, %s53
      %p62 = scmp.eq.s32.totalorder %s21, 0
      %p63 = por %p61, %p62
      %p64 = scmp.ne.s32.totalorder %s52, %s53
      %p65 = scmp.eq.s32.totalorder %s22, 1
      %p66 = por %p64, %p65
      %p68 = scmp.ne.s32.totalorder %s53, %s67
      %p69 = scmp.eq.s32.totalorder %s22, 0
      %p70 = por %p68, %p69
      %s72 = sadd.s32 %s71, 1
      %p75 = scmp.eq.s32.totalorder %s16, 1
      %p76 = scmp.ne.s32.totalorder %s71, %s73
      %p77 = scmp.eq.s32.totalorder %s16, 0
      %p78 = por %p76, %p77
      %p79 = scmp.ne.s32.totalorder %s71, %s73
      %p80 = scmp.eq.s32.totalorder %s21, 1
      %p81 = por %p79, %p80
      %p82 = scmp.ne.s32.totalorder %s73, %s74
      %p83 = scmp.eq.s32.totalorder %s21, 0
      %p84 = por %p82, %p83
      %p85 = scmp.ne.s32.totalorder %s73, %s74
      %p86 = scmp.eq.s32.totalorder %s22, 1
      %p87 = por %p85, %p86
      %p89 = scmp.ne.s32.totalorder %s74, %s88
      %p90 = scmp.eq.s32.totalorder %s22, 0
      %p91 = por %p89, %p90
      %s93 = sadd.s32 %s92, 1
      %p96 = scmp.eq.s32.totalorder %s16, 1
      %p97 = scmp.ne.s32.totalorder %s92, %s94
      %p98 = scmp.eq.s32.totalorder %s16, 0
      %p99 = por %p97, %p98
      %p100 = scmp.ne.s32.totalorder %s92, %s94
      %p101 = scmp.eq.s32.totalorder %s21, 1
      %p102 = por %p100, %p101
      %p103 = scmp.ne.s32.totalorder %s94, %s95
      %p104 = scmp.eq.s32.totalorder %s21, 0
      %p105 = por %p103, %p104
      %p106 = scmp.ne.s32.totalorder %s94, %s95
      %p107 = scmp.eq.s32.totalorder %s22, 1
      %p108 = por %p106, %p107
      %p110 = scmp.ne.s32.totalorder %s95, %s109
      %p111 = scmp.eq.s32.totalorder %s22, 0
      %p112 = por %p110, %p111
      %s114 = sadd.s32 %s113, 1
      %p117 = scmp.eq.s32.totalorder %s16, 1
      %p118 = scmp.ne.s32.totalorder %s113, %s115
      %p119 = scmp.eq.s32.totalorder %s16, 0
      %p120 = por %p118, %p119
      %p121 = scmp.ne.s32.totalorder %s113, %s115
      %p122 = scmp.eq.s32.totalorder %s21, 1
      %p123 = por %p121, %p122
      %p124 = scmp.ne.s32.totalorder %s115, %s116
      %p125 = scmp.eq.s32.totalorder %s21, 0
      %p126 = por %p124, %p125
      %p127 = scmp.ne.s32.totalorder %s115, %s116
      %p128 = scmp.eq.s32.totalorder %s22, 1
      %p129 = por %p127, %p128
      %p131 = scmp.ne.s32.totalorder %s116, %s130
      %p132 = scmp.eq.s32.totalorder %s22, 0
      %p133 = por %p131, %p132
      %s135 = sadd.s32 %s134, 1
      %p138 = scmp.eq.s32.totalorder %s16, 1
      %p139 = scmp.ne.s32.totalorder %s134, %s136
      %p140 = scmp.eq.s32.totalorder %s16, 0
      %p141 = por %p139, %p140
      %p142 = scmp.ne.s32.totalorder %s134, %s136
      %p143 = scmp.eq.s32.totalorder %s21, 1
      %p144 = por %p142, %p143
      %p145 = scmp.ne.s32.totalorder %s136, %s137
      %p146 = scmp.eq.s32.totalorder %s21, 0
      %p147 = por %p145, %p146
      %p148 = scmp.ne.s32.totalorder %s136, %s137
      %p149 = scmp.eq.s32.totalorder %s22, 1
      %p150 = por %p148, %p149
      %p152 = scmp.ne.s32.totalorder %s137, %s151
      %p153 = scmp.eq.s32.totalorder %s22, 0
      %p154 = por %p152, %p153
      %s156 = sadd.s32 %s155, 1
      %p159 = scmp.eq.s32.totalorder %s16, 1
      %p160 = scmp.ne.s32.totalorder %s155, %s157
      %p161 = scmp.eq.s32.totalorder %s16, 0
      %p162 = por %p160, %p161
      %p163 = scmp.ne.s32.totalorder %s155, %s157
      %p164 = scmp.eq.s32.totalorder %s21, 1
      %p165 = por %p163, %p164
      %p166 = scmp.ne.s32.totalorder %s157, %s158
      %p167 = scmp.eq.s32.totalorder %s21, 0
      %p168 = por %p166, %p167
      %p169 = scmp.ne.s32.totalorder %s157, %s158
      %p170 = scmp.eq.s32.totalorder %s22, 1
      %p171 = por %p169, %p170
      %p173 = scmp.ne.s32.totalorder %s158, %s172
      %p174 = scmp.eq.s32.totalorder %s22, 0
      %p175 = por %p173, %p174
      %s176 = ssub.s32 %s16, %s23
      %p177 = scmp.eq.s32.totalorder %s176, 0
      %s179 = sadd.s32 %s178, 1
      %s180 = scalar_select %p177, %s178, %s179
      %p183 = pneg %p177
      %p184 = scmp.eq.s32.totalorder %s16, 1
      %p185 = por %p183, %p184
      %p186 = scmp.ne.s32.totalorder %s178, %s181
      %p187 = scmp.eq.s32.totalorder %s16, 0
      %p188 = por %p186, %p187
      %p189 = scmp.ne.s32.totalorder %s178, %s181
      %p190 = scmp.eq.s32.totalorder %s21, 1
      %p191 = por %p189, %p190
      %p192 = scmp.ne.s32.totalorder %s181, %s182
      %p193 = scmp.eq.s32.totalorder %s21, 0
      %p194 = por %p192, %p193
      %p195 = scmp.ne.s32.totalorder %s181, %s182
      %p196 = scmp.eq.s32.totalorder %s22, 1
      %p197 = por %p195, %p196
      %p199 = scmp.ne.s32.totalorder %s182, %s198
      %p200 = scmp.eq.s32.totalorder %s22, 0
      %p201 = por %p199, %p200
      %p202 = scmp.le.s32.totalorder 1, %s16
      %p203 = scmp.lt.s32.totalorder %s16, 3
      %p204 = pnand %p202, %p203
      %p205 = pneg %p204
      // Predicated region
      $region9: #{tpu_custom_call.1} parent=5 // pred_check
        _
      $region10: #{tpu_custom_call.1} parent=5 // pred_check_branch
        %207 = sbr.rel (%p204) target = $region12
      $region11: #{tpu_custom_call.1} parent=5 // pred_region
        %s208 = ssub.s32 %s16, 1
        // Predicated region
        $region13: #{tpu_custom_call.1} parent=11 // pred_check
          %p209 = pneg %p63
        $region14: #{tpu_custom_call.1} parent=11 // pred_check_branch
          %211 = sbr.rel (%p209) target = $region16
        $region15: #{tpu_custom_call.1} parent=11 // pred_region
          _
        $region16: #{tpu_custom_call.1} parent=11 // pred_fallthru
          _
        // Predicated region
        $region17: #{tpu_custom_call.1} parent=11 // pred_check
          %p212 = pneg %p84
        $region18: #{tpu_custom_call.1} parent=11 // pred_check_branch
          %214 = sbr.rel (%p212) target = $region20
        $region19: #{tpu_custom_call.1} parent=11 // pred_region
          _
        $region20: #{tpu_custom_call.1} parent=11 // pred_fallthru
          _
        // Predicated region
        $region21: #{tpu_custom_call.1} parent=11 // pred_check
          %p215 = pneg %p105
        $region22: #{tpu_custom_call.1} parent=11 // pred_check_branch
          %217 = sbr.rel (%p215) target = $region24
        $region23: #{tpu_custom_call.1} parent=11 // pred_region
          _
        $region24: #{tpu_custom_call.1} parent=11 // pred_fallthru
          _
        // Predicated region
        $region25: #{tpu_custom_call.1} parent=11 // pred_check
          %p218 = pneg %p126
        $region26: #{tpu_custom_call.1} parent=11 // pred_check_branch
          %220 = sbr.rel (%p218) target = $region28
        $region27: #{tpu_custom_call.1} parent=11 // pred_region
          _
        $region28: #{tpu_custom_call.1} parent=11 // pred_fallthru
          _
        // Predicated region
        $region29: #{tpu_custom_call.1} parent=11 // pred_check
          %p221 = pneg %p147
        $region30: #{tpu_custom_call.1} parent=11 // pred_check_branch
          %223 = sbr.rel (%p221) target = $region32
        $region31: #{tpu_custom_call.1} parent=11 // pred_region
          _
        $region32: #{tpu_custom_call.1} parent=11 // pred_fallthru
          _
        // Predicated region
        $region33: #{tpu_custom_call.1} parent=11 // pred_check
          %p224 = pneg %p168
        $region34: #{tpu_custom_call.1} parent=11 // pred_check_branch
          %226 = sbr.rel (%p224) target = $region36
        $region35: #{tpu_custom_call.1} parent=11 // pred_region
          _
        $region36: #{tpu_custom_call.1} parent=11 // pred_fallthru
          _
      $region12: #{tpu_custom_call.1} parent=5 // pred_fallthru
        _
      %p227 = scmp.lt.s32.totalorder %s16, 2
      // Predicated region
      $region37: #{tpu_custom_call.1} parent=5 // pred_check
        %p228 = pneg %p227
      $region38: #{tpu_custom_call.1} parent=5 // pred_check_branch
        %230 = sbr.rel (%p228) target = $region40
      $region39: #{tpu_custom_call.1} parent=5 // pred_region
        // Predicated region
        $region41: #{tpu_custom_call.1} parent=39 // pred_check
          %p231 = pneg %p36
        $region42: #{tpu_custom_call.1} parent=39 // pred_check_branch
          %233 = sbr.rel (%p231) target = $region44
        $region43: #{tpu_custom_call.1} parent=39 // pred_region
          %p234 = scmp.lt.s32.totalorder %s16, 1
          %s235 = scalar_select %p234, %s16, 1
          %s236 = smul.addr %s235, 32
          %s237 = smul.addr %s236, 4
          %s238 = scalar_lea.vmem %s0, %s237
        $region44: #{tpu_custom_call.1} parent=39 // pred_fallthru
          _
      $region40: #{tpu_custom_call.1} parent=5 // pred_fallthru
        _
      %p239 = scmp.le.s32.totalorder 1, %s16
      %p240 = scmp.lt.s32.totalorder %s16, 3
      %p241 = pnand %p239, %p240
      %p242 = pneg %p241
      // Predicated region
      $region45: #{tpu_custom_call.1} parent=5 // pred_check
        _
      $region46: #{tpu_custom_call.1} parent=5 // pred_check_branch
        %244 = sbr.rel (%p241) target = $region48
      $region47: #{tpu_custom_call.1} parent=5 // pred_region
        %s245 = ssub.s32 %s16, 1
        %p246 = scmp.lt.s32.totalorder %s21, 1
        %s247 = scalar_select %p246, %s21, 1
        %s248 = smul.addr %s247, 32
        %s249 = smul.addr %s248, 4
        %s250 = scalar_lea.vmem %s0, %s249
        %p251 = pneg %p42
        %p252 = pneg %p39
        %p253 = pneg %p63
        %p254 = pneg %p60
        %p255 = pneg %p84
        %p256 = pneg %p81
        %p257 = pneg %p105
        %p258 = pneg %p102
        %p259 = pneg %p126
        %p260 = pneg %p123
        %p261 = pneg %p147
        %p262 = pneg %p144
        %p263 = pneg %p168
        %p264 = pneg %p165
        %p265 = pneg %p194
        %p266 = pneg %p191
        %s267 = sand.u32 %s181, 1
        %s268 = scalar_lea.sflag [#allocation5], %s267
        %s269 = sand.u32 %s181, 1
        %s270 = smul.addr %s269, 1024
        %s271 = scalar_lea.vmem [#allocation4], %s270
        %p272 = scmp.lt.s32.totalorder %s21, 1
        %s273 = scalar_select %p272, %s21, 1
        %s274 = smul.addr %s273, 32
        %s275 = smul.addr %s274, 4
        %s276 = scalar_lea.vmem %s0, %s275
        %v278 = vld [vmem:[%s276] sm:$0xf]
        %v279 = vld [vmem:[%s276 + $0x4] sm:$0xf]
        %v280 = vld [vmem:[%s276 + $0x8] sm:$0xf]
        %v281 = vld [vmem:[%s276 + $0xc] sm:$0xf]
        %v282 = vld [vmem:[%s276 + $0x10] sm:$0xf]
        %v283 = vld [vmem:[%s276 + $0x14] sm:$0xf]
        %v284 = vld [vmem:[%s276 + $0x18] sm:$0xf]
        %v285 = vld [vmem:[%s276 + $0x1c] sm:$0xf]
        %v286 = vld [vmem:[%s276 + $0x20] sm:$0xf]
        %v287 = vld [vmem:[%s276 + $0x24] sm:$0xf]
        %v288 = vld [vmem:[%s276 + $0x28] sm:$0xf]
        %v289 = vld [vmem:[%s276 + $0x2c] sm:$0xf]
        %v290 = vld [vmem:[%s276 + $0x30] sm:$0xf]
        %v291 = vld [vmem:[%s276 + $0x34] sm:$0xf]
        %v292 = vld [vmem:[%s276 + $0x38] sm:$0xf]
        %v293 = vld [vmem:[%s276 + $0x3c] sm:$0xf]
        %v294 = vld [vmem:[%s276 + $0x40] sm:$0xf]
        %v295 = vld [vmem:[%s276 + $0x44] sm:$0xf]
        %v296 = vld [vmem:[%s276 + $0x48] sm:$0xf]
        %v297 = vld [vmem:[%s276 + $0x4c] sm:$0xf]
        %v298 = vld [vmem:[%s276 + $0x50] sm:$0xf]
        %v299 = vld [vmem:[%s276 + $0x54] sm:$0xf]
        %v300 = vld [vmem:[%s276 + $0x58] sm:$0xf]
        %v301 = vld [vmem:[%s276 + $0x5c] sm:$0xf]
        %v302 = vld [vmem:[%s276 + $0x60] sm:$0xf]
        %v303 = vld [vmem:[%s276 + $0x64] sm:$0xf]
        %v304 = vld [vmem:[%s276 + $0x68] sm:$0xf]
        %v305 = vld [vmem:[%s276 + $0x6c] sm:$0xf]
        %v306 = vld [vmem:[%s276 + $0x70] sm:$0xf]
        %v307 = vld [vmem:[%s276 + $0x74] sm:$0xf]
        %v308 = vld [vmem:[%s276 + $0x78] sm:$0xf]
        %v309 = vld [vmem:[%s276 + $0x7c] sm:$0xf]
        %v310 = vld [vmem:[%s1] sm:$0xf]
        %v311 = vld [vmem:[%s1 + $0x4] sm:$0xf]
        %v312 = vld [vmem:[%s1 + $0x8] sm:$0xf]
        %v313 = vld [vmem:[%s1 + $0xc] sm:$0xf]
        %v314 = vld [vmem:[%s1 + $0x10] sm:$0xf]
        %v315 = vld [vmem:[%s1 + $0x14] sm:$0xf]
        %v316 = vld [vmem:[%s1 + $0x18] sm:$0xf]
        %v317 = vld [vmem:[%s1 + $0x1c] sm:$0xf]
        %v318 = vld [vmem:[%s2] sm:$0x1]
        %v320 = vlaneseq
        %v321 = vshrl.u32 %v320, 7
        %v322 = vsub.s32 0, %v321
        %v323 = vrot.slane %v318, %v322
        %v357 = vunpack.c.l.b16 %v278
        %v358 = vunpack.c.l.b16 %v279
        %v359 = vunpack.c.l.b16 %v280
        %v360 = vunpack.c.l.b16 %v281
        %v361 = vunpack.c.l.b16 %v282
        %v362 = vunpack.c.l.b16 %v283
        %v363 = vunpack.c.l.b16 %v284
        %v364 = vunpack.c.l.b16 %v285
        %v365 = vunpack.c.l.b16 %v286
        %v366 = vunpack.c.l.b16 %v287
        %v367 = vunpack.c.l.b16 %v288
        %v368 = vunpack.c.l.b16 %v289
        %v369 = vunpack.c.l.b16 %v290
        %v370 = vunpack.c.l.b16 %v291
        %v371 = vunpack.c.l.b16 %v292
        %v372 = vunpack.c.l.b16 %v293
        %v373 = vunpack.c.l.b16 %v294
        %v374 = vunpack.c.l.b16 %v295
        %v375 = vunpack.c.l.b16 %v296
        %v376 = vunpack.c.l.b16 %v297
        %v377 = vunpack.c.l.b16 %v298
        %v378 = vunpack.c.l.b16 %v299
        %v379 = vunpack.c.l.b16 %v300
        %v380 = vunpack.c.l.b16 %v301
        %v381 = vunpack.c.l.b16 %v302
        %v382 = vunpack.c.l.b16 %v303
        %v383 = vunpack.c.l.b16 %v304
        %v384 = vunpack.c.l.b16 %v305
        %v385 = vunpack.c.l.b16 %v306
        %v386 = vunpack.c.l.b16 %v307
        %v387 = vunpack.c.l.b16 %v308
        %v388 = vunpack.c.l.b16 %v309
        %v389 = vpack.c.b16 %v358, %v357
        %v390 = vpack.c.b16 %v360, %v359
        %v391 = vpack.c.b16 %v362, %v361
        %v392 = vpack.c.b16 %v364, %v363
        %v393 = vpack.c.b16 %v366, %v365
        %v394 = vpack.c.b16 %v368, %v367
        %v395 = vpack.c.b16 %v370, %v369
        %v396 = vpack.c.b16 %v372, %v371
        %v397 = vpack.c.b16 %v374, %v373
        %v398 = vpack.c.b16 %v376, %v375
        %v399 = vpack.c.b16 %v378, %v377
        %v400 = vpack.c.b16 %v380, %v379
        %v401 = vpack.c.b16 %v382, %v381
        %v402 = vpack.c.b16 %v384, %v383
        %v403 = vpack.c.b16 %v386, %v385
        %v404 = vpack.c.b16 %v388, %v387
        %v413 = vunpack.c.l.b16 %v310
        %v414 = vunpack.c.l.b16 %v311
        %v415 = vunpack.c.l.b16 %v312
        %v416 = vunpack.c.l.b16 %v313
        %v417 = vunpack.c.l.b16 %v314
        %v418 = vunpack.c.l.b16 %v315
        %v419 = vunpack.c.l.b16 %v316
        %v420 = vunpack.c.l.b16 %v317
        %v421 = vpack.c.b16 %v414, %v413
        %v422 = vpack.c.b16 %v416, %v415
        %v423 = vpack.c.b16 %v418, %v417
        %v424 = vpack.c.b16 %v420, %v419
        %vm429 = vcmask 523264
        %v431 = vsel %vm429, %v389, 0
        %v434 = vsel %vm429, %v390, 0
        %v437 = vsel %vm429, %v391, 0
        %v440 = vsel %vm429, %v392, 0
        %v443 = vsel %vm429, %v393, 0
        %v446 = vsel %vm429, %v394, 0
        %v449 = vsel %vm429, %v395, 0
        %v452 = vsel %vm429, %v396, 0
        %v455 = vsel %vm429, %v397, 0
        %v458 = vsel %vm429, %v398, 0
        %v461 = vsel %vm429, %v399, 0
        %v464 = vsel %vm429, %v400, 0
        %v467 = vsel %vm429, %v401, 0
        %v470 = vsel %vm429, %v402, 0
        %v473 = vsel %vm429, %v403, 0
        %v476 = vsel %vm429, %v404, 0
        %478 = vmatprep.subr.bf16.mxu0 0
        %479 = vmatpush1.bf16.msra.mxu0 %v421
        %480 = vmatprep.subr.bf16.mxu0 0
        %481 = vmatpush1.bf16.msra.mxu0 %v422
        %482 = vmatprep.subr.bf16.mxu0 0
        %483 = vmatpush1.bf16.msra.mxu0 %v423
        %484 = vmatprep.subr.bf16.mxu0 0
        %485 = vmatpush1.bf16.msra.mxu0 %v424
        %486 = vmatprep.subr.bf16.mxu0 0
        %487 = vmatpush1.bf16.msra.mxu0 0
        %488 = vmatprep.subr.bf16.mxu0 0
        %489 = vmatpush1.bf16.msra.mxu0 0
        %490 = vmatprep.subr.bf16.mxu0 0
        %491 = vmatpush1.bf16.msra.mxu0 0
        %492 = vmatprep.subr.bf16.mxu0 0
        %493 = vmatpush1.bf16.msra.mxu0 0
        %494 = vmatprep.subr.bf16.mxu0 0
        %495 = vmatpush1.bf16.msra.mxu0 0
        %496 = vmatprep.subr.bf16.mxu0 0
        %497 = vmatpush1.bf16.msra.mxu0 0
        %498 = vmatprep.subr.bf16.mxu0 0
        %499 = vmatpush1.bf16.msra.mxu0 0
        %500 = vmatprep.subr.bf16.mxu0 0
        %501 = vmatpush1.bf16.msra.mxu0 0
        %502 = vmatprep.subr.bf16.mxu0 0
        %503 = vmatpush1.bf16.msra.mxu0 0
        %504 = vmatprep.subr.bf16.mxu0 0
        %505 = vmatpush1.bf16.msra.mxu0 0
        %506 = vmatprep.subr.bf16.mxu0 0
        %507 = vmatpush1.bf16.msra.mxu0 0
        %508 = vmatprep.subr.bf16.mxu0 0
        %509 = vmatpush1.bf16.msra.mxu0 0
        %510 = vmatprep.mubr.bf16.mxu0 0
        %511 = vmatmul.mubr.bf16.gmra.mrb[0].mxu0 %v431
        %v512 = vpop.f32.mrb[0].mxu0
        %v513 = vadd.f32 %v323, %v512
        %v514 = vpop.f32.mrb[0].mxu0
        %v515 = vpop.f32.mrb[0].mxu0
        %v516 = vadd.f32 %v323, %v515
        %v517 = vpop.f32.mrb[0].mxu0
        %518 = vmatprep.mubr.bf16.mxu0 0
        %519 = vmatmul.mubr.bf16.gmra.mrb[0].mxu0 %v434
        %v520 = vpop.f32.mrb[0].mxu0
        %v521 = vadd.f32 %v323, %v520
        %v522 = vpop.f32.mrb[0].mxu0
        %v523 = vpop.f32.mrb[0].mxu0
        %v524 = vadd.f32 %v323, %v523
        %v525 = vpop.f32.mrb[0].mxu0
        %526 = vmatprep.mubr.bf16.mxu0 0
        %527 = vmatmul.mubr.bf16.gmra.mrb[0].mxu0 %v437
        %v528 = vpop.f32.mrb[0].mxu0
        %v529 = vadd.f32 %v323, %v528
        %v530 = vpop.f32.mrb[0].mxu0
        %v531 = vpop.f32.mrb[0].mxu0
        %v532 = vadd.f32 %v323, %v531
        %v533 = vpop.f32.mrb[0].mxu0
        %534 = vmatprep.mubr.bf16.mxu0 0
        %535 = vmatmul.mubr.bf16.gmra.mrb[0].mxu0 %v440
        %v536 = vpop.f32.mrb[0].mxu0
        %v537 = vadd.f32 %v323, %v536
        %v538 = vpop.f32.mrb[0].mxu0
        %v539 = vpop.f32.mrb[0].mxu0
        %v540 = vadd.f32 %v323, %v539
        %v541 = vpop.f32.mrb[0].mxu0
        %542 = vmatprep.mubr.bf16.mxu0 0
        %543 = vmatmul.mubr.bf16.gmra.mrb[0].mxu0 %v443
        %v544 = vpop.f32.mrb[0].mxu0
        %v545 = vadd.f32 %v323, %v544
        %v546 = vpop.f32.mrb[0].mxu0
        %v547 = vpop.f32.mrb[0].mxu0
        %v548 = vadd.f32 %v323, %v547
        %v549 = vpop.f32.mrb[0].mxu0
        %550 = vmatprep.mubr.bf16.mxu0 0
        %551 = vmatmul.mubr.bf16.gmra.mrb[0].mxu0 %v446
        %v552 = vpop.f32.mrb[0].mxu0
        %v553 = vadd.f32 %v323, %v552
        %v554 = vpop.f32.mrb[0].mxu0
        %v555 = vpop.f32.mrb[0].mxu0
        %v556 = vadd.f32 %v323, %v555
        %v557 = vpop.f32.mrb[0].mxu0
        %558 = vmatprep.mubr.bf16.mxu0 0
        %559 = vmatmul.mubr.bf16.gmra.mrb[0].mxu0 %v449
        %v560 = vpop.f32.mrb[0].mxu0
        %v561 = vadd.f32 %v323, %v560
        %v562 = vpop.f32.mrb[0].mxu0
        %v563 = vpop.f32.mrb[0].mxu0
        %v564 = vadd.f32 %v323, %v563
        %v565 = vpop.f32.mrb[0].mxu0
        %566 = vmatprep.mubr.bf16.mxu0 0
        %567 = vmatmul.mubr.bf16.gmra.mrb[0].mxu0 %v452
        %v568 = vpop.f32.mrb[0].mxu0
        %v569 = vadd.f32 %v323, %v568
        %v570 = vpop.f32.mrb[0].mxu0
        %v571 = vpop.f32.mrb[0].mxu0
        %v572 = vadd.f32 %v323, %v571
        %v573 = vpop.f32.mrb[0].mxu0
        %574 = vmatprep.mubr.bf16.mxu0 0
        %575 = vmatmul.mubr.bf16.gmra.mrb[0].mxu0 %v455
        %v576 = vpop.f32.mrb[0].mxu0
        %v577 = vadd.f32 %v323, %v576
        %v578 = vpop.f32.mrb[0].mxu0
        %v579 = vpop.f32.mrb[0].mxu0
        %v580 = vadd.f32 %v323, %v579
        %v581 = vpop.f32.mrb[0].mxu0
        %582 = vmatprep.mubr.bf16.mxu0 0
        %583 = vmatmul.mubr.bf16.gmra.mrb[0].mxu0 %v458
        %v584 = vpop.f32.mrb[0].mxu0
        %v585 = vadd.f32 %v323, %v584
        %v586 = vpop.f32.mrb[0].mxu0
        %v587 = vpop.f32.mrb[0].mxu0
        %v588 = vadd.f32 %v323, %v587
        %v589 = vpop.f32.mrb[0].mxu0
        %590 = vmatprep.mubr.bf16.mxu0 0
        %591 = vmatmul.mubr.bf16.gmra.mrb[0].mxu0 %v461
        %v592 = vpop.f32.mrb[0].mxu0
        %v593 = vadd.f32 %v323, %v592
        %v594 = vpop.f32.mrb[0].mxu0
        %v595 = vpop.f32.mrb[0].mxu0
        %v596 = vadd.f32 %v323, %v595
        %v597 = vpop.f32.mrb[0].mxu0
        %598 = vmatprep.mubr.bf16.mxu0 0
        %599 = vmatmul.mubr.bf16.gmra.mrb[0].mxu0 %v464
        %v600 = vpop.f32.mrb[0].mxu0
        %v601 = vadd.f32 %v323, %v600
        %v602 = vpop.f32.mrb[0].mxu0
        %v603 = vpop.f32.mrb[0].mxu0
        %v604 = vadd.f32 %v323, %v603
        %v605 = vpop.f32.mrb[0].mxu0
        %606 = vmatprep.mubr.bf16.mxu0 0
        %607 = vmatmul.mubr.bf16.gmra.mrb[0].mxu0 %v467
        %v608 = vpop.f32.mrb[0].mxu0
        %v609 = vadd.f32 %v323, %v608
        %v610 = vpop.f32.mrb[0].mxu0
        %v611 = vpop.f32.mrb[0].mxu0
        %v612 = vadd.f32 %v323, %v611
        %v613 = vpop.f32.mrb[0].mxu0
        %614 = vmatprep.mubr.bf16.mxu0 0
        %615 = vmatmul.mubr.bf16.gmra.mrb[0].mxu0 %v470
        %v616 = vpop.f32.mrb[0].mxu0
        %v617 = vadd.f32 %v323, %v616
        %v618 = vpop.f32.mrb[0].mxu0
        %v619 = vpop.f32.mrb[0].mxu0
        %v620 = vadd.f32 %v323, %v619
        %v621 = vpop.f32.mrb[0].mxu0
        %622 = vmatprep.mubr.bf16.mxu0 0
        %623 = vmatmul.mubr.bf16.gmra.mrb[0].mxu0 %v473
        %v624 = vpop.f32.mrb[0].mxu0
        %v625 = vadd.f32 %v323, %v624
        %v626 = vpop.f32.mrb[0].mxu0
        %v627 = vpop.f32.mrb[0].mxu0
        %v628 = vadd.f32 %v323, %v627
        %v629 = vpop.f32.mrb[0].mxu0
        %630 = vmatprep.mubr.bf16.mxu0 0
        %631 = vmatmul.mubr.bf16.gmra.mrb[0].mxu0 %v476
        %v632 = vpop.f32.mrb[0].mxu0
        %v633 = vadd.f32 %v323, %v632
        %v634 = vpop.f32.mrb[0].mxu0
        %v635 = vpop.f32.mrb[0].mxu0
        %v636 = vadd.f32 %v323, %v635
        %v637 = vpop.f32.mrb[0].mxu0
        %638 = vdwg.mxu0
        %v639 = vmax.f32 %v513, 0.0
        %v640 = vmax.f32 %v516, 0.0
        %v641 = vmax.f32 %v521, 0.0
        %v642 = vmax.f32 %v524, 0.0
        %v643 = vmax.f32 %v529, 0.0
        %v644 = vmax.f32 %v532, 0.0
        %v645 = vmax.f32 %v537, 0.0
        %v646 = vmax.f32 %v540, 0.0
        %v647 = vmax.f32 %v545, 0.0
        %v648 = vmax.f32 %v548, 0.0
        %v649 = vmax.f32 %v553, 0.0
        %v650 = vmax.f32 %v556, 0.0
        %v651 = vmax.f32 %v561, 0.0
        %v652 = vmax.f32 %v564, 0.0
        %v653 = vmax.f32 %v569, 0.0
        %v654 = vmax.f32 %v572, 0.0
        %v655 = vmax.f32 %v577, 0.0
        %v656 = vmax.f32 %v580, 0.0
        %v657 = vmax.f32 %v585, 0.0
        %v658 = vmax.f32 %v588, 0.0
        %v659 = vmax.f32 %v593, 0.0
        %v660 = vmax.f32 %v596, 0.0
        %v661 = vmax.f32 %v601, 0.0
        %v662 = vmax.f32 %v604, 0.0
        %v663 = vmax.f32 %v609, 0.0
        %v664 = vmax.f32 %v612, 0.0
        %v665 = vmax.f32 %v617, 0.0
        %v666 = vmax.f32 %v620, 0.0
        %v667 = vmax.f32 %v625, 0.0
        %v668 = vmax.f32 %v628, 0.0
        %v669 = vmax.f32 %v633, 0.0
        %v670 = vmax.f32 %v636, 0.0
        %v671 = vpack.c.bf16 %v640, %v639
        %v672 = vpack.c.bf16 %v642, %v641
        %v673 = vpack.c.bf16 %v644, %v643
        %v674 = vpack.c.bf16 %v646, %v645
        %v675 = vpack.c.bf16 %v648, %v647
        %v676 = vpack.c.bf16 %v650, %v649
        %v677 = vpack.c.bf16 %v652, %v651
        %v678 = vpack.c.bf16 %v654, %v653
        %v679 = vpack.c.bf16 %v656, %v655
        %v680 = vpack.c.bf16 %v658, %v657
        %v681 = vpack.c.bf16 %v660, %v659
        %v682 = vpack.c.bf16 %v662, %v661
        %v683 = vpack.c.bf16 %v664, %v663
        %v684 = vpack.c.bf16 %v666, %v665
        %v685 = vpack.c.bf16 %v668, %v667
        %v686 = vpack.c.bf16 %v670, %v669
        %687 = vst [vmem:[#allocation2] sm:$0xf] 0
        %688 = vst [vmem:[#allocation2 + $0x4] sm:$0xf] 0
        %vm689 = vcmask 1040384
        %vm690 = vsmask.f32 256
        %vm691 = vmand %vm689, %vm690
        %v692 = vld [vmem:[#allocation2 + $0x8] sm:$0x1]
        %v693 = vsel %vm691, 0, %v692
        %694 = vst [vmem:[#allocation2 + $0x8] sm:$0x1] %v693
        %s695 = scalar_lea.vmem [#allocation2], 192
        %696 = vst [vmem:[%s695] sm:$0xf] 0
        %697 = vst [vmem:[%s695 + $0x4] sm:$0xf] 0
        %v698 = vld [vmem:[%s695 + $0x8] sm:$0x1]
        %v699 = vsel %vm691, 0, %v698
        %700 = vst [vmem:[%s695 + $0x8] sm:$0x1] %v699
        %v701 = vld [vmem:[#allocation2] sm:$0x1]
        %v702 = vsel %vm691, 0, %v701
        %703 = vst [vmem:[#allocation2] sm:$0x1] %v702
        %v704 = vld [vmem:[#allocation2 + $0xc] sm:$0x1]
        %v705 = vsel %vm691, 0, %v704
        %706 = vst [vmem:[#allocation2 + $0xc] sm:$0x1] %v705
        %v707 = vld [vmem:[#allocation2 + $0x18] sm:$0x1]
        %v708 = vsel %vm691, 0, %v707
        %709 = vst [vmem:[#allocation2 + $0x18] sm:$0x1] %v708
        %v710 = vld [vmem:[#allocation2 + $0x24] sm:$0x1]
        %v711 = vsel %vm691, 0, %v710
        %712 = vst [vmem:[#allocation2 + $0x24] sm:$0x1] %v711
        %v713 = vld [vmem:[#allocation2 + $0x30] sm:$0x1]
        %v714 = vsel %vm691, 0, %v713
        %715 = vst [vmem:[#allocation2 + $0x30] sm:$0x1] %v714
        %v716 = vld [vmem:[#allocation2 + $0x3c] sm:$0x1]
        %v717 = vsel %vm691, 0, %v716
        %718 = vst [vmem:[#allocation2 + $0x3c] sm:$0x1] %v717
        %v719 = vld [vmem:[#allocation2 + $0x48] sm:$0x1]
        %v720 = vsel %vm691, 0, %v719
        %721 = vst [vmem:[#allocation2 + $0x48] sm:$0x1] %v720
        %v722 = vld [vmem:[#allocation2 + $0x54] sm:$0x1]
        %v723 = vsel %vm691, 0, %v722
        %724 = vst [vmem:[#allocation2 + $0x54] sm:$0x1] %v723
        %v725 = vld [vmem:[#allocation2 + $0x60] sm:$0x1]
        %v726 = vsel %vm691, 0, %v725
        %727 = vst [vmem:[#allocation2 + $0x60] sm:$0x1] %v726
        %v728 = vld [vmem:[#allocation2 + $0x6c] sm:$0x1]
        %v729 = vsel %vm691, 0, %v728
        %730 = vst [vmem:[#allocation2 + $0x6c] sm:$0x1] %v729
        %v731 = vld [vmem:[#allocation2 + $0x78] sm:$0x1]
        %v732 = vsel %vm691, 0, %v731
        %733 = vst [vmem:[#allocation2 + $0x78] sm:$0x1] %v732
        %v734 = vld [vmem:[#allocation2 + $0x84] sm:$0x1]
        %v735 = vsel %vm691, 0, %v734
        %736 = vst [vmem:[#allocation2 + $0x84] sm:$0x1] %v735
        %v737 = vld [vmem:[#allocation2 + $0x90] sm:$0x1]
        %v738 = vsel %vm691, 0, %v737
        %739 = vst [vmem:[#allocation2 + $0x90] sm:$0x1] %v738
        %v740 = vld [vmem:[#allocation2 + $0x9c] sm:$0x1]
        %v741 = vsel %vm691, 0, %v740
        %742 = vst [vmem:[#allocation2 + $0x9c] sm:$0x1] %v741
        %v743 = vld [vmem:[#allocation2 + $0xa8] sm:$0x1]
        %v744 = vsel %vm691, 0, %v743
        %745 = vst [vmem:[#allocation2 + $0xa8] sm:$0x1] %v744
        %v746 = vld [vmem:[#allocation2 + $0xb4] sm:$0x1]
        %v747 = vsel %vm691, 0, %v746
        %748 = vst [vmem:[#allocation2 + $0xb4] sm:$0x1] %v747
        %v749 = vld [vmem:[#allocation2 + $0xc0] sm:$0x1]
        %v750 = vsel %vm691, 0, %v749
        %751 = vst [vmem:[#allocation2 + $0xc0] sm:$0x1] %v750
        %v752 = vld [vmem:[#allocation2 + $0x8] sm:$0x1]
        %v753 = vsel %vm691, 0, %v752
        %754 = vst [vmem:[#allocation2 + $0x8] sm:$0x1] %v753
        %v755 = vld [vmem:[#allocation2 + $0x14] sm:$0x1]
        %v756 = vsel %vm691, 0, %v755
        %757 = vst [vmem:[#allocation2 + $0x14] sm:$0x1] %v756
        %v758 = vld [vmem:[#allocation2 + $0x20] sm:$0x1]
        %v759 = vsel %vm691, 0, %v758
        %760 = vst [vmem:[#allocation2 + $0x20] sm:$0x1] %v759
        %v761 = vld [vmem:[#allocation2 + $0x2c] sm:$0x1]
        %v762 = vsel %vm691, 0, %v761
        %763 = vst [vmem:[#allocation2 + $0x2c] sm:$0x1] %v762
        %v764 = vld [vmem:[#allocation2 + $0x38] sm:$0x1]
        %v765 = vsel %vm691, 0, %v764
        %766 = vst [vmem:[#allocation2 + $0x38] sm:$0x1] %v765
        %v767 = vld [vmem:[#allocation2 + $0x44] sm:$0x1]
        %v768 = vsel %vm691, 0, %v767
        %769 = vst [vmem:[#allocation2 + $0x44] sm:$0x1] %v768
        %v770 = vld [vmem:[#allocation2 + $0x50] sm:$0x1]
        %v771 = vsel %vm691, 0, %v770
        %772 = vst [vmem:[#allocation2 + $0x50] sm:$0x1] %v771
        %v773 = vld [vmem:[#allocation2 + $0x5c] sm:$0x1]
        %v774 = vsel %vm691, 0, %v773
        %775 = vst [vmem:[#allocation2 + $0x5c] sm:$0x1] %v774
        %v776 = vld [vmem:[#allocation2 + $0x68] sm:$0x1]
        %v777 = vsel %vm691, 0, %v776
        %778 = vst [vmem:[#allocation2 + $0x68] sm:$0x1] %v777
        %v779 = vld [vmem:[#allocation2 + $0x74] sm:$0x1]
        %v780 = vsel %vm691, 0, %v779
        %781 = vst [vmem:[#allocation2 + $0x74] sm:$0x1] %v780
        %v782 = vld [vmem:[#allocation2 + $0x80] sm:$0x1]
        %v783 = vsel %vm691, 0, %v782
        %784 = vst [vmem:[#allocation2 + $0x80] sm:$0x1] %v783
        %v785 = vld [vmem:[#allocation2 + $0x8c] sm:$0x1]
        %v786 = vsel %vm691, 0, %v785
        %787 = vst [vmem:[#allocation2 + $0x8c] sm:$0x1] %v786
        %v788 = vld [vmem:[#allocation2 + $0x98] sm:$0x1]
        %v789 = vsel %vm691, 0, %v788
        %790 = vst [vmem:[#allocation2 + $0x98] sm:$0x1] %v789
        %v791 = vld [vmem:[#allocation2 + $0xa4] sm:$0x1]
        %v792 = vsel %vm691, 0, %v791
        %793 = vst [vmem:[#allocation2 + $0xa4] sm:$0x1] %v792
        %v794 = vld [vmem:[#allocation2 + $0xb0] sm:$0x1]
        %v795 = vsel %vm691, 0, %v794
        %796 = vst [vmem:[#allocation2 + $0xb0] sm:$0x1] %v795
        %v797 = vld [vmem:[#allocation2 + $0xbc] sm:$0x1]
        %v798 = vsel %vm691, 0, %v797
        %799 = vst [vmem:[#allocation2 + $0xbc] sm:$0x1] %v798
        %v800 = vld [vmem:[#allocation2 + $0xc8] sm:$0x1]
        %v801 = vsel %vm691, 0, %v800
        %802 = vst [vmem:[#allocation2 + $0xc8] sm:$0x1] %v801
        %v819 = vunpack.c.l.b16 %v671
        %v820 = vunpack.c.h.b16 %v671
        %v821 = vunpack.c.l.b16 %v672
        %v822 = vunpack.c.h.b16 %v672
        %v823 = vunpack.c.l.b16 %v673
        %v824 = vunpack.c.h.b16 %v673
        %v825 = vunpack.c.l.b16 %v674
        %v826 = vunpack.c.h.b16 %v674
        %v827 = vunpack.c.l.b16 %v675
        %v828 = vunpack.c.h.b16 %v675
        %v829 = vunpack.c.l.b16 %v676
        %v830 = vunpack.c.h.b16 %v676
        %v831 = vunpack.c.l.b16 %v677
        %v832 = vunpack.c.h.b16 %v677
        %v833 = vunpack.c.l.b16 %v678
        %v834 = vunpack.c.h.b16 %v678
        %v835 = vunpack.c.l.b16 %v679
        %v836 = vunpack.c.h.b16 %v679
        %v837 = vunpack.c.l.b16 %v680
        %v838 = vunpack.c.h.b16 %v680
        %v839 = vunpack.c.l.b16 %v681
        %v840 = vunpack.c.h.b16 %v681
        %v841 = vunpack.c.l.b16 %v682
        %v842 = vunpack.c.h.b16 %v682
        %v843 = vunpack.c.l.b16 %v683
        %v844 = vunpack.c.h.b16 %v683
        %v845 = vunpack.c.l.b16 %v684
        %v846 = vunpack.c.h.b16 %v684
        %v847 = vunpack.c.l.b16 %v685
        %v848 = vunpack.c.h.b16 %v685
        %v849 = vunpack.c.l.b16 %v686
        %v850 = vunpack.c.h.b16 %v686
        %v851 = vpack.c.b16 %v819, %v819
        %v852 = vpack.c.b16 %v820, %v820
        %v853 = vpack.c.b16 %v821, %v821
        %v854 = vpack.c.b16 %v822, %v822
        %v855 = vpack.c.b16 %v823, %v823
        %v856 = vpack.c.b16 %v824, %v824
        %v857 = vpack.c.b16 %v825, %v825
        %v858 = vpack.c.b16 %v826, %v826
        %v859 = vpack.c.b16 %v827, %v827
        %v860 = vpack.c.b16 %v828, %v828
        %v861 = vpack.c.b16 %v829, %v829
        %v862 = vpack.c.b16 %v830, %v830
        %v863 = vpack.c.b16 %v831, %v831
        %v864 = vpack.c.b16 %v832, %v832
        %v865 = vpack.c.b16 %v833, %v833
        %v866 = vpack.c.b16 %v834, %v834
        %v867 = vpack.c.b16 %v835, %v835
        %v868 = vpack.c.b16 %v836, %v836
        %v869 = vpack.c.b16 %v837, %v837
        %v870 = vpack.c.b16 %v838, %v838
        %v871 = vpack.c.b16 %v839, %v839
        %v872 = vpack.c.b16 %v840, %v840
        %v873 = vpack.c.b16 %v841, %v841
        %v874 = vpack.c.b16 %v842, %v842
        %v875 = vpack.c.b16 %v843, %v843
        %v876 = vpack.c.b16 %v844, %v844
        %v877 = vpack.c.b16 %v845, %v845
        %v878 = vpack.c.b16 %v846, %v846
        %v879 = vpack.c.b16 %v847, %v847
        %v880 = vpack.c.b16 %v848, %v848
        %v881 = vpack.c.b16 %v849, %v849
        %v882 = vpack.c.b16 %v850, %v850
        %vm883 = vsmask.f32 4368
        %vm884 = vmor %vm690, %vm883
        %v886 = vshrl.u32 %v851, 16
        %v888 = vrot.slane %v886, 7
        %v889 = vshll.u32 %v851, 16
        %v891 = vor.u32 %v888, %v889
        %v892 = vrot.slane %v888, 4
        %v894 = vshrl.u32 %v852, 16
        %v896 = vrot.slane %v894, 7
        %v897 = vshll.u32 %v852, 16
        %v899 = vor.u32 %v896, %v897
        %v900 = vsel %vm884, %v892, %v899
        %v901 = vrot.slane %v896, 4
        %v903 = vshrl.u32 %v853, 16
        %v905 = vrot.slane %v903, 7
        %v906 = vshll.u32 %v853, 16
        %v908 = vor.u32 %v905, %v906
        %v909 = vrot.slane %v905, 4
        %v911 = vshrl.u32 %v854, 16
        %v913 = vrot.slane %v911, 7
        %v914 = vshll.u32 %v854, 16
        %v916 = vor.u32 %v913, %v914
        %v917 = vsel %vm884, %v909, %v916
        %v918 = vrot.slane %v913, 4
        %v920 = vshrl.u32 %v855, 16
        %v922 = vrot.slane %v920, 7
        %v923 = vshll.u32 %v855, 16
        %v925 = vor.u32 %v922, %v923
        %v926 = vrot.slane %v922, 4
        %v928 = vshrl.u32 %v856, 16
        %v930 = vrot.slane %v928, 7
        %v931 = vshll.u32 %v856, 16
        %v933 = vor.u32 %v930, %v931
        %v934 = vsel %vm884, %v926, %v933
        %v935 = vrot.slane %v930, 4
        %v937 = vshrl.u32 %v857, 16
        %v939 = vrot.slane %v937, 7
        %v940 = vshll.u32 %v857, 16
        %v942 = vor.u32 %v939, %v940
        %v943 = vrot.slane %v939, 4
        %v945 = vshrl.u32 %v858, 16
        %v947 = vrot.slane %v945, 7
        %v948 = vshll.u32 %v858, 16
        %v950 = vor.u32 %v947, %v948
        %v951 = vsel %vm884, %v943, %v950
        %v952 = vrot.slane %v947, 4
        %v954 = vshrl.u32 %v859, 16
        %v956 = vrot.slane %v954, 7
        %v957 = vshll.u32 %v859, 16
        %v959 = vor.u32 %v956, %v957
        %v960 = vrot.slane %v956, 4
        %v962 = vshrl.u32 %v860, 16
        %v964 = vrot.slane %v962, 7
        %v965 = vshll.u32 %v860, 16
        %v967 = vor.u32 %v964, %v965
        %v968 = vsel %vm884, %v960, %v967
        %v969 = vrot.slane %v964, 4
        %v971 = vshrl.u32 %v861, 16
        %v973 = vrot.slane %v971, 7
        %v974 = vshll.u32 %v861, 16
        %v976 = vor.u32 %v973, %v974
        %v977 = vrot.slane %v973, 4
        %v979 = vshrl.u32 %v862, 16
        %v981 = vrot.slane %v979, 7
        %v982 = vshll.u32 %v862, 16
        %v984 = vor.u32 %v981, %v982
        %v985 = vsel %vm884, %v977, %v984
        %v986 = vrot.slane %v981, 4
        %v988 = vshrl.u32 %v863, 16
        %v990 = vrot.slane %v988, 7
        %v991 = vshll.u32 %v863, 16
        %v993 = vor.u32 %v990, %v991
        %v994 = vrot.slane %v990, 4
        %v996 = vshrl.u32 %v864, 16
        %v998 = vrot.slane %v996, 7
        %v999 = vshll.u32 %v864, 16
        %v1001 = vor.u32 %v998, %v999
        %v1002 = vsel %vm884, %v994, %v1001
        %v1003 = vrot.slane %v998, 4
        %v1005 = vshrl.u32 %v865, 16
        %v1007 = vrot.slane %v1005, 7
        %v1008 = vshll.u32 %v865, 16
        %v1010 = vor.u32 %v1007, %v1008
        %v1011 = vrot.slane %v1007, 4
        %v1013 = vshrl.u32 %v866, 16
        %v1015 = vrot.slane %v1013, 7
        %v1016 = vshll.u32 %v866, 16
        %v1018 = vor.u32 %v1015, %v1016
        %v1019 = vsel %vm884, %v1011, %v1018
        %v1020 = vrot.slane %v1015, 4
        %v1022 = vshrl.u32 %v867, 16
        %v1024 = vrot.slane %v1022, 7
        %v1025 = vshll.u32 %v867, 16
        %v1027 = vor.u32 %v1024, %v1025
        %v1028 = vrot.slane %v1024, 4
        %v1030 = vshrl.u32 %v868, 16
        %v1032 = vrot.slane %v1030, 7
        %v1033 = vshll.u32 %v868, 16
        %v1035 = vor.u32 %v1032, %v1033
        %v1036 = vsel %vm884, %v1028, %v1035
        %v1037 = vrot.slane %v1032, 4
        %v1039 = vshrl.u32 %v869, 16
        %v1041 = vrot.slane %v1039, 7
        %v1042 = vshll.u32 %v869, 16
        %v1044 = vor.u32 %v1041, %v1042
        %v1045 = vrot.slane %v1041, 4
        %v1047 = vshrl.u32 %v870, 16
        %v1049 = vrot.slane %v1047, 7
        %v1050 = vshll.u32 %v870, 16
        %v1052 = vor.u32 %v1049, %v1050
        %v1053 = vsel %vm884, %v1045, %v1052
        %v1054 = vrot.slane %v1049, 4
        %v1056 = vshrl.u32 %v871, 16
        %v1058 = vrot.slane %v1056, 7
        %v1059 = vshll.u32 %v871, 16
        %v1061 = vor.u32 %v1058, %v1059
        %v1062 = vrot.slane %v1058, 4
        %v1064 = vshrl.u32 %v872, 16
        %v1066 = vrot.slane %v1064, 7
        %v1067 = vshll.u32 %v872, 16
        %v1069 = vor.u32 %v1066, %v1067
        %v1070 = vsel %vm884, %v1062, %v1069
        %v1071 = vrot.slane %v1066, 4
        %v1073 = vshrl.u32 %v873, 16
        %v1075 = vrot.slane %v1073, 7
        %v1076 = vshll.u32 %v873, 16
        %v1078 = vor.u32 %v1075, %v1076
        %v1079 = vrot.slane %v1075, 4
        %v1081 = vshrl.u32 %v874, 16
        %v1083 = vrot.slane %v1081, 7
        %v1084 = vshll.u32 %v874, 16
        %v1086 = vor.u32 %v1083, %v1084
        %v1087 = vsel %vm884, %v1079, %v1086
        %v1088 = vrot.slane %v1083, 4
        %v1090 = vshrl.u32 %v875, 16
        %v1092 = vrot.slane %v1090, 7
        %v1093 = vshll.u32 %v875, 16
        %v1095 = vor.u32 %v1092, %v1093
        %v1096 = vrot.slane %v1092, 4
        %v1098 = vshrl.u32 %v876, 16
        %v1100 = vrot.slane %v1098, 7
        %v1101 = vshll.u32 %v876, 16
        %v1103 = vor.u32 %v1100, %v1101
        %v1104 = vsel %vm884, %v1096, %v1103
        %v1105 = vrot.slane %v1100, 4
        %v1107 = vshrl.u32 %v877, 16
        %v1109 = vrot.slane %v1107, 7
        %v1110 = vshll.u32 %v877, 16
        %v1112 = vor.u32 %v1109, %v1110
        %v1113 = vrot.slane %v1109, 4
        %v1115 = vshrl.u32 %v878, 16
        %v1117 = vrot.slane %v1115, 7
        %v1118 = vshll.u32 %v878, 16
        %v1120 = vor.u32 %v1117, %v1118
        %v1121 = vsel %vm884, %v1113, %v1120
        %v1122 = vrot.slane %v1117, 4
        %v1124 = vshrl.u32 %v879, 16
        %v1126 = vrot.slane %v1124, 7
        %v1127 = vshll.u32 %v879, 16
        %v1129 = vor.u32 %v1126, %v1127
        %v1130 = vrot.slane %v1126, 4
        %v1132 = vshrl.u32 %v880, 16
        %v1134 = vrot.slane %v1132, 7
        %v1135 = vshll.u32 %v880, 16
        %v1137 = vor.u32 %v1134, %v1135
        %v1138 = vsel %vm884, %v1130, %v1137
        %v1139 = vrot.slane %v1134, 4
        %v1141 = vshrl.u32 %v881, 16
        %v1143 = vrot.slane %v1141, 7
        %v1144 = vshll.u32 %v881, 16
        %v1146 = vor.u32 %v1143, %v1144
        %v1147 = vrot.slane %v1143, 4
        %v1149 = vshrl.u32 %v882, 16
        %v1151 = vrot.slane %v1149, 7
        %v1152 = vshll.u32 %v882, 16
        %v1154 = vor.u32 %v1151, %v1152
        %v1155 = vsel %vm884, %v1147, %v1154
        %v1156 = vrot.slane %v1151, 4
        %s1205 = scalar_lea.vmem [#allocation2], 12
        %vm1206 = vcmask 257024
        %vm1207 = vsmask.f32 7938
        %vm1208 = vmand %vm1206, %vm1207
        %v1209 = vld [vmem:[%s1205] sm:$0xf]
        %v1210 = vsel %vm1208, %v891, %v1209
        %1211 = vst [vmem:[%s1205] sm:$0xf] %v1210
        %vm1212 = vcmask 257024
        %1213 = vst.msk [vmem:[%s1205 + $0x4] sm:$0xf] %vm1212, %v900
        %vm1214 = vcmask 253952
        %vm1215 = vmand %vm1214, %vm690
        %v1216 = vld [vmem:[%s1205 + $0x8] sm:$0x1]
        %v1217 = vsel %vm1215, %v901, %v1216
        %1218 = vst [vmem:[%s1205 + $0x8] sm:$0x1] %v1217
        %v1219 = vld [vmem:[%s1205 + $0xc] sm:$0xf]
        %v1220 = vsel %vm1208, %v908, %v1219
        %1221 = vst [vmem:[%s1205 + $0xc] sm:$0xf] %v1220
        %1222 = vst.msk [vmem:[%s1205 + $0x10] sm:$0xf] %vm1212, %v917
        %v1223 = vld [vmem:[%s1205 + $0x14] sm:$0x1]
        %v1224 = vsel %vm1215, %v918, %v1223
        %1225 = vst [vmem:[%s1205 + $0x14] sm:$0x1] %v1224
        %v1226 = vld [vmem:[%s1205 + $0x18] sm:$0xf]
        %v1227 = vsel %vm1208, %v925, %v1226
        %1228 = vst [vmem:[%s1205 + $0x18] sm:$0xf] %v1227
        %1229 = vst.msk [vmem:[%s1205 + $0x1c] sm:$0xf] %vm1212, %v934
        %v1230 = vld [vmem:[%s1205 + $0x20] sm:$0x1]
        %v1231 = vsel %vm1215, %v935, %v1230
        %1232 = vst [vmem:[%s1205 + $0x20] sm:$0x1] %v1231
        %v1233 = vld [vmem:[%s1205 + $0x24] sm:$0xf]
        %v1234 = vsel %vm1208, %v942, %v1233
        %1235 = vst [vmem:[%s1205 + $0x24] sm:$0xf] %v1234
        %1236 = vst.msk [vmem:[%s1205 + $0x28] sm:$0xf] %vm1212, %v951
        %v1237 = vld [vmem:[%s1205 + $0x2c] sm:$0x1]
        %v1238 = vsel %vm1215, %v952, %v1237
        %1239 = vst [vmem:[%s1205 + $0x2c] sm:$0x1] %v1238
        %v1240 = vld [vmem:[%s1205 + $0x30] sm:$0xf]
        %v1241 = vsel %vm1208, %v959, %v1240
        %1242 = vst [vmem:[%s1205 + $0x30] sm:$0xf] %v1241
        %1243 = vst.msk [vmem:[%s1205 + $0x34] sm:$0xf] %vm1212, %v968
        %v1244 = vld [vmem:[%s1205 + $0x38] sm:$0x1]
        %v1245 = vsel %vm1215, %v969, %v1244
        %1246 = vst [vmem:[%s1205 + $0x38] sm:$0x1] %v1245
        %v1247 = vld [vmem:[%s1205 + $0x3c] sm:$0xf]
        %v1248 = vsel %vm1208, %v976, %v1247
        %1249 = vst [vmem:[%s1205 + $0x3c] sm:$0xf] %v1248
        %1250 = vst.msk [vmem:[%s1205 + $0x40] sm:$0xf] %vm1212, %v985
        %v1251 = vld [vmem:[%s1205 + $0x44] sm:$0x1]
        %v1252 = vsel %vm1215, %v986, %v1251
        %1253 = vst [vmem:[%s1205 + $0x44] sm:$0x1] %v1252
        %v1254 = vld [vmem:[%s1205 + $0x48] sm:$0xf]
        %v1255 = vsel %vm1208, %v993, %v1254
        %1256 = vst [vmem:[%s1205 + $0x48] sm:$0xf] %v1255
        %1257 = vst.msk [vmem:[%s1205 + $0x4c] sm:$0xf] %vm1212, %v1002
        %v1258 = vld [vmem:[%s1205 + $0x50] sm:$0x1]
        %v1259 = vsel %vm1215, %v1003, %v1258
        %1260 = vst [vmem:[%s1205 + $0x50] sm:$0x1] %v1259
        %v1261 = vld [vmem:[%s1205 + $0x54] sm:$0xf]
        %v1262 = vsel %vm1208, %v1010, %v1261
        %1263 = vst [vmem:[%s1205 + $0x54] sm:$0xf] %v1262
        %1264 = vst.msk [vmem:[%s1205 + $0x58] sm:$0xf] %vm1212, %v1019
        %v1265 = vld [vmem:[%s1205 + $0x5c] sm:$0x1]
        %v1266 = vsel %vm1215, %v1020, %v1265
        %1267 = vst [vmem:[%s1205 + $0x5c] sm:$0x1] %v1266
        %v1268 = vld [vmem:[%s1205 + $0x60] sm:$0xf]
        %v1269 = vsel %vm1208, %v1027, %v1268
        %1270 = vst [vmem:[%s1205 + $0x60] sm:$0xf] %v1269
        %1271 = vst.msk [vmem:[%s1205 + $0x64] sm:$0xf] %vm1212, %v1036
        %v1272 = vld [vmem:[%s1205 + $0x68] sm:$0x1]
        %v1273 = vsel %vm1215, %v1037, %v1272
        %1274 = vst [vmem:[%s1205 + $0x68] sm:$0x1] %v1273
        %v1275 = vld [vmem:[%s1205 + $0x6c] sm:$0xf]
        %v1276 = vsel %vm1208, %v1044, %v1275
        %1277 = vst [vmem:[%s1205 + $0x6c] sm:$0xf] %v1276
        %1278 = vst.msk [vmem:[%s1205 + $0x70] sm:$0xf] %vm1212, %v1053
        %v1279 = vld [vmem:[%s1205 + $0x74] sm:$0x1]
        %v1280 = vsel %vm1215, %v1054, %v1279
        %1281 = vst [vmem:[%s1205 + $0x74] sm:$0x1] %v1280
        %v1282 = vld [vmem:[%s1205 + $0x78] sm:$0xf]
        %v1283 = vsel %vm1208, %v1061, %v1282
        %1284 = vst [vmem:[%s1205 + $0x78] sm:$0xf] %v1283
        %1285 = vst.msk [vmem:[%s1205 + $0x7c] sm:$0xf] %vm1212, %v1070
        %v1286 = vld [vmem:[%s1205 + $0x80] sm:$0x1]
        %v1287 = vsel %vm1215, %v1071, %v1286
        %1288 = vst [vmem:[%s1205 + $0x80] sm:$0x1] %v1287
        %v1289 = vld [vmem:[%s1205 + $0x84] sm:$0xf]
        %v1290 = vsel %vm1208, %v1078, %v1289
        %1291 = vst [vmem:[%s1205 + $0x84] sm:$0xf] %v1290
        %1292 = vst.msk [vmem:[%s1205 + $0x88] sm:$0xf] %vm1212, %v1087
        %v1293 = vld [vmem:[%s1205 + $0x8c] sm:$0x1]
        %v1294 = vsel %vm1215, %v1088, %v1293
        %1295 = vst [vmem:[%s1205 + $0x8c] sm:$0x1] %v1294
        %v1296 = vld [vmem:[%s1205 + $0x90] sm:$0xf]
        %v1297 = vsel %vm1208, %v1095, %v1296
        %1298 = vst [vmem:[%s1205 + $0x90] sm:$0xf] %v1297
        %1299 = vst.msk [vmem:[%s1205 + $0x94] sm:$0xf] %vm1212, %v1104
        %v1300 = vld [vmem:[%s1205 + $0x98] sm:$0x1]
        %v1301 = vsel %vm1215, %v1105, %v1300
        %1302 = vst [vmem:[%s1205 + $0x98] sm:$0x1] %v1301
        %v1303 = vld [vmem:[%s1205 + $0x9c] sm:$0xf]
        %v1304 = vsel %vm1208, %v1112, %v1303
        %1305 = vst [vmem:[%s1205 + $0x9c] sm:$0xf] %v1304
        %1306 = vst.msk [vmem:[%s1205 + $0xa0] sm:$0xf] %vm1212, %v1121
        %v1307 = vld [vmem:[%s1205 + $0xa4] sm:$0x1]
        %v1308 = vsel %vm1215, %v1122, %v1307
        %1309 = vst [vmem:[%s1205 + $0xa4] sm:$0x1] %v1308
        %v1310 = vld [vmem:[%s1205 + $0xa8] sm:$0xf]
        %v1311 = vsel %vm1208, %v1129, %v1310
        %1312 = vst [vmem:[%s1205 + $0xa8] sm:$0xf] %v1311
        %1313 = vst.msk [vmem:[%s1205 + $0xac] sm:$0xf] %vm1212, %v1138
        %v1314 = vld [vmem:[%s1205 + $0xb0] sm:$0x1]
        %v1315 = vsel %vm1215, %v1139, %v1314
        %1316 = vst [vmem:[%s1205 + $0xb0] sm:$0x1] %v1315
        %v1317 = vld [vmem:[%s1205 + $0xb4] sm:$0xf]
        %v1318 = vsel %vm1208, %v1146, %v1317
        %1319 = vst [vmem:[%s1205 + $0xb4] sm:$0xf] %v1318
        %1320 = vst.msk [vmem:[%s1205 + $0xb8] sm:$0xf] %vm1212, %v1155
        %v1321 = vld [vmem:[%s1205 + $0xbc] sm:$0x1]
        %v1322 = vsel %vm1215, %v1156, %v1321
        %1323 = vst [vmem:[%s1205 + $0xbc] sm:$0x1] %v1322
        %1324 = vrot.lane.b32.xlu0 %v851, 32
        %v1325 = vpop.permute.xlu0 %1324
        %1326 = vrot.lane.b32.xlu0 %v852, 32
        %v1327 = vpop.permute.xlu0 %1326
        %1328 = vrot.lane.b32.xlu0 %v853, 32
        %v1329 = vpop.permute.xlu0 %1328
        %1330 = vrot.lane.b32.xlu0 %v854, 32
        %v1331 = vpop.permute.xlu0 %1330
        %1332 = vrot.lane.b32.xlu0 %v855, 32
        %v1333 = vpop.permute.xlu0 %1332
        %1334 = vrot.lane.b32.xlu0 %v856, 32
        %v1335 = vpop.permute.xlu0 %1334
        %1336 = vrot.lane.b32.xlu0 %v857, 32
        %v1337 = vpop.permute.xlu0 %1336
        %1338 = vrot.lane.b32.xlu0 %v858, 32
        %v1339 = vpop.permute.xlu0 %1338
        %1340 = vrot.lane.b32.xlu0 %v859, 32
        %v1341 = vpop.permute.xlu0 %1340
        %1342 = vrot.lane.b32.xlu0 %v860, 32
        %v1343 = vpop.permute.xlu0 %1342
        %1344 = vrot.lane.b32.xlu0 %v861, 32
        %v1345 = vpop.permute.xlu0 %1344
        %1346 = vrot.lane.b32.xlu0 %v862, 32
        %v1347 = vpop.permute.xlu0 %1346
        %1348 = vrot.lane.b32.xlu0 %v863, 32
        %v1349 = vpop.permute.xlu0 %1348
        %1350 = vrot.lane.b32.xlu0 %v864, 32
        %v1351 = vpop.permute.xlu0 %1350
        %1352 = vrot.lane.b32.xlu0 %v865, 32
        %v1353 = vpop.permute.xlu0 %1352
        %1354 = vrot.lane.b32.xlu0 %v866, 32
        %v1355 = vpop.permute.xlu0 %1354
        %1356 = vrot.lane.b32.xlu0 %v867, 32
        %v1357 = vpop.permute.xlu0 %1356
        %1358 = vrot.lane.b32.xlu0 %v868, 32
        %v1359 = vpop.permute.xlu0 %1358
        %1360 = vrot.lane.b32.xlu0 %v869, 32
        %v1361 = vpop.permute.xlu0 %1360
        %1362 = vrot.lane.b32.xlu0 %v870, 32
        %v1363 = vpop.permute.xlu0 %1362
        %1364 = vrot.lane.b32.xlu0 %v871, 32
        %v1365 = vpop.permute.xlu0 %1364
        %1366 = vrot.lane.b32.xlu0 %v872, 32
        %v1367 = vpop.permute.xlu0 %1366
        %1368 = vrot.lane.b32.xlu0 %v873, 32
        %v1369 = vpop.permute.xlu0 %1368
        %1370 = vrot.lane.b32.xlu0 %v874, 32
        %v1371 = vpop.permute.xlu0 %1370
        %1372 = vrot.lane.b32.xlu0 %v875, 32
        %v1373 = vpop.permute.xlu0 %1372
        %1374 = vrot.lane.b32.xlu0 %v876, 32
        %v1375 = vpop.permute.xlu0 %1374
        %1376 = vrot.lane.b32.xlu0 %v877, 32
        %v1377 = vpop.permute.xlu0 %1376
        %1378 = vrot.lane.b32.xlu0 %v878, 32
        %v1379 = vpop.permute.xlu0 %1378
        %1380 = vrot.lane.b32.xlu0 %v879, 32
        %v1381 = vpop.permute.xlu0 %1380
        %1382 = vrot.lane.b32.xlu0 %v880, 32
        %v1383 = vpop.permute.xlu0 %1382
        %1384 = vrot.lane.b32.xlu0 %v881, 32
        %v1385 = vpop.permute.xlu0 %1384
        %1386 = vrot.lane.b32.xlu0 %v882, 32
        %v1387 = vpop.permute.xlu0 %1386
        %vm1420 = vcmask 519424
        %1421 = vst.msk [vmem:[%s1205] sm:$0xf] %vm1420, %v1325
        %1422 = vst.msk [vmem:[%s1205 + $0x4] sm:$0xf] %vm1420, %v1327
        %1423 = vst.msk [vmem:[%s1205 + $0xc] sm:$0xf] %vm1420, %v1329
        %1424 = vst.msk [vmem:[%s1205 + $0x10] sm:$0xf] %vm1420, %v1331
        %1425 = vst.msk [vmem:[%s1205 + $0x18] sm:$0xf] %vm1420, %v1333
        %1426 = vst.msk [vmem:[%s1205 + $0x1c] sm:$0xf] %vm1420, %v1335
        %1427 = vst.msk [vmem:[%s1205 + $0x24] sm:$0xf] %vm1420, %v1337
        %1428 = vst.msk [vmem:[%s1205 + $0x28] sm:$0xf] %vm1420, %v1339
        %1429 = vst.msk [vmem:[%s1205 + $0x30] sm:$0xf] %vm1420, %v1341
        %1430 = vst.msk [vmem:[%s1205 + $0x34] sm:$0xf] %vm1420, %v1343
        %1431 = vst.msk [vmem:[%s1205 + $0x3c] sm:$0xf] %vm1420, %v1345
        %1432 = vst.msk [vmem:[%s1205 + $0x40] sm:$0xf] %vm1420, %v1347
        %1433 = vst.msk [vmem:[%s1205 + $0x48] sm:$0xf] %vm1420, %v1349
        %1434 = vst.msk [vmem:[%s1205 + $0x4c] sm:$0xf] %vm1420, %v1351
        %1435 = vst.msk [vmem:[%s1205 + $0x54] sm:$0xf] %vm1420, %v1353
        %1436 = vst.msk [vmem:[%s1205 + $0x58] sm:$0xf] %vm1420, %v1355
        %1437 = vst.msk [vmem:[%s1205 + $0x60] sm:$0xf] %vm1420, %v1357
        %1438 = vst.msk [vmem:[%s1205 + $0x64] sm:$0xf] %vm1420, %v1359
        %1439 = vst.msk [vmem:[%s1205 + $0x6c] sm:$0xf] %vm1420, %v1361
        %1440 = vst.msk [vmem:[%s1205 + $0x70] sm:$0xf] %vm1420, %v1363
        %1441 = vst.msk [vmem:[%s1205 + $0x78] sm:$0xf] %vm1420, %v1365
        %1442 = vst.msk [vmem:[%s1205 + $0x7c] sm:$0xf] %vm1420, %v1367
        %1443 = vst.msk [vmem:[%s1205 + $0x84] sm:$0xf] %vm1420, %v1369
        %1444 = vst.msk [vmem:[%s1205 + $0x88] sm:$0xf] %vm1420, %v1371
        %1445 = vst.msk [vmem:[%s1205 + $0x90] sm:$0xf] %vm1420, %v1373
        %1446 = vst.msk [vmem:[%s1205 + $0x94] sm:$0xf] %vm1420, %v1375
        %1447 = vst.msk [vmem:[%s1205 + $0x9c] sm:$0xf] %vm1420, %v1377
        %1448 = vst.msk [vmem:[%s1205 + $0xa0] sm:$0xf] %vm1420, %v1379
        %1449 = vst.msk [vmem:[%s1205 + $0xa8] sm:$0xf] %vm1420, %v1381
        %1450 = vst.msk [vmem:[%s1205 + $0xac] sm:$0xf] %vm1420, %v1383
        %1451 = vst.msk [vmem:[%s1205 + $0xb4] sm:$0xf] %vm1420, %v1385
        %1452 = vst.msk [vmem:[%s1205 + $0xb8] sm:$0xf] %vm1420, %v1387
        %1453 = vrot.lane.b32.xlu0 %v891, 64
        %v1454 = vpop.permute.xlu0 %1453
        %1455 = vrot.lane.b32.xlu0 %v900, 64
        %v1456 = vpop.permute.xlu0 %1455
        %1457 = vrot.lane.b32.xlu0 %v901, 64
        %v1458 = vpop.permute.xlu0 %1457
        %1459 = vrot.lane.b32.xlu0 %v908, 64
        %v1460 = vpop.permute.xlu0 %1459
        %1461 = vrot.lane.b32.xlu0 %v917, 64
        %v1462 = vpop.permute.xlu0 %1461
        %1463 = vrot.lane.b32.xlu0 %v918, 64
        %v1464 = vpop.permute.xlu0 %1463
        %1465 = vrot.lane.b32.xlu0 %v925, 64
        %v1466 = vpop.permute.xlu0 %1465
        %1467 = vrot.lane.b32.xlu0 %v934, 64
        %v1468 = vpop.permute.xlu0 %1467
        %1469 = vrot.lane.b32.xlu0 %v935, 64
        %v1470 = vpop.permute.xlu0 %1469
        %1471 = vrot.lane.b32.xlu0 %v942, 64
        %v1472 = vpop.permute.xlu0 %1471
        %1473 = vrot.lane.b32.xlu0 %v951, 64
        %v1474 = vpop.permute.xlu0 %1473
        %1475 = vrot.lane.b32.xlu0 %v952, 64
        %v1476 = vpop.permute.xlu0 %1475
        %1477 = vrot.lane.b32.xlu0 %v959, 64
        %v1478 = vpop.permute.xlu0 %1477
        %1479 = vrot.lane.b32.xlu0 %v968, 64
        %v1480 = vpop.permute.xlu0 %1479
        %1481 = vrot.lane.b32.xlu0 %v969, 64
        %v1482 = vpop.permute.xlu0 %1481
        %1483 = vrot.lane.b32.xlu0 %v976, 64
        %v1484 = vpop.permute.xlu0 %1483
        %1485 = vrot.lane.b32.xlu0 %v985, 64
        %v1486 = vpop.permute.xlu0 %1485
        %1487 = vrot.lane.b32.xlu0 %v986, 64
        %v1488 = vpop.permute.xlu0 %1487
        %1489 = vrot.lane.b32.xlu0 %v993, 64
        %v1490 = vpop.permute.xlu0 %1489
        %1491 = vrot.lane.b32.xlu0 %v1002, 64
        %v1492 = vpop.permute.xlu0 %1491
        %1493 = vrot.lane.b32.xlu0 %v1003, 64
        %v1494 = vpop.permute.xlu0 %1493
        %1495 = vrot.lane.b32.xlu0 %v1010, 64
        %v1496 = vpop.permute.xlu0 %1495
        %1497 = vrot.lane.b32.xlu0 %v1019, 64
        %v1498 = vpop.permute.xlu0 %1497
        %1499 = vrot.lane.b32.xlu0 %v1020, 64
        %v1500 = vpop.permute.xlu0 %1499
        %1501 = vrot.lane.b32.xlu0 %v1027, 64
        %v1502 = vpop.permute.xlu0 %1501
        %1503 = vrot.lane.b32.xlu0 %v1036, 64
        %v1504 = vpop.permute.xlu0 %1503
        %1505 = vrot.lane.b32.xlu0 %v1037, 64
        %v1506 = vpop.permute.xlu0 %1505
        %1507 = vrot.lane.b32.xlu0 %v1044, 64
        %v1508 = vpop.permute.xlu0 %1507
        %1509 = vrot.lane.b32.xlu0 %v1053, 64
        %v1510 = vpop.permute.xlu0 %1509
        %1511 = vrot.lane.b32.xlu0 %v1054, 64
        %v1512 = vpop.permute.xlu0 %1511
        %1513 = vrot.lane.b32.xlu0 %v1061, 64
        %v1514 = vpop.permute.xlu0 %1513
        %1515 = vrot.lane.b32.xlu0 %v1070, 64
        %v1516 = vpop.permute.xlu0 %1515
        %1517 = vrot.lane.b32.xlu0 %v1071, 64
        %v1518 = vpop.permute.xlu0 %1517
        %1519 = vrot.lane.b32.xlu0 %v1078, 64
        %v1520 = vpop.permute.xlu0 %1519
        %1521 = vrot.lane.b32.xlu0 %v1087, 64
        %v1522 = vpop.permute.xlu0 %1521
        %1523 = vrot.lane.b32.xlu0 %v1088, 64
        %v1524 = vpop.permute.xlu0 %1523
        %1525 = vrot.lane.b32.xlu0 %v1095, 64
        %v1526 = vpop.permute.xlu0 %1525
        %1527 = vrot.lane.b32.xlu0 %v1104, 64
        %v1528 = vpop.permute.xlu0 %1527
        %1529 = vrot.lane.b32.xlu0 %v1105, 64
        %v1530 = vpop.permute.xlu0 %1529
        %1531 = vrot.lane.b32.xlu0 %v1112, 64
        %v1532 = vpop.permute.xlu0 %1531
        %1533 = vrot.lane.b32.xlu0 %v1121, 64
        %v1534 = vpop.permute.xlu0 %1533
        %1535 = vrot.lane.b32.xlu0 %v1122, 64
        %v1536 = vpop.permute.xlu0 %1535
        %1537 = vrot.lane.b32.xlu0 %v1129, 64
        %v1538 = vpop.permute.xlu0 %1537
        %1539 = vrot.lane.b32.xlu0 %v1138, 64
        %v1540 = vpop.permute.xlu0 %1539
        %1541 = vrot.lane.b32.xlu0 %v1139, 64
        %v1542 = vpop.permute.xlu0 %1541
        %1543 = vrot.lane.b32.xlu0 %v1146, 64
        %v1544 = vpop.permute.xlu0 %1543
        %1545 = vrot.lane.b32.xlu0 %v1155, 64
        %v1546 = vpop.permute.xlu0 %1545
        %1547 = vrot.lane.b32.xlu0 %v1156, 64
        %v1548 = vpop.permute.xlu0 %1547
        %vm1597 = vcmask 781824
        %vm1598 = vmand %vm1597, %vm1207
        %v1599 = vld [vmem:[#allocation2] sm:$0xf]
        %v1600 = vsel %vm1598, %v1454, %v1599
        %1601 = vst [vmem:[#allocation2] sm:$0xf] %v1600
        %vm1602 = vcmask 781824
        %1603 = vst.msk [vmem:[#allocation2 + $0x4] sm:$0xf] %vm1602, %v1456
        %vm1604 = vcmask 778752
        %vm1605 = vmand %vm1604, %vm690
        %v1606 = vld [vmem:[#allocation2 + $0x8] sm:$0x1]
        %v1607 = vsel %vm1605, %v1458, %v1606
        %1608 = vst [vmem:[#allocation2 + $0x8] sm:$0x1] %v1607
        %v1609 = vld [vmem:[#allocation2 + $0xc] sm:$0xf]
        %v1610 = vsel %vm1598, %v1460, %v1609
        %1611 = vst [vmem:[#allocation2 + $0xc] sm:$0xf] %v1610
        %1612 = vst.msk [vmem:[#allocation2 + $0x10] sm:$0xf] %vm1602, %v1462
        %v1613 = vld [vmem:[#allocation2 + $0x14] sm:$0x1]
        %v1614 = vsel %vm1605, %v1464, %v1613
        %1615 = vst [vmem:[#allocation2 + $0x14] sm:$0x1] %v1614
        %v1616 = vld [vmem:[#allocation2 + $0x18] sm:$0xf]
        %v1617 = vsel %vm1598, %v1466, %v1616
        %1618 = vst [vmem:[#allocation2 + $0x18] sm:$0xf] %v1617
        %1619 = vst.msk [vmem:[#allocation2 + $0x1c] sm:$0xf] %vm1602, %v1468
        %v1620 = vld [vmem:[#allocation2 + $0x20] sm:$0x1]
        %v1621 = vsel %vm1605, %v1470, %v1620
        %1622 = vst [vmem:[#allocation2 + $0x20] sm:$0x1] %v1621
        %v1623 = vld [vmem:[#allocation2 + $0x24] sm:$0xf]
        %v1624 = vsel %vm1598, %v1472, %v1623
        %1625 = vst [vmem:[#allocation2 + $0x24] sm:$0xf] %v1624
        %1626 = vst.msk [vmem:[#allocation2 + $0x28] sm:$0xf] %vm1602, %v1474
        %v1627 = vld [vmem:[#allocation2 + $0x2c] sm:$0x1]
        %v1628 = vsel %vm1605, %v1476, %v1627
        %1629 = vst [vmem:[#allocation2 + $0x2c] sm:$0x1] %v1628
        %v1630 = vld [vmem:[#allocation2 + $0x30] sm:$0xf]
        %v1631 = vsel %vm1598, %v1478, %v1630
        %1632 = vst [vmem:[#allocation2 + $0x30] sm:$0xf] %v1631
        %1633 = vst.msk [vmem:[#allocation2 + $0x34] sm:$0xf] %vm1602, %v1480
        %v1634 = vld [vmem:[#allocation2 + $0x38] sm:$0x1]
        %v1635 = vsel %vm1605, %v1482, %v1634
        %1636 = vst [vmem:[#allocation2 + $0x38] sm:$0x1] %v1635
        %v1637 = vld [vmem:[#allocation2 + $0x3c] sm:$0xf]
        %v1638 = vsel %vm1598, %v1484, %v1637
        %1639 = vst [vmem:[#allocation2 + $0x3c] sm:$0xf] %v1638
        %1640 = vst.msk [vmem:[#allocation2 + $0x40] sm:$0xf] %vm1602, %v1486
        %v1641 = vld [vmem:[#allocation2 + $0x44] sm:$0x1]
        %v1642 = vsel %vm1605, %v1488, %v1641
        %1643 = vst [vmem:[#allocation2 + $0x44] sm:$0x1] %v1642
        %v1644 = vld [vmem:[#allocation2 + $0x48] sm:$0xf]
        %v1645 = vsel %vm1598, %v1490, %v1644
        %1646 = vst [vmem:[#allocation2 + $0x48] sm:$0xf] %v1645
        %1647 = vst.msk [vmem:[#allocation2 + $0x4c] sm:$0xf] %vm1602, %v1492
        %v1648 = vld [vmem:[#allocation2 + $0x50] sm:$0x1]
        %v1649 = vsel %vm1605, %v1494, %v1648
        %1650 = vst [vmem:[#allocation2 + $0x50] sm:$0x1] %v1649
        %v1651 = vld [vmem:[#allocation2 + $0x54] sm:$0xf]
        %v1652 = vsel %vm1598, %v1496, %v1651
        %1653 = vst [vmem:[#allocation2 + $0x54] sm:$0xf] %v1652
        %1654 = vst.msk [vmem:[#allocation2 + $0x58] sm:$0xf] %vm1602, %v1498
        %v1655 = vld [vmem:[#allocation2 + $0x5c] sm:$0x1]
        %v1656 = vsel %vm1605, %v1500, %v1655
        %1657 = vst [vmem:[#allocation2 + $0x5c] sm:$0x1] %v1656
        %v1658 = vld [vmem:[#allocation2 + $0x60] sm:$0xf]
        %v1659 = vsel %vm1598, %v1502, %v1658
        %1660 = vst [vmem:[#allocation2 + $0x60] sm:$0xf] %v1659
        %1661 = vst.msk [vmem:[#allocation2 + $0x64] sm:$0xf] %vm1602, %v1504
        %v1662 = vld [vmem:[#allocation2 + $0x68] sm:$0x1]
        %v1663 = vsel %vm1605, %v1506, %v1662
        %1664 = vst [vmem:[#allocation2 + $0x68] sm:$0x1] %v1663
        %v1665 = vld [vmem:[#allocation2 + $0x6c] sm:$0xf]
        %v1666 = vsel %vm1598, %v1508, %v1665
        %1667 = vst [vmem:[#allocation2 + $0x6c] sm:$0xf] %v1666
        %1668 = vst.msk [vmem:[#allocation2 + $0x70] sm:$0xf] %vm1602, %v1510
        %v1669 = vld [vmem:[#allocation2 + $0x74] sm:$0x1]
        %v1670 = vsel %vm1605, %v1512, %v1669
        %1671 = vst [vmem:[#allocation2 + $0x74] sm:$0x1] %v1670
        %v1672 = vld [vmem:[#allocation2 + $0x78] sm:$0xf]
        %v1673 = vsel %vm1598, %v1514, %v1672
        %1674 = vst [vmem:[#allocation2 + $0x78] sm:$0xf] %v1673
        %1675 = vst.msk [vmem:[#allocation2 + $0x7c] sm:$0xf] %vm1602, %v1516
        %v1676 = vld [vmem:[#allocation2 + $0x80] sm:$0x1]
        %v1677 = vsel %vm1605, %v1518, %v1676
        %1678 = vst [vmem:[#allocation2 + $0x80] sm:$0x1] %v1677
        %v1679 = vld [vmem:[#allocation2 + $0x84] sm:$0xf]
        %v1680 = vsel %vm1598, %v1520, %v1679
        %1681 = vst [vmem:[#allocation2 + $0x84] sm:$0xf] %v1680
        %1682 = vst.msk [vmem:[#allocation2 + $0x88] sm:$0xf] %vm1602, %v1522
        %v1683 = vld [vmem:[#allocation2 + $0x8c] sm:$0x1]
        %v1684 = vsel %vm1605, %v1524, %v1683
        %1685 = vst [vmem:[#allocation2 + $0x8c] sm:$0x1] %v1684
        %v1686 = vld [vmem:[#allocation2 + $0x90] sm:$0xf]
        %v1687 = vsel %vm1598, %v1526, %v1686
        %1688 = vst [vmem:[#allocation2 + $0x90] sm:$0xf] %v1687
        %1689 = vst.msk [vmem:[#allocation2 + $0x94] sm:$0xf] %vm1602, %v1528
        %v1690 = vld [vmem:[#allocation2 + $0x98] sm:$0x1]
        %v1691 = vsel %vm1605, %v1530, %v1690
        %1692 = vst [vmem:[#allocation2 + $0x98] sm:$0x1] %v1691
        %v1693 = vld [vmem:[#allocation2 + $0x9c] sm:$0xf]
        %v1694 = vsel %vm1598, %v1532, %v1693
        %1695 = vst [vmem:[#allocation2 + $0x9c] sm:$0xf] %v1694
        %1696 = vst.msk [vmem:[#allocation2 + $0xa0] sm:$0xf] %vm1602, %v1534
        %v1697 = vld [vmem:[#allocation2 + $0xa4] sm:$0x1]
        %v1698 = vsel %vm1605, %v1536, %v1697
        %1699 = vst [vmem:[#allocation2 + $0xa4] sm:$0x1] %v1698
        %v1700 = vld [vmem:[#allocation2 + $0xa8] sm:$0xf]
        %v1701 = vsel %vm1598, %v1538, %v1700
        %1702 = vst [vmem:[#allocation2 + $0xa8] sm:$0xf] %v1701
        %1703 = vst.msk [vmem:[#allocation2 + $0xac] sm:$0xf] %vm1602, %v1540
        %v1704 = vld [vmem:[#allocation2 + $0xb0] sm:$0x1]
        %v1705 = vsel %vm1605, %v1542, %v1704
        %1706 = vst [vmem:[#allocation2 + $0xb0] sm:$0x1] %v1705
        %v1707 = vld [vmem:[#allocation2 + $0xb4] sm:$0xf]
        %v1708 = vsel %vm1598, %v1544, %v1707
        %1709 = vst [vmem:[#allocation2 + $0xb4] sm:$0xf] %v1708
        %1710 = vst.msk [vmem:[#allocation2 + $0xb8] sm:$0xf] %vm1602, %v1546
        %v1711 = vld [vmem:[#allocation2 + $0xbc] sm:$0x1]
        %v1712 = vsel %vm1605, %v1548, %v1711
        %1713 = vst [vmem:[#allocation2 + $0xbc] sm:$0x1] %v1712
        %1714 = vrot.lane.b32.xlu0 %v851, 96
        %v1715 = vpop.permute.xlu0 %1714
        %1716 = vrot.lane.b32.xlu0 %v852, 96
        %v1717 = vpop.permute.xlu0 %1716
        %1718 = vrot.lane.b32.xlu0 %v853, 96
        %v1719 = vpop.permute.xlu0 %1718
        %1720 = vrot.lane.b32.xlu0 %v854, 96
        %v1721 = vpop.permute.xlu0 %1720
        %1722 = vrot.lane.b32.xlu0 %v855, 96
        %v1723 = vpop.permute.xlu0 %1722
        %1724 = vrot.lane.b32.xlu0 %v856, 96
        %v1725 = vpop.permute.xlu0 %1724
        %1726 = vrot.lane.b32.xlu0 %v857, 96
        %v1727 = vpop.permute.xlu0 %1726
        %1728 = vrot.lane.b32.xlu0 %v858, 96
        %v1729 = vpop.permute.xlu0 %1728
        %1730 = vrot.lane.b32.xlu0 %v859, 96
        %v1731 = vpop.permute.xlu0 %1730
        %1732 = vrot.lane.b32.xlu0 %v860, 96
        %v1733 = vpop.permute.xlu0 %1732
        %1734 = vrot.lane.b32.xlu0 %v861, 96
        %v1735 = vpop.permute.xlu0 %1734
        %1736 = vrot.lane.b32.xlu0 %v862, 96
        %v1737 = vpop.permute.xlu0 %1736
        %1738 = vrot.lane.b32.xlu0 %v863, 96
        %v1739 = vpop.permute.xlu0 %1738
        %1740 = vrot.lane.b32.xlu0 %v864, 96
        %v1741 = vpop.permute.xlu0 %1740
        %1742 = vrot.lane.b32.xlu0 %v865, 96
        %v1743 = vpop.permute.xlu0 %1742
        %1744 = vrot.lane.b32.xlu0 %v866, 96
        %v1745 = vpop.permute.xlu0 %1744
        %1746 = vrot.lane.b32.xlu0 %v867, 96
        %v1747 = vpop.permute.xlu0 %1746
        %1748 = vrot.lane.b32.xlu0 %v868, 96
        %v1749 = vpop.permute.xlu0 %1748
        %1750 = vrot.lane.b32.xlu0 %v869, 96
        %v1751 = vpop.permute.xlu0 %1750
        %1752 = vrot.lane.b32.xlu0 %v870, 96
        %v1753 = vpop.permute.xlu0 %1752
        %1754 = vrot.lane.b32.xlu0 %v871, 96
        %v1755 = vpop.permute.xlu0 %1754
        %1756 = vrot.lane.b32.xlu0 %v872, 96
        %v1757 = vpop.permute.xlu0 %1756
        %1758 = vrot.lane.b32.xlu0 %v873, 96
        %v1759 = vpop.permute.xlu0 %1758
        %1760 = vrot.lane.b32.xlu0 %v874, 96
        %v1761 = vpop.permute.xlu0 %1760
        %1762 = vrot.lane.b32.xlu0 %v875, 96
        %v1763 = vpop.permute.xlu0 %1762
        %1764 = vrot.lane.b32.xlu0 %v876, 96
        %v1765 = vpop.permute.xlu0 %1764
        %1766 = vrot.lane.b32.xlu0 %v877, 96
        %v1767 = vpop.permute.xlu0 %1766
        %1768 = vrot.lane.b32.xlu0 %v878, 96
        %v1769 = vpop.permute.xlu0 %1768
        %1770 = vrot.lane.b32.xlu0 %v879, 96
        %v1771 = vpop.permute.xlu0 %1770
        %1772 = vrot.lane.b32.xlu0 %v880, 96
        %v1773 = vpop.permute.xlu0 %1772
        %1774 = vrot.lane.b32.xlu0 %v881, 96
        %v1775 = vpop.permute.xlu0 %1774
        %1776 = vrot.lane.b32.xlu0 %v882, 96
        %v1777 = vpop.permute.xlu0 %1776
        %vm1810 = vcmask 1044224
        %1811 = vst.msk [vmem:[#allocation2] sm:$0xf] %vm1810, %v1715
        %1812 = vst.msk [vmem:[#allocation2 + $0x4] sm:$0xf] %vm1810, %v1717
        %1813 = vst.msk [vmem:[#allocation2 + $0xc] sm:$0xf] %vm1810, %v1719
        %1814 = vst.msk [vmem:[#allocation2 + $0x10] sm:$0xf] %vm1810, %v1721
        %1815 = vst.msk [vmem:[#allocation2 + $0x18] sm:$0xf] %vm1810, %v1723
        %1816 = vst.msk [vmem:[#allocation2 + $0x1c] sm:$0xf] %vm1810, %v1725
        %1817 = vst.msk [vmem:[#allocation2 + $0x24] sm:$0xf] %vm1810, %v1727
        %1818 = vst.msk [vmem:[#allocation2 + $0x28] sm:$0xf] %vm1810, %v1729
        %1819 = vst.msk [vmem:[#allocation2 + $0x30] sm:$0xf] %vm1810, %v1731
        %1820 = vst.msk [vmem:[#allocation2 + $0x34] sm:$0xf] %vm1810, %v1733
        %1821 = vst.msk [vmem:[#allocation2 + $0x3c] sm:$0xf] %vm1810, %v1735
        %1822 = vst.msk [vmem:[#allocation2 + $0x40] sm:$0xf] %vm1810, %v1737
        %1823 = vst.msk [vmem:[#allocation2 + $0x48] sm:$0xf] %vm1810, %v1739
        %1824 = vst.msk [vmem:[#allocation2 + $0x4c] sm:$0xf] %vm1810, %v1741
        %1825 = vst.msk [vmem:[#allocation2 + $0x54] sm:$0xf] %vm1810, %v1743
        %1826 = vst.msk [vmem:[#allocation2 + $0x58] sm:$0xf] %vm1810, %v1745
        %1827 = vst.msk [vmem:[#allocation2 + $0x60] sm:$0xf] %vm1810, %v1747
        %1828 = vst.msk [vmem:[#allocation2 + $0x64] sm:$0xf] %vm1810, %v1749
        %1829 = vst.msk [vmem:[#allocation2 + $0x6c] sm:$0xf] %vm1810, %v1751
        %1830 = vst.msk [vmem:[#allocation2 + $0x70] sm:$0xf] %vm1810, %v1753
        %1831 = vst.msk [vmem:[#allocation2 + $0x78] sm:$0xf] %vm1810, %v1755
        %1832 = vst.msk [vmem:[#allocation2 + $0x7c] sm:$0xf] %vm1810, %v1757
        %1833 = vst.msk [vmem:[#allocation2 + $0x84] sm:$0xf] %vm1810, %v1759
        %1834 = vst.msk [vmem:[#allocation2 + $0x88] sm:$0xf] %vm1810, %v1761
        %1835 = vst.msk [vmem:[#allocation2 + $0x90] sm:$0xf] %vm1810, %v1763
        %1836 = vst.msk [vmem:[#allocation2 + $0x94] sm:$0xf] %vm1810, %v1765
        %1837 = vst.msk [vmem:[#allocation2 + $0x9c] sm:$0xf] %vm1810, %v1767
        %1838 = vst.msk [vmem:[#allocation2 + $0xa0] sm:$0xf] %vm1810, %v1769
        %1839 = vst.msk [vmem:[#allocation2 + $0xa8] sm:$0xf] %vm1810, %v1771
        %1840 = vst.msk [vmem:[#allocation2 + $0xac] sm:$0xf] %vm1810, %v1773
        %1841 = vst.msk [vmem:[#allocation2 + $0xb4] sm:$0xf] %vm1810, %v1775
        %1842 = vst.msk [vmem:[#allocation2 + $0xb8] sm:$0xf] %vm1810, %v1777
        %1843 = vrot.lane.b32.xlu0 %v389, 32
        %v1844 = vpop.permute.xlu0 %1843
        %1845 = vrot.lane.b32.xlu0 %v390, 32
        %v1846 = vpop.permute.xlu0 %1845
        %1847 = vrot.lane.b32.xlu0 %v391, 32
        %v1848 = vpop.permute.xlu0 %1847
        %1849 = vrot.lane.b32.xlu0 %v392, 32
        %v1850 = vpop.permute.xlu0 %1849
        %1851 = vrot.lane.b32.xlu0 %v393, 32
        %v1852 = vpop.permute.xlu0 %1851
        %1853 = vrot.lane.b32.xlu0 %v394, 32
        %v1854 = vpop.permute.xlu0 %1853
        %1855 = vrot.lane.b32.xlu0 %v395, 32
        %v1856 = vpop.permute.xlu0 %1855
        %1857 = vrot.lane.b32.xlu0 %v396, 32
        %v1858 = vpop.permute.xlu0 %1857
        %1859 = vrot.lane.b32.xlu0 %v397, 32
        %v1860 = vpop.permute.xlu0 %1859
        %1861 = vrot.lane.b32.xlu0 %v398, 32
        %v1862 = vpop.permute.xlu0 %1861
        %1863 = vrot.lane.b32.xlu0 %v399, 32
        %v1864 = vpop.permute.xlu0 %1863
        %1865 = vrot.lane.b32.xlu0 %v400, 32
        %v1866 = vpop.permute.xlu0 %1865
        %1867 = vrot.lane.b32.xlu0 %v401, 32
        %v1868 = vpop.permute.xlu0 %1867
        %1869 = vrot.lane.b32.xlu0 %v402, 32
        %v1870 = vpop.permute.xlu0 %1869
        %1871 = vrot.lane.b32.xlu0 %v403, 32
        %v1872 = vpop.permute.xlu0 %1871
        %1873 = vrot.lane.b32.xlu0 %v404, 32
        %v1874 = vpop.permute.xlu0 %1873
        %vm1891 = vcmask 785664
        %1892 = vst.msk [vmem:[#allocation3] sm:$0xff] %vm1891, %v1844
        %1893 = vst.msk [vmem:[#allocation3 + $0x8] sm:$0xff] %vm1891, %v1846
        %1894 = vst.msk [vmem:[#allocation3 + $0x10] sm:$0xff] %vm1891, %v1848
        %1895 = vst.msk [vmem:[#allocation3 + $0x18] sm:$0xff] %vm1891, %v1850
        %1896 = vst.msk [vmem:[#allocation3 + $0x20] sm:$0xff] %vm1891, %v1852
        %1897 = vst.msk [vmem:[#allocation3 + $0x28] sm:$0xff] %vm1891, %v1854
        %1898 = vst.msk [vmem:[#allocation3 + $0x30] sm:$0xff] %vm1891, %v1856
        %1899 = vst.msk [vmem:[#allocation3 + $0x38] sm:$0xff] %vm1891, %v1858
        %1900 = vst.msk [vmem:[#allocation3 + $0x40] sm:$0xff] %vm1891, %v1860
        %1901 = vst.msk [vmem:[#allocation3 + $0x48] sm:$0xff] %vm1891, %v1862
        %1902 = vst.msk [vmem:[#allocation3 + $0x50] sm:$0xff] %vm1891, %v1864
        %1903 = vst.msk [vmem:[#allocation3 + $0x58] sm:$0xff] %vm1891, %v1866
        %1904 = vst.msk [vmem:[#allocation3 + $0x60] sm:$0xff] %vm1891, %v1868
        %1905 = vst.msk [vmem:[#allocation3 + $0x68] sm:$0xff] %vm1891, %v1870
        %1906 = vst.msk [vmem:[#allocation3 + $0x70] sm:$0xff] %vm1891, %v1872
        %1907 = vst.msk [vmem:[#allocation3 + $0x78] sm:$0xff] %vm1891, %v1874
        %v1908 = vld [vmem:[%s5] sm:$0xf]
        %v1909 = vld [vmem:[%s5 + $0x4] sm:$0xf]
        %v1910 = vld [vmem:[%s5 + $0x8] sm:$0xf]
        %v1911 = vld [vmem:[%s5 + $0xc] sm:$0xf]
        %v1912 = vld [vmem:[%s5 + $0x10] sm:$0xf]
        %v1913 = vld [vmem:[%s5 + $0x14] sm:$0xf]
        %v1914 = vld [vmem:[%s5 + $0x18] sm:$0xf]
        %v1915 = vld [vmem:[%s5 + $0x1c] sm:$0xf]
        %v1916 = vld [vmem:[%s5 + $0x20] sm:$0xf]
        %v1917 = vld [vmem:[%s5 + $0x24] sm:$0xf]
        %v1918 = vld [vmem:[%s5 + $0x28] sm:$0xf]
        %v1919 = vld [vmem:[%s5 + $0x2c] sm:$0xf]
        %v1920 = vld [vmem:[%s4] sm:$0x1]
        %v1921 = vld [vmem:[%s6] sm:$0x1]
        %v1922 = vld [vmem:[#allocation2] sm:$0xf]
        %v1923 = vld [vmem:[#allocation2 + $0x4] sm:$0xf]
        %v1924 = vld [vmem:[#allocation2 + $0xc] sm:$0xf]
        %v1925 = vld [vmem:[#allocation2 + $0x10] sm:$0xf]
        %v1926 = vld [vmem:[#allocation2 + $0x18] sm:$0xf]
        %v1927 = vld [vmem:[#allocation2 + $0x1c] sm:$0xf]
        %v1928 = vld [vmem:[#allocation2 + $0x24] sm:$0xf]
        %v1929 = vld [vmem:[#allocation2 + $0x28] sm:$0xf]
        %v1930 = vld [vmem:[#allocation2 + $0x30] sm:$0xf]
        %v1931 = vld [vmem:[#allocation2 + $0x34] sm:$0xf]
        %v1932 = vld [vmem:[#allocation2 + $0x3c] sm:$0xf]
        %v1933 = vld [vmem:[#allocation2 + $0x40] sm:$0xf]
        %v1934 = vld [vmem:[#allocation2 + $0x48] sm:$0xf]
        %v1935 = vld [vmem:[#allocation2 + $0x4c] sm:$0xf]
        %v1936 = vld [vmem:[#allocation2 + $0x54] sm:$0xf]
        %v1937 = vld [vmem:[#allocation2 + $0x58] sm:$0xf]
        %v1938 = vld [vmem:[#allocation2 + $0x60] sm:$0xf]
        %v1939 = vld [vmem:[#allocation2 + $0x64] sm:$0xf]
        %v1940 = vld [vmem:[#allocation2 + $0x6c] sm:$0xf]
        %v1941 = vld [vmem:[#allocation2 + $0x70] sm:$0xf]
        %v1942 = vld [vmem:[#allocation2 + $0x78] sm:$0xf]
        %v1943 = vld [vmem:[#allocation2 + $0x7c] sm:$0xf]
        %v1944 = vld [vmem:[#allocation2 + $0x84] sm:$0xf]
        %v1945 = vld [vmem:[#allocation2 + $0x88] sm:$0xf]
        %v1946 = vld [vmem:[#allocation2 + $0x90] sm:$0xf]
        %v1947 = vld [vmem:[#allocation2 + $0x94] sm:$0xf]
        %v1948 = vld [vmem:[#allocation2 + $0x9c] sm:$0xf]
        %v1949 = vld [vmem:[#allocation2 + $0xa0] sm:$0xf]
        %v1950 = vld [vmem:[#allocation2 + $0xa8] sm:$0xf]
        %v1951 = vld [vmem:[#allocation2 + $0xac] sm:$0xf]
        %v1952 = vld [vmem:[#allocation2 + $0xb4] sm:$0xf]
        %v1953 = vld [vmem:[#allocation2 + $0xb8] sm:$0xf]
        %v1954 = vld [vmem:[%s3] sm:$0xf]
        %v1955 = vld [vmem:[%s3 + $0x4] sm:$0xf]
        %v1956 = vld [vmem:[%s3 + $0x8] sm:$0xf]
        %v1957 = vld [vmem:[%s3 + $0xc] sm:$0xf]
        %v1958 = vld [vmem:[%s3 + $0x10] sm:$0xf]
        %v1959 = vld [vmem:[%s3 + $0x14] sm:$0xf]
        %v1960 = vld [vmem:[%s3 + $0x18] sm:$0xf]
        %v1961 = vld [vmem:[%s3 + $0x1c] sm:$0xf]
        %v1962 = vld [vmem:[%s3 + $0x20] sm:$0xf]
        %v1963 = vld [vmem:[%s3 + $0x24] sm:$0xf]
        %v1964 = vld [vmem:[%s3 + $0x28] sm:$0xf]
        %v1965 = vld [vmem:[%s3 + $0x2c] sm:$0xf]
        %v1966 = vld [vmem:[%s3 + $0x30] sm:$0xf]
        %v1967 = vld [vmem:[%s3 + $0x34] sm:$0xf]
        %v1968 = vld [vmem:[%s3 + $0x38] sm:$0xf]
        %v1969 = vld [vmem:[%s3 + $0x3c] sm:$0xf]
        %v1971 = vlaneseq
        %v1972 = vshrl.u32 %v1971, 7
        %v1973 = vsub.s32 0, %v1972
        %v1974 = vrot.slane %v1920, %v1973
        %v2008 = vunpack.c.l.b16 %v1922
        %v2009 = vunpack.c.l.b16 %v1923
        %v2010 = vunpack.c.l.b16 %v1924
        %v2011 = vunpack.c.l.b16 %v1925
        %v2012 = vunpack.c.l.b16 %v1926
        %v2013 = vunpack.c.l.b16 %v1927
        %v2014 = vunpack.c.l.b16 %v1928
        %v2015 = vunpack.c.l.b16 %v1929
        %v2016 = vunpack.c.l.b16 %v1930
        %v2017 = vunpack.c.l.b16 %v1931
        %v2018 = vunpack.c.l.b16 %v1932
        %v2019 = vunpack.c.l.b16 %v1933
        %v2020 = vunpack.c.l.b16 %v1934
        %v2021 = vunpack.c.l.b16 %v1935
        %v2022 = vunpack.c.l.b16 %v1936
        %v2023 = vunpack.c.l.b16 %v1937
        %v2024 = vunpack.c.l.b16 %v1938
        %v2025 = vunpack.c.l.b16 %v1939
        %v2026 = vunpack.c.l.b16 %v1940
        %v2027 = vunpack.c.l.b16 %v1941
        %v2028 = vunpack.c.l.b16 %v1942
        %v2029 = vunpack.c.l.b16 %v1943
        %v2030 = vunpack.c.l.b16 %v1944
        %v2031 = vunpack.c.l.b16 %v1945
        %v2032 = vunpack.c.l.b16 %v1946
        %v2033 = vunpack.c.l.b16 %v1947
        %v2034 = vunpack.c.l.b16 %v1948
        %v2035 = vunpack.c.l.b16 %v1949
        %v2036 = vunpack.c.l.b16 %v1950
        %v2037 = vunpack.c.l.b16 %v1951
        %v2038 = vunpack.c.l.b16 %v1952
        %v2039 = vunpack.c.l.b16 %v1953
        %v2040 = vpack.c.b16 %v2009, %v2008
        %v2041 = vpack.c.b16 %v2011, %v2010
        %v2042 = vpack.c.b16 %v2013, %v2012
        %v2043 = vpack.c.b16 %v2015, %v2014
        %v2044 = vpack.c.b16 %v2017, %v2016
        %v2045 = vpack.c.b16 %v2019, %v2018
        %v2046 = vpack.c.b16 %v2021, %v2020
        %v2047 = vpack.c.b16 %v2023, %v2022
        %v2048 = vpack.c.b16 %v2025, %v2024
        %v2049 = vpack.c.b16 %v2027, %v2026
        %v2050 = vpack.c.b16 %v2029, %v2028
        %v2051 = vpack.c.b16 %v2031, %v2030
        %v2052 = vpack.c.b16 %v2033, %v2032
        %v2053 = vpack.c.b16 %v2035, %v2034
        %v2054 = vpack.c.b16 %v2037, %v2036
        %v2055 = vpack.c.b16 %v2039, %v2038
        %v2088 = vunpack.c.l.b16 %v1954
        %v2089 = vunpack.c.l.b16 %v1955
        %v2090 = vunpack.c.l.b16 %v1956
        %v2091 = vunpack.c.l.b16 %v1957
        %v2092 = vunpack.c.l.b16 %v1958
        %v2093 = vunpack.c.l.b16 %v1959
        %v2094 = vunpack.c.l.b16 %v1960
        %v2095 = vunpack.c.l.b16 %v1961
        %v2096 = vunpack.c.l.b16 %v1962
        %v2097 = vunpack.c.l.b16 %v1963
        %v2098 = vunpack.c.l.b16 %v1964
        %v2099 = vunpack.c.l.b16 %v1965
        %v2100 = vunpack.c.l.b16 %v1966
        %v2101 = vunpack.c.l.b16 %v1967
        %v2102 = vunpack.c.l.b16 %v1968
        %v2103 = vunpack.c.l.b16 %v1969
        %v2104 = vpack.c.b16 %v2089, %v2088
        %v2105 = vpack.c.b16 %v2091, %v2090
        %v2106 = vpack.c.b16 %v2093, %v2092
        %v2107 = vpack.c.b16 %v2095, %v2094
        %v2108 = vpack.c.b16 %v2097, %v2096
        %v2109 = vpack.c.b16 %v2099, %v2098
        %v2110 = vpack.c.b16 %v2101, %v2100
        %v2111 = vpack.c.b16 %v2103, %v2102
        %2120 = vmatprep.subr.bf16.mxu0 0
        %2121 = vmatpush1.bf16.msra.mxu0 %v2104
        %2122 = vmatprep.subr.bf16.mxu0 0
        %2123 = vmatpush1.bf16.msra.mxu0 %v2105
        %2124 = vmatprep.subr.bf16.mxu0 0
        %2125 = vmatpush1.bf16.msra.mxu0 %v2106
        %2126 = vmatprep.subr.bf16.mxu0 0
        %2127 = vmatpush1.bf16.msra.mxu0 %v2107
        %2128 = vmatprep.subr.bf16.mxu0 0
        %2129 = vmatpush1.bf16.msra.mxu0 %v2108
        %2130 = vmatprep.subr.bf16.mxu0 0
        %2131 = vmatpush1.bf16.msra.mxu0 %v2109
        %2132 = vmatprep.subr.bf16.mxu0 0
        %2133 = vmatpush1.bf16.msra.mxu0 %v2110
        %2134 = vmatprep.subr.bf16.mxu0 0
        %2135 = vmatpush1.bf16.msra.mxu0 %v2111
        %2136 = vmatprep.subr.bf16.mxu0 0
        %2137 = vmatpush1.bf16.msra.mxu0 0
        %2138 = vmatprep.subr.bf16.mxu0 0
        %2139 = vmatpush1.bf16.msra.mxu0 0
        %2140 = vmatprep.subr.bf16.mxu0 0
        %2141 = vmatpush1.bf16.msra.mxu0 0
        %2142 = vmatprep.subr.bf16.mxu0 0
        %2143 = vmatpush1.bf16.msra.mxu0 0
        %2144 = vmatprep.subr.bf16.mxu0 0
        %2145 = vmatpush1.bf16.msra.mxu0 0
        %2146 = vmatprep.subr.bf16.mxu0 0
        %2147 = vmatpush1.bf16.msra.mxu0 0
        %2148 = vmatprep.subr.bf16.mxu0 0
        %2149 = vmatpush1.bf16.msra.mxu0 0
        %2150 = vmatprep.subr.bf16.mxu0 0
        %2151 = vmatpush1.bf16.msra.mxu0 0
        %2152 = vmatprep.mubr.bf16.mxu0 0
        %2153 = vmatmul.mubr.bf16.gmra.mrb[0].mxu0 %v2040
        %v2154 = vpop.f32.mrb[0].mxu0
        %v2155 = vadd.f32 %v1974, %v2154
        %v2156 = vpop.f32.mrb[0].mxu0
        %v2157 = vpop.f32.mrb[0].mxu0
        %v2158 = vadd.f32 %v1974, %v2157
        %v2159 = vpop.f32.mrb[0].mxu0
        %2160 = vmatprep.mubr.bf16.mxu0 0
        %2161 = vmatmul.mubr.bf16.gmra.mrb[0].mxu0 %v2041
        %v2162 = vpop.f32.mrb[0].mxu0
        %v2163 = vadd.f32 %v1974, %v2162
        %v2164 = vpop.f32.mrb[0].mxu0
        %v2165 = vpop.f32.mrb[0].mxu0
        %v2166 = vadd.f32 %v1974, %v2165
        %v2167 = vpop.f32.mrb[0].mxu0
        %2168 = vmatprep.mubr.bf16.mxu0 0
        %2169 = vmatmul.mubr.bf16.gmra.mrb[0].mxu0 %v2042
        %v2170 = vpop.f32.mrb[0].mxu0
        %v2171 = vadd.f32 %v1974, %v2170
        %v2172 = vpop.f32.mrb[0].mxu0
        %v2173 = vpop.f32.mrb[0].mxu0
        %v2174 = vadd.f32 %v1974, %v2173
        %v2175 = vpop.f32.mrb[0].mxu0
        %2176 = vmatprep.mubr.bf16.mxu0 0
        %2177 = vmatmul.mubr.bf16.gmra.mrb[0].mxu0 %v2043
        %v2178 = vpop.f32.mrb[0].mxu0
        %v2179 = vadd.f32 %v1974, %v2178
        %v2180 = vpop.f32.mrb[0].mxu0
        %v2181 = vpop.f32.mrb[0].mxu0
        %v2182 = vadd.f32 %v1974, %v2181
        %v2183 = vpop.f32.mrb[0].mxu0
        %2184 = vmatprep.mubr.bf16.mxu0 0
        %2185 = vmatmul.mubr.bf16.gmra.mrb[0].mxu0 %v2044
        %v2186 = vpop.f32.mrb[0].mxu0
        %v2187 = vadd.f32 %v1974, %v2186
        %v2188 = vpop.f32.mrb[0].mxu0
        %v2189 = vpop.f32.mrb[0].mxu0
        %v2190 = vadd.f32 %v1974, %v2189
        %v2191 = vpop.f32.mrb[0].mxu0
        %2192 = vmatprep.mubr.bf16.mxu0 0
        %2193 = vmatmul.mubr.bf16.gmra.mrb[0].mxu0 %v2045
        %v2194 = vpop.f32.mrb[0].mxu0
        %v2195 = vadd.f32 %v1974, %v2194
        %v2196 = vpop.f32.mrb[0].mxu0
        %v2197 = vpop.f32.mrb[0].mxu0
        %v2198 = vadd.f32 %v1974, %v2197
        %v2199 = vpop.f32.mrb[0].mxu0
        %2200 = vmatprep.mubr.bf16.mxu0 0
        %2201 = vmatmul.mubr.bf16.gmra.mrb[0].mxu0 %v2046
        %v2202 = vpop.f32.mrb[0].mxu0
        %v2203 = vadd.f32 %v1974, %v2202
        %v2204 = vpop.f32.mrb[0].mxu0
        %v2205 = vpop.f32.mrb[0].mxu0
        %v2206 = vadd.f32 %v1974, %v2205
        %v2207 = vpop.f32.mrb[0].mxu0
        %2208 = vmatprep.mubr.bf16.mxu0 0
        %2209 = vmatmul.mubr.bf16.gmra.mrb[0].mxu0 %v2047
        %v2210 = vpop.f32.mrb[0].mxu0
        %v2211 = vadd.f32 %v1974, %v2210
        %v2212 = vpop.f32.mrb[0].mxu0
        %v2213 = vpop.f32.mrb[0].mxu0
        %v2214 = vadd.f32 %v1974, %v2213
        %v2215 = vpop.f32.mrb[0].mxu0
        %2216 = vmatprep.mubr.bf16.mxu0 0
        %2217 = vmatmul.mubr.bf16.gmra.mrb[0].mxu0 %v2048
        %v2218 = vpop.f32.mrb[0].mxu0
        %v2219 = vadd.f32 %v1974, %v2218
        %v2220 = vpop.f32.mrb[0].mxu0
        %v2221 = vpop.f32.mrb[0].mxu0
        %v2222 = vadd.f32 %v1974, %v2221
        %v2223 = vpop.f32.mrb[0].mxu0
        %2224 = vmatprep.mubr.bf16.mxu0 0
        %2225 = vmatmul.mubr.bf16.gmra.mrb[0].mxu0 %v2049
        %v2226 = vpop.f32.mrb[0].mxu0
        %v2227 = vadd.f32 %v1974, %v2226
        %v2228 = vpop.f32.mrb[0].mxu0
        %v2229 = vpop.f32.mrb[0].mxu0
        %v2230 = vadd.f32 %v1974, %v2229
        %v2231 = vpop.f32.mrb[0].mxu0
        %2232 = vmatprep.mubr.bf16.mxu0 0
        %2233 = vmatmul.mubr.bf16.gmra.mrb[0].mxu0 %v2050
        %v2234 = vpop.f32.mrb[0].mxu0
        %v2235 = vadd.f32 %v1974, %v2234
        %v2236 = vpop.f32.mrb[0].mxu0
        %v2237 = vpop.f32.mrb[0].mxu0
        %v2238 = vadd.f32 %v1974, %v2237
        %v2239 = vpop.f32.mrb[0].mxu0
        %2240 = vmatprep.mubr.bf16.mxu0 0
        %2241 = vmatmul.mubr.bf16.gmra.mrb[0].mxu0 %v2051
        %v2242 = vpop.f32.mrb[0].mxu0
        %v2243 = vadd.f32 %v1974, %v2242
        %v2244 = vpop.f32.mrb[0].mxu0
        %v2245 = vpop.f32.mrb[0].mxu0
        %v2246 = vadd.f32 %v1974, %v2245
        %v2247 = vpop.f32.mrb[0].mxu0
        %2248 = vmatprep.mubr.bf16.mxu0 0
        %2249 = vmatmul.mubr.bf16.gmra.mrb[0].mxu0 %v2052
        %v2250 = vpop.f32.mrb[0].mxu0
        %v2251 = vadd.f32 %v1974, %v2250
        %v2252 = vpop.f32.mrb[0].mxu0
        %v2253 = vpop.f32.mrb[0].mxu0
        %v2254 = vadd.f32 %v1974, %v2253
        %v2255 = vpop.f32.mrb[0].mxu0
        %2256 = vmatprep.mubr.bf16.mxu0 0
        %2257 = vmatmul.mubr.bf16.gmra.mrb[0].mxu0 %v2053
        %v2258 = vpop.f32.mrb[0].mxu0
        %v2259 = vadd.f32 %v1974, %v2258
        %v2260 = vpop.f32.mrb[0].mxu0
        %v2261 = vpop.f32.mrb[0].mxu0
        %v2262 = vadd.f32 %v1974, %v2261
        %v2263 = vpop.f32.mrb[0].mxu0
        %2264 = vmatprep.mubr.bf16.mxu0 0
        %2265 = vmatmul.mubr.bf16.gmra.mrb[0].mxu0 %v2054
        %v2266 = vpop.f32.mrb[0].mxu0
        %v2267 = vadd.f32 %v1974, %v2266
        %v2268 = vpop.f32.mrb[0].mxu0
        %v2269 = vpop.f32.mrb[0].mxu0
        %v2270 = vadd.f32 %v1974, %v2269
        %v2271 = vpop.f32.mrb[0].mxu0
        %2272 = vmatprep.mubr.bf16.mxu0 0
        %2273 = vmatmul.mubr.bf16.gmra.mrb[0].mxu0 %v2055
        %v2274 = vpop.f32.mrb[0].mxu0
        %v2275 = vadd.f32 %v1974, %v2274
        %v2276 = vpop.f32.mrb[0].mxu0
        %v2277 = vpop.f32.mrb[0].mxu0
        %v2278 = vadd.f32 %v1974, %v2277
        %v2279 = vpop.f32.mrb[0].mxu0
        %2280 = vdwg.mxu0
        %v2281 = vmax.f32 %v2155, 0.0
        %v2282 = vmax.f32 %v2158, 0.0
        %v2283 = vmax.f32 %v2163, 0.0
        %v2284 = vmax.f32 %v2166, 0.0
        %v2285 = vmax.f32 %v2171, 0.0
        %v2286 = vmax.f32 %v2174, 0.0
        %v2287 = vmax.f32 %v2179, 0.0
        %v2288 = vmax.f32 %v2182, 0.0
        %v2289 = vmax.f32 %v2187, 0.0
        %v2290 = vmax.f32 %v2190, 0.0
        %v2291 = vmax.f32 %v2195, 0.0
        %v2292 = vmax.f32 %v2198, 0.0
        %v2293 = vmax.f32 %v2203, 0.0
        %v2294 = vmax.f32 %v2206, 0.0
        %v2295 = vmax.f32 %v2211, 0.0
        %v2296 = vmax.f32 %v2214, 0.0
        %v2297 = vmax.f32 %v2219, 0.0
        %v2298 = vmax.f32 %v2222, 0.0
        %v2299 = vmax.f32 %v2227, 0.0
        %v2300 = vmax.f32 %v2230, 0.0
        %v2301 = vmax.f32 %v2235, 0.0
        %v2302 = vmax.f32 %v2238, 0.0
        %v2303 = vmax.f32 %v2243, 0.0
        %v2304 = vmax.f32 %v2246, 0.0
        %v2305 = vmax.f32 %v2251, 0.0
        %v2306 = vmax.f32 %v2254, 0.0
        %v2307 = vmax.f32 %v2259, 0.0
        %v2308 = vmax.f32 %v2262, 0.0
        %v2309 = vmax.f32 %v2267, 0.0
        %v2310 = vmax.f32 %v2270, 0.0
        %v2311 = vmax.f32 %v2275, 0.0
        %v2312 = vmax.f32 %v2278, 0.0
        %v2313 = vpack.c.bf16 %v2282, %v2281
        %v2314 = vpack.c.bf16 %v2284, %v2283
        %v2315 = vpack.c.bf16 %v2286, %v2285
        %v2316 = vpack.c.bf16 %v2288, %v2287
        %v2317 = vpack.c.bf16 %v2290, %v2289
        %v2318 = vpack.c.bf16 %v2292, %v2291
        %v2319 = vpack.c.bf16 %v2294, %v2293
        %v2320 = vpack.c.bf16 %v2296, %v2295
        %v2321 = vpack.c.bf16 %v2298, %v2297
        %v2322 = vpack.c.bf16 %v2300, %v2299
        %v2323 = vpack.c.bf16 %v2302, %v2301
        %v2324 = vpack.c.bf16 %v2304, %v2303
        %v2325 = vpack.c.bf16 %v2306, %v2305
        %v2326 = vpack.c.bf16 %v2308, %v2307
        %v2327 = vpack.c.bf16 %v2310, %v2309
        %v2328 = vpack.c.bf16 %v2312, %v2311
        %vm2329 = vcmask 261120
        %2330 = vst.msk [vmem:[#allocation3] sm:$0xff] %vm2329, %v2313
        %2331 = vst.msk [vmem:[#allocation3 + $0x8] sm:$0xff] %vm2329, %v2314
        %2332 = vst.msk [vmem:[#allocation3 + $0x10] sm:$0xff] %vm2329, %v2315
        %2333 = vst.msk [vmem:[#allocation3 + $0x18] sm:$0xff] %vm2329, %v2316
        %2334 = vst.msk [vmem:[#allocation3 + $0x20] sm:$0xff] %vm2329, %v2317
        %2335 = vst.msk [vmem:[#allocation3 + $0x28] sm:$0xff] %vm2329, %v2318
        %2336 = vst.msk [vmem:[#allocation3 + $0x30] sm:$0xff] %vm2329, %v2319
        %2337 = vst.msk [vmem:[#allocation3 + $0x38] sm:$0xff] %vm2329, %v2320
        %2338 = vst.msk [vmem:[#allocation3 + $0x40] sm:$0xff] %vm2329, %v2321
        %2339 = vst.msk [vmem:[#allocation3 + $0x48] sm:$0xff] %vm2329, %v2322
        %2340 = vst.msk [vmem:[#allocation3 + $0x50] sm:$0xff] %vm2329, %v2323
        %2341 = vst.msk [vmem:[#allocation3 + $0x58] sm:$0xff] %vm2329, %v2324
        %2342 = vst.msk [vmem:[#allocation3 + $0x60] sm:$0xff] %vm2329, %v2325
        %2343 = vst.msk [vmem:[#allocation3 + $0x68] sm:$0xff] %vm2329, %v2326
        %2344 = vst.msk [vmem:[#allocation3 + $0x70] sm:$0xff] %vm2329, %v2327
        %2345 = vst.msk [vmem:[#allocation3 + $0x78] sm:$0xff] %vm2329, %v2328
        %v2346 = vld [vmem:[#allocation3] sm:$0xff]
        %v2347 = vld [vmem:[#allocation3 + $0x8] sm:$0xff]
        %v2348 = vld [vmem:[#allocation3 + $0x10] sm:$0xff]
        %v2349 = vld [vmem:[#allocation3 + $0x18] sm:$0xff]
        %v2350 = vld [vmem:[#allocation3 + $0x20] sm:$0xff]
        %v2351 = vld [vmem:[#allocation3 + $0x28] sm:$0xff]
        %v2352 = vld [vmem:[#allocation3 + $0x30] sm:$0xff]
        %v2353 = vld [vmem:[#allocation3 + $0x38] sm:$0xff]
        %v2354 = vld [vmem:[#allocation3 + $0x40] sm:$0xff]
        %v2355 = vld [vmem:[#allocation3 + $0x48] sm:$0xff]
        %v2356 = vld [vmem:[#allocation3 + $0x50] sm:$0xff]
        %v2357 = vld [vmem:[#allocation3 + $0x58] sm:$0xff]
        %v2358 = vld [vmem:[#allocation3 + $0x60] sm:$0xff]
        %v2359 = vld [vmem:[#allocation3 + $0x68] sm:$0xff]
        %v2360 = vld [vmem:[#allocation3 + $0x70] sm:$0xff]
        %v2361 = vld [vmem:[#allocation3 + $0x78] sm:$0xff]
        %v2363 = vlaneseq
        %v2364 = vshrl.u32 %v2363, 7
        %v2365 = vsub.s32 0, %v2364
        %v2366 = vrot.slane %v1921, %v2365
        %v2380 = vunpack.c.l.b16 %v1908
        %v2381 = vunpack.c.l.b16 %v1909
        %v2382 = vunpack.c.l.b16 %v1910
        %v2383 = vunpack.c.l.b16 %v1911
        %v2384 = vunpack.c.l.b16 %v1912
        %v2385 = vunpack.c.l.b16 %v1913
        %v2386 = vunpack.c.l.b16 %v1914
        %v2387 = vunpack.c.l.b16 %v1915
        %v2388 = vunpack.c.l.b16 %v1916
        %v2389 = vunpack.c.l.b16 %v1917
        %v2390 = vunpack.c.l.b16 %v1918
        %v2391 = vunpack.c.l.b16 %v1919
        %v2392 = vpack.c.b16 %v2381, %v2380
        %v2393 = vpack.c.b16 %v2383, %v2382
        %v2394 = vpack.c.b16 %v2385, %v2384
        %v2395 = vpack.c.b16 %v2387, %v2386
        %v2396 = vpack.c.b16 %v2389, %v2388
        %v2397 = vpack.c.b16 %v2391, %v2390
        %vm2404 = vcmask 785408
        %v2406 = vsel %vm2404, %v2346, 0
        %v2409 = vsel %vm2404, %v2347, 0
        %v2412 = vsel %vm2404, %v2348, 0
        %v2415 = vsel %vm2404, %v2349, 0
        %v2418 = vsel %vm2404, %v2350, 0
        %v2421 = vsel %vm2404, %v2351, 0
        %v2424 = vsel %vm2404, %v2352, 0
        %v2427 = vsel %vm2404, %v2353, 0
        %v2430 = vsel %vm2404, %v2354, 0
        %v2433 = vsel %vm2404, %v2355, 0
        %v2436 = vsel %vm2404, %v2356, 0
        %v2439 = vsel %vm2404, %v2357, 0
        %v2442 = vsel %vm2404, %v2358, 0
        %v2445 = vsel %vm2404, %v2359, 0
        %v2448 = vsel %vm2404, %v2360, 0
        %v2451 = vsel %vm2404, %v2361, 0
        %2453 = vmatprep.subr.bf16.mxu0 0
        %2454 = vmatpush1.bf16.msra.mxu0 %v2392
        %2455 = vmatprep.subr.bf16.mxu0 0
        %2456 = vmatpush1.bf16.msra.mxu0 %v2393
        %2457 = vmatprep.subr.bf16.mxu0 0
        %2458 = vmatpush1.bf16.msra.mxu0 %v2394
        %2459 = vmatprep.subr.bf16.mxu0 0
        %2460 = vmatpush1.bf16.msra.mxu0 %v2395
        %2461 = vmatprep.subr.bf16.mxu0 0
        %2462 = vmatpush1.bf16.msra.mxu0 %v2396
        %2463 = vmatprep.subr.bf16.mxu0 0
        %2464 = vmatpush1.bf16.msra.mxu0 %v2397
        %2465 = vmatprep.subr.bf16.mxu0 0
        %2466 = vmatpush1.bf16.msra.mxu0 0
        %2467 = vmatprep.subr.bf16.mxu0 0
        %2468 = vmatpush1.bf16.msra.mxu0 0
        %2469 = vmatprep.subr.bf16.mxu0 0
        %2470 = vmatpush1.bf16.msra.mxu0 0
        %2471 = vmatprep.subr.bf16.mxu0 0
        %2472 = vmatpush1.bf16.msra.mxu0 0
        %2473 = vmatprep.subr.bf16.mxu0 0
        %2474 = vmatpush1.bf16.msra.mxu0 0
        %2475 = vmatprep.subr.bf16.mxu0 0
        %2476 = vmatpush1.bf16.msra.mxu0 0
        %2477 = vmatprep.subr.bf16.mxu0 0
        %2478 = vmatpush1.bf16.msra.mxu0 0
        %2479 = vmatprep.subr.bf16.mxu0 0
        %2480 = vmatpush1.bf16.msra.mxu0 0
        %2481 = vmatprep.subr.bf16.mxu0 0
        %2482 = vmatpush1.bf16.msra.mxu0 0
        %2483 = vmatprep.subr.bf16.mxu0 0
        %2484 = vmatpush1.bf16.msra.mxu0 0
        %2485 = vmatprep.mubr.bf16.mxu0 0
        %2486 = vmatmul.mubr.bf16.gmra.mrb[0].mxu0 %v2406
        %v2487 = vpop.f32.mrb[0].mxu0
        %v2488 = vadd.f32 %v2366, %v2487
        %v2489 = vpop.f32.mrb[0].mxu0
        %v2490 = vpop.f32.mrb[0].mxu0
        %v2491 = vadd.f32 %v2366, %v2490
        %v2492 = vpop.f32.mrb[0].mxu0
        %2493 = vmatprep.mubr.bf16.mxu0 0
        %2494 = vmatmul.mubr.bf16.gmra.mrb[0].mxu0 %v2409
        %v2495 = vpop.f32.mrb[0].mxu0
        %v2496 = vadd.f32 %v2366, %v2495
        %v2497 = vpop.f32.mrb[0].mxu0
        %v2498 = vpop.f32.mrb[0].mxu0
        %v2499 = vadd.f32 %v2366, %v2498
        %v2500 = vpop.f32.mrb[0].mxu0
        %2501 = vmatprep.mubr.bf16.mxu0 0
        %2502 = vmatmul.mubr.bf16.gmra.mrb[0].mxu0 %v2412
        %v2503 = vpop.f32.mrb[0].mxu0
        %v2504 = vadd.f32 %v2366, %v2503
        %v2505 = vpop.f32.mrb[0].mxu0
        %v2506 = vpop.f32.mrb[0].mxu0
        %v2507 = vadd.f32 %v2366, %v2506
        %v2508 = vpop.f32.mrb[0].mxu0
        %2509 = vmatprep.mubr.bf16.mxu0 0
        %2510 = vmatmul.mubr.bf16.gmra.mrb[0].mxu0 %v2415
        %v2511 = vpop.f32.mrb[0].mxu0
        %v2512 = vadd.f32 %v2366, %v2511
        %v2513 = vpop.f32.mrb[0].mxu0
        %v2514 = vpop.f32.mrb[0].mxu0
        %v2515 = vadd.f32 %v2366, %v2514
        %v2516 = vpop.f32.mrb[0].mxu0
        %2517 = vmatprep.mubr.bf16.mxu0 0
        %2518 = vmatmul.mubr.bf16.gmra.mrb[0].mxu0 %v2418
        %v2519 = vpop.f32.mrb[0].mxu0
        %v2520 = vadd.f32 %v2366, %v2519
        %v2521 = vpop.f32.mrb[0].mxu0
        %v2522 = vpop.f32.mrb[0].mxu0
        %v2523 = vadd.f32 %v2366, %v2522
        %v2524 = vpop.f32.mrb[0].mxu0
        %2525 = vmatprep.mubr.bf16.mxu0 0
        %2526 = vmatmul.mubr.bf16.gmra.mrb[0].mxu0 %v2421
        %v2527 = vpop.f32.mrb[0].mxu0
        %v2528 = vadd.f32 %v2366, %v2527
        %v2529 = vpop.f32.mrb[0].mxu0
        %v2530 = vpop.f32.mrb[0].mxu0
        %v2531 = vadd.f32 %v2366, %v2530
        %v2532 = vpop.f32.mrb[0].mxu0
        %2533 = vmatprep.mubr.bf16.mxu0 0
        %2534 = vmatmul.mubr.bf16.gmra.mrb[0].mxu0 %v2424
        %v2535 = vpop.f32.mrb[0].mxu0
        %v2536 = vadd.f32 %v2366, %v2535
        %v2537 = vpop.f32.mrb[0].mxu0
        %v2538 = vpop.f32.mrb[0].mxu0
        %v2539 = vadd.f32 %v2366, %v2538
        %v2540 = vpop.f32.mrb[0].mxu0
        %2541 = vmatprep.mubr.bf16.mxu0 0
        %2542 = vmatmul.mubr.bf16.gmra.mrb[0].mxu0 %v2427
        %v2543 = vpop.f32.mrb[0].mxu0
        %v2544 = vadd.f32 %v2366, %v2543
        %v2545 = vpop.f32.mrb[0].mxu0
        %v2546 = vpop.f32.mrb[0].mxu0
        %v2547 = vadd.f32 %v2366, %v2546
        %v2548 = vpop.f32.mrb[0].mxu0
        %2549 = vmatprep.mubr.bf16.mxu0 0
        %2550 = vmatmul.mubr.bf16.gmra.mrb[0].mxu0 %v2430
        %v2551 = vpop.f32.mrb[0].mxu0
        %v2552 = vadd.f32 %v2366, %v2551
        %v2553 = vpop.f32.mrb[0].mxu0
        %v2554 = vpop.f32.mrb[0].mxu0
        %v2555 = vadd.f32 %v2366, %v2554
        %v2556 = vpop.f32.mrb[0].mxu0
        %2557 = vmatprep.mubr.bf16.mxu0 0
        %2558 = vmatmul.mubr.bf16.gmra.mrb[0].mxu0 %v2433
        %v2559 = vpop.f32.mrb[0].mxu0
        %v2560 = vadd.f32 %v2366, %v2559
        %v2561 = vpop.f32.mrb[0].mxu0
        %v2562 = vpop.f32.mrb[0].mxu0
        %v2563 = vadd.f32 %v2366, %v2562
        %v2564 = vpop.f32.mrb[0].mxu0
        %2565 = vmatprep.mubr.bf16.mxu0 0
        %2566 = vmatmul.mubr.bf16.gmra.mrb[0].mxu0 %v2436
        %v2567 = vpop.f32.mrb[0].mxu0
        %v2568 = vadd.f32 %v2366, %v2567
        %v2569 = vpop.f32.mrb[0].mxu0
        %v2570 = vpop.f32.mrb[0].mxu0
        %v2571 = vadd.f32 %v2366, %v2570
        %v2572 = vpop.f32.mrb[0].mxu0
        %2573 = vmatprep.mubr.bf16.mxu0 0
        %2574 = vmatmul.mubr.bf16.gmra.mrb[0].mxu0 %v2439
        %v2575 = vpop.f32.mrb[0].mxu0
        %v2576 = vadd.f32 %v2366, %v2575
        %v2577 = vpop.f32.mrb[0].mxu0
        %v2578 = vpop.f32.mrb[0].mxu0
        %v2579 = vadd.f32 %v2366, %v2578
        %v2580 = vpop.f32.mrb[0].mxu0
        %2581 = vmatprep.mubr.bf16.mxu0 0
        %2582 = vmatmul.mubr.bf16.gmra.mrb[0].mxu0 %v2442
        %v2583 = vpop.f32.mrb[0].mxu0
        %v2584 = vadd.f32 %v2366, %v2583
        %v2585 = vpop.f32.mrb[0].mxu0
        %v2586 = vpop.f32.mrb[0].mxu0
        %v2587 = vadd.f32 %v2366, %v2586
        %v2588 = vpop.f32.mrb[0].mxu0
        %2589 = vmatprep.mubr.bf16.mxu0 0
        %2590 = vmatmul.mubr.bf16.gmra.mrb[0].mxu0 %v2445
        %v2591 = vpop.f32.mrb[0].mxu0
        %v2592 = vadd.f32 %v2366, %v2591
        %v2593 = vpop.f32.mrb[0].mxu0
        %v2594 = vpop.f32.mrb[0].mxu0
        %v2595 = vadd.f32 %v2366, %v2594
        %v2596 = vpop.f32.mrb[0].mxu0
        %2597 = vmatprep.mubr.bf16.mxu0 0
        %2598 = vmatmul.mubr.bf16.gmra.mrb[0].mxu0 %v2448
        %v2599 = vpop.f32.mrb[0].mxu0
        %v2600 = vadd.f32 %v2366, %v2599
        %v2601 = vpop.f32.mrb[0].mxu0
        %v2602 = vpop.f32.mrb[0].mxu0
        %v2603 = vadd.f32 %v2366, %v2602
        %v2604 = vpop.f32.mrb[0].mxu0
        %2605 = vmatprep.mubr.bf16.mxu0 0
        %2606 = vmatmul.mubr.bf16.gmra.mrb[0].mxu0 %v2451
        %v2607 = vpop.f32.mrb[0].mxu0
        %v2608 = vadd.f32 %v2366, %v2607
        %v2609 = vpop.f32.mrb[0].mxu0
        %v2610 = vpop.f32.mrb[0].mxu0
        %v2611 = vadd.f32 %v2366, %v2610
        %v2612 = vpop.f32.mrb[0].mxu0
        %2613 = vdwg.mxu0
        %v2614 = vmax.f32 %v2488, 0.0
        %v2615 = vmax.f32 %v2491, 0.0
        %v2616 = vmax.f32 %v2496, 0.0
        %v2617 = vmax.f32 %v2499, 0.0
        %v2618 = vmax.f32 %v2504, 0.0
        %v2619 = vmax.f32 %v2507, 0.0
        %v2620 = vmax.f32 %v2512, 0.0
        %v2621 = vmax.f32 %v2515, 0.0
        %v2622 = vmax.f32 %v2520, 0.0
        %v2623 = vmax.f32 %v2523, 0.0
        %v2624 = vmax.f32 %v2528, 0.0
        %v2625 = vmax.f32 %v2531, 0.0
        %v2626 = vmax.f32 %v2536, 0.0
        %v2627 = vmax.f32 %v2539, 0.0
        %v2628 = vmax.f32 %v2544, 0.0
        %v2629 = vmax.f32 %v2547, 0.0
        %v2630 = vmax.f32 %v2552, 0.0
        %v2631 = vmax.f32 %v2555, 0.0
        %v2632 = vmax.f32 %v2560, 0.0
        %v2633 = vmax.f32 %v2563, 0.0
        %v2634 = vmax.f32 %v2568, 0.0
        %v2635 = vmax.f32 %v2571, 0.0
        %v2636 = vmax.f32 %v2576, 0.0
        %v2637 = vmax.f32 %v2579, 0.0
        %v2638 = vmax.f32 %v2584, 0.0
        %v2639 = vmax.f32 %v2587, 0.0
        %v2640 = vmax.f32 %v2592, 0.0
        %v2641 = vmax.f32 %v2595, 0.0
        %v2642 = vmax.f32 %v2600, 0.0
        %v2643 = vmax.f32 %v2603, 0.0
        %v2644 = vmax.f32 %v2608, 0.0
        %v2645 = vmax.f32 %v2611, 0.0
        %2646 = vst [vmem:[%s271] sm:$0xff] %v2614
        %2647 = vst [vmem:[%s271 + $0x8] sm:$0xff] %v2615
        %2648 = vst [vmem:[%s271 + $0x10] sm:$0xff] %v2616
        %2649 = vst [vmem:[%s271 + $0x18] sm:$0xff] %v2617
        %2650 = vst [vmem:[%s271 + $0x20] sm:$0xff] %v2618
        %2651 = vst [vmem:[%s271 + $0x28] sm:$0xff] %v2619
        %2652 = vst [vmem:[%s271 + $0x30] sm:$0xff] %v2620
        %2653 = vst [vmem:[%s271 + $0x38] sm:$0xff] %v2621
        %2654 = vst [vmem:[%s271 + $0x40] sm:$0xff] %v2622
        %2655 = vst [vmem:[%s271 + $0x48] sm:$0xff] %v2623
        %2656 = vst [vmem:[%s271 + $0x50] sm:$0xff] %v2624
        %2657 = vst [vmem:[%s271 + $0x58] sm:$0xff] %v2625
        %2658 = vst [vmem:[%s271 + $0x60] sm:$0xff] %v2626
        %2659 = vst [vmem:[%s271 + $0x68] sm:$0xff] %v2627
        %2660 = vst [vmem:[%s271 + $0x70] sm:$0xff] %v2628
        %2661 = vst [vmem:[%s271 + $0x78] sm:$0xff] %v2629
        %2662 = vst [vmem:[%s271 + $0x80] sm:$0xff] %v2630
        %2663 = vst [vmem:[%s271 + $0x88] sm:$0xff] %v2631
        %2664 = vst [vmem:[%s271 + $0x90] sm:$0xff] %v2632
        %2665 = vst [vmem:[%s271 + $0x98] sm:$0xff] %v2633
        %2666 = vst [vmem:[%s271 + $0xa0] sm:$0xff] %v2634
        %2667 = vst [vmem:[%s271 + $0xa8] sm:$0xff] %v2635
        %2668 = vst [vmem:[%s271 + $0xb0] sm:$0xff] %v2636
        %2669 = vst [vmem:[%s271 + $0xb8] sm:$0xff] %v2637
        %2670 = vst [vmem:[%s271 + $0xc0] sm:$0xff] %v2638
        %2671 = vst [vmem:[%s271 + $0xc8] sm:$0xff] %v2639
        %2672 = vst [vmem:[%s271 + $0xd0] sm:$0xff] %v2640
        %2673 = vst [vmem:[%s271 + $0xd8] sm:$0xff] %v2641
        %2674 = vst [vmem:[%s271 + $0xe0] sm:$0xff] %v2642
        %2675 = vst [vmem:[%s271 + $0xe8] sm:$0xff] %v2643
        %2676 = vst [vmem:[%s271 + $0xf0] sm:$0xff] %v2644
        %2677 = vst [vmem:[%s271 + $0xf8] sm:$0xff] %v2645
        %v2678 = vld [vmem:[#allocation2] sm:$0xf]
        %v2679 = vld [vmem:[#allocation2 + $0x4] sm:$0xf]
        %v2680 = vld [vmem:[#allocation2 + $0x8] sm:$0x1]
        %v2681 = vld [vmem:[#allocation2 + $0xc] sm:$0xf]
        %v2682 = vld [vmem:[#allocation2 + $0x10] sm:$0xf]
        %v2683 = vld [vmem:[#allocation2 + $0x14] sm:$0x1]
        %v2684 = vld [vmem:[#allocation2 + $0x18] sm:$0xf]
        %v2685 = vld [vmem:[#allocation2 + $0x1c] sm:$0xf]
        %v2686 = vld [vmem:[#allocation2 + $0x20] sm:$0x1]
        %v2687 = vld [vmem:[#allocation2 + $0x24] sm:$0xf]
        %v2688 = vld [vmem:[#allocation2 + $0x28] sm:$0xf]
        %v2689 = vld [vmem:[#allocation2 + $0x2c] sm:$0x1]
        %v2690 = vld [vmem:[#allocation2 + $0x30] sm:$0xf]
        %v2691 = vld [vmem:[#allocation2 + $0x34] sm:$0xf]
        %v2692 = vld [vmem:[#allocation2 + $0x38] sm:$0x1]
        %v2693 = vld [vmem:[#allocation2 + $0x3c] sm:$0xf]
        %v2694 = vld [vmem:[#allocation2 + $0x40] sm:$0xf]
        %v2695 = vld [vmem:[#allocation2 + $0x44] sm:$0x1]
        %v2696 = vld [vmem:[#allocation2 + $0x48] sm:$0xf]
        %v2697 = vld [vmem:[#allocation2 + $0x4c] sm:$0xf]
        %v2698 = vld [vmem:[#allocation2 + $0x50] sm:$0x1]
        %v2699 = vld [vmem:[#allocation2 + $0x54] sm:$0xf]
        %v2700 = vld [vmem:[#allocation2 + $0x58] sm:$0xf]
        %v2701 = vld [vmem:[#allocation2 + $0x5c] sm:$0x1]
        %v2702 = vld [vmem:[#allocation2 + $0x60] sm:$0xf]
        %v2703 = vld [vmem:[#allocation2 + $0x64] sm:$0xf]
        %v2704 = vld [vmem:[#allocation2 + $0x68] sm:$0x1]
        %v2705 = vld [vmem:[#allocation2 + $0x6c] sm:$0xf]
        %v2706 = vld [vmem:[#allocation2 + $0x70] sm:$0xf]
        %v2707 = vld [vmem:[#allocation2 + $0x74] sm:$0x1]
        %v2708 = vld [vmem:[#allocation2 + $0x78] sm:$0xf]
        %v2709 = vld [vmem:[#allocation2 + $0x7c] sm:$0xf]
        %v2710 = vld [vmem:[#allocation2 + $0x80] sm:$0x1]
        %v2711 = vld [vmem:[#allocation2 + $0x84] sm:$0xf]
        %v2712 = vld [vmem:[#allocation2 + $0x88] sm:$0xf]
        %v2713 = vld [vmem:[#allocation2 + $0x8c] sm:$0x1]
        %v2714 = vld [vmem:[#allocation2 + $0x90] sm:$0xf]
        %v2715 = vld [vmem:[#allocation2 + $0x94] sm:$0xf]
        %v2716 = vld [vmem:[#allocation2 + $0x98] sm:$0x1]
        %v2717 = vld [vmem:[#allocation2 + $0x9c] sm:$0xf]
        %v2718 = vld [vmem:[#allocation2 + $0xa0] sm:$0xf]
        %v2719 = vld [vmem:[#allocation2 + $0xa4] sm:$0x1]
        %v2720 = vld [vmem:[#allocation2 + $0xa8] sm:$0xf]
        %v2721 = vld [vmem:[#allocation2 + $0xac] sm:$0xf]
        %v2722 = vld [vmem:[#allocation2 + $0xb0] sm:$0x1]
        %v2723 = vld [vmem:[#allocation2 + $0xb4] sm:$0xf]
        %v2724 = vld [vmem:[#allocation2 + $0xb8] sm:$0xf]
        %v2725 = vld [vmem:[#allocation2 + $0xbc] sm:$0x1]
        %s2726 = scalar_lea.vmem %s3, 64
        %v2727 = vld [vmem:[%s2726] sm:$0xf]
        %v2728 = vld [vmem:[%s2726 + $0x4] sm:$0xf]
        %v2729 = vld [vmem:[%s2726 + $0x8] sm:$0xf]
        %v2730 = vld [vmem:[%s2726 + $0xc] sm:$0xf]
        %v2731 = vld [vmem:[%s2726 + $0x10] sm:$0xf]
        %v2732 = vld [vmem:[%s2726 + $0x14] sm:$0xf]
        %v2733 = vld [vmem:[%s2726 + $0x18] sm:$0xf]
        %v2734 = vld [vmem:[%s2726 + $0x1c] sm:$0xf]
        %v2735 = vld [vmem:[%s2726 + $0x20] sm:$0xf]
        %v2736 = vld [vmem:[%s2726 + $0x24] sm:$0xf]
        %v2737 = vld [vmem:[%s2726 + $0x28] sm:$0xf]
        %v2738 = vld [vmem:[%s2726 + $0x2c] sm:$0xf]
        %v2739 = vld [vmem:[%s2726 + $0x30] sm:$0xf]
        %v2740 = vld [vmem:[%s2726 + $0x34] sm:$0xf]
        %v2741 = vld [vmem:[%s2726 + $0x38] sm:$0xf]
        %v2742 = vld [vmem:[%s2726 + $0x3c] sm:$0xf]
        %vm2743 = vsmask.f32 3328
        %vm2744 = vsmask.f32 7440
        %vm2745 = vmor %vm2743, %vm2744
        %v2747 = vshrl.u32 %v2678, 16
        %v2749 = vrot.slane %v2747, 4
        %v2750 = vshll.u32 %v2678, 16
        %v2752 = vrot.slane %v2750, 5
        %v2753 = vor.u32 %v2749, %v2752
        %v2754 = vrot.slane %v2753, 4
        %v2756 = vshll.u32 %v2679, 16
        %v2758 = vrot.slane %v2756, 5
        %v2759 = vsel %vm2745, %v2754, %v2758
        %v2760 = vshrl.u32 %v2679, 16
        %v2762 = vrot.slane %v2760, 4
        %v2763 = vor.u32 %v2762, %v2758
        %v2764 = vrot.slane %v2763, 4
        %v2766 = vshll.u32 %v2680, 16
        %v2768 = vrot.slane %v2766, 5
        %v2769 = vsel %vm2745, %v2764, %v2768
        %v2771 = vshrl.u32 %v2681, 16
        %v2773 = vrot.slane %v2771, 4
        %v2774 = vshll.u32 %v2681, 16
        %v2776 = vrot.slane %v2774, 5
        %v2777 = vor.u32 %v2773, %v2776
        %v2778 = vrot.slane %v2777, 4
        %v2780 = vshll.u32 %v2682, 16
        %v2782 = vrot.slane %v2780, 5
        %v2783 = vsel %vm2745, %v2778, %v2782
        %v2784 = vshrl.u32 %v2682, 16
        %v2786 = vrot.slane %v2784, 4
        %v2787 = vor.u32 %v2786, %v2782
        %v2788 = vrot.slane %v2787, 4
        %v2790 = vshll.u32 %v2683, 16
        %v2792 = vrot.slane %v2790, 5
        %v2793 = vsel %vm2745, %v2788, %v2792
        %v2795 = vshrl.u32 %v2684, 16
        %v2797 = vrot.slane %v2795, 4
        %v2798 = vshll.u32 %v2684, 16
        %v2800 = vrot.slane %v2798, 5
        %v2801 = vor.u32 %v2797, %v2800
        %v2802 = vrot.slane %v2801, 4
        %v2804 = vshll.u32 %v2685, 16
        %v2806 = vrot.slane %v2804, 5
        %v2807 = vsel %vm2745, %v2802, %v2806
        %v2808 = vshrl.u32 %v2685, 16
        %v2810 = vrot.slane %v2808, 4
        %v2811 = vor.u32 %v2810, %v2806
        %v2812 = vrot.slane %v2811, 4
        %v2814 = vshll.u32 %v2686, 16
        %v2816 = vrot.slane %v2814, 5
        %v2817 = vsel %vm2745, %v2812, %v2816
        %v2819 = vshrl.u32 %v2687, 16
        %v2821 = vrot.slane %v2819, 4
        %v2822 = vshll.u32 %v2687, 16
        %v2824 = vrot.slane %v2822, 5
        %v2825 = vor.u32 %v2821, %v2824
        %v2826 = vrot.slane %v2825, 4
        %v2828 = vshll.u32 %v2688, 16
        %v2830 = vrot.slane %v2828, 5
        %v2831 = vsel %vm2745, %v2826, %v2830
        %v2832 = vshrl.u32 %v2688, 16
        %v2834 = vrot.slane %v2832, 4
        %v2835 = vor.u32 %v2834, %v2830
        %v2836 = vrot.slane %v2835, 4
        %v2838 = vshll.u32 %v2689, 16
        %v2840 = vrot.slane %v2838, 5
        %v2841 = vsel %vm2745, %v2836, %v2840
        %v2843 = vshrl.u32 %v2690, 16
        %v2845 = vrot.slane %v2843, 4
        %v2846 = vshll.u32 %v2690, 16
        %v2848 = vrot.slane %v2846, 5
        %v2849 = vor.u32 %v2845, %v2848
        %v2850 = vrot.slane %v2849, 4
        %v2852 = vshll.u32 %v2691, 16
        %v2854 = vrot.slane %v2852, 5
        %v2855 = vsel %vm2745, %v2850, %v2854
        %v2856 = vshrl.u32 %v2691, 16
        %v2858 = vrot.slane %v2856, 4
        %v2859 = vor.u32 %v2858, %v2854
        %v2860 = vrot.slane %v2859, 4
        %v2862 = vshll.u32 %v2692, 16
        %v2864 = vrot.slane %v2862, 5
        %v2865 = vsel %vm2745, %v2860, %v2864
        %v2867 = vshrl.u32 %v2693, 16
        %v2869 = vrot.slane %v2867, 4
        %v2870 = vshll.u32 %v2693, 16
        %v2872 = vrot.slane %v2870, 5
        %v2873 = vor.u32 %v2869, %v2872
        %v2874 = vrot.slane %v2873, 4
        %v2876 = vshll.u32 %v2694, 16
        %v2878 = vrot.slane %v2876, 5
        %v2879 = vsel %vm2745, %v2874, %v2878
        %v2880 = vshrl.u32 %v2694, 16
        %v2882 = vrot.slane %v2880, 4
        %v2883 = vor.u32 %v2882, %v2878
        %v2884 = vrot.slane %v2883, 4
        %v2886 = vshll.u32 %v2695, 16
        %v2888 = vrot.slane %v2886, 5
        %v2889 = vsel %vm2745, %v2884, %v2888
        %v2891 = vshrl.u32 %v2696, 16
        %v2893 = vrot.slane %v2891, 4
        %v2894 = vshll.u32 %v2696, 16
        %v2896 = vrot.slane %v2894, 5
        %v2897 = vor.u32 %v2893, %v2896
        %v2898 = vrot.slane %v2897, 4
        %v2900 = vshll.u32 %v2697, 16
        %v2902 = vrot.slane %v2900, 5
        %v2903 = vsel %vm2745, %v2898, %v2902
        %v2904 = vshrl.u32 %v2697, 16
        %v2906 = vrot.slane %v2904, 4
        %v2907 = vor.u32 %v2906, %v2902
        %v2908 = vrot.slane %v2907, 4
        %v2910 = vshll.u32 %v2698, 16
        %v2912 = vrot.slane %v2910, 5
        %v2913 = vsel %vm2745, %v2908, %v2912
        %v2915 = vshrl.u32 %v2699, 16
        %v2917 = vrot.slane %v2915, 4
        %v2918 = vshll.u32 %v2699, 16
        %v2920 = vrot.slane %v2918, 5
        %v2921 = vor.u32 %v2917, %v2920
        %v2922 = vrot.slane %v2921, 4
        %v2924 = vshll.u32 %v2700, 16
        %v2926 = vrot.slane %v2924, 5
        %v2927 = vsel %vm2745, %v2922, %v2926
        %v2928 = vshrl.u32 %v2700, 16
        %v2930 = vrot.slane %v2928, 4
        %v2931 = vor.u32 %v2930, %v2926
        %v2932 = vrot.slane %v2931, 4
        %v2934 = vshll.u32 %v2701, 16
        %v2936 = vrot.slane %v2934, 5
        %v2937 = vsel %vm2745, %v2932, %v2936
        %v2939 = vshrl.u32 %v2702, 16
        %v2941 = vrot.slane %v2939, 4
        %v2942 = vshll.u32 %v2702, 16
        %v2944 = vrot.slane %v2942, 5
        %v2945 = vor.u32 %v2941, %v2944
        %v2946 = vrot.slane %v2945, 4
        %v2948 = vshll.u32 %v2703, 16
        %v2950 = vrot.slane %v2948, 5
        %v2951 = vsel %vm2745, %v2946, %v2950
        %v2952 = vshrl.u32 %v2703, 16
        %v2954 = vrot.slane %v2952, 4
        %v2955 = vor.u32 %v2954, %v2950
        %v2956 = vrot.slane %v2955, 4
        %v2958 = vshll.u32 %v2704, 16
        %v2960 = vrot.slane %v2958, 5
        %v2961 = vsel %vm2745, %v2956, %v2960
        %v2963 = vshrl.u32 %v2705, 16
        %v2965 = vrot.slane %v2963, 4
        %v2966 = vshll.u32 %v2705, 16
        %v2968 = vrot.slane %v2966, 5
        %v2969 = vor.u32 %v2965, %v2968
        %v2970 = vrot.slane %v2969, 4
        %v2972 = vshll.u32 %v2706, 16
        %v2974 = vrot.slane %v2972, 5
        %v2975 = vsel %vm2745, %v2970, %v2974
        %v2976 = vshrl.u32 %v2706, 16
        %v2978 = vrot.slane %v2976, 4
        %v2979 = vor.u32 %v2978, %v2974
        %v2980 = vrot.slane %v2979, 4
        %v2982 = vshll.u32 %v2707, 16
        %v2984 = vrot.slane %v2982, 5
        %v2985 = vsel %vm2745, %v2980, %v2984
        %v2987 = vshrl.u32 %v2708, 16
        %v2989 = vrot.slane %v2987, 4
        %v2990 = vshll.u32 %v2708, 16
        %v2992 = vrot.slane %v2990, 5
        %v2993 = vor.u32 %v2989, %v2992
        %v2994 = vrot.slane %v2993, 4
        %v2996 = vshll.u32 %v2709, 16
        %v2998 = vrot.slane %v2996, 5
        %v2999 = vsel %vm2745, %v2994, %v2998
        %v3000 = vshrl.u32 %v2709, 16
        %v3002 = vrot.slane %v3000, 4
        %v3003 = vor.u32 %v3002, %v2998
        %v3004 = vrot.slane %v3003, 4
        %v3006 = vshll.u32 %v2710, 16
        %v3008 = vrot.slane %v3006, 5
        %v3009 = vsel %vm2745, %v3004, %v3008
        %v3011 = vshrl.u32 %v2711, 16
        %v3013 = vrot.slane %v3011, 4
        %v3014 = vshll.u32 %v2711, 16
        %v3016 = vrot.slane %v3014, 5
        %v3017 = vor.u32 %v3013, %v3016
        %v3018 = vrot.slane %v3017, 4
        %v3020 = vshll.u32 %v2712, 16
        %v3022 = vrot.slane %v3020, 5
        %v3023 = vsel %vm2745, %v3018, %v3022
        %v3024 = vshrl.u32 %v2712, 16
        %v3026 = vrot.slane %v3024, 4
        %v3027 = vor.u32 %v3026, %v3022
        %v3028 = vrot.slane %v3027, 4
        %v3030 = vshll.u32 %v2713, 16
        %v3032 = vrot.slane %v3030, 5
        %v3033 = vsel %vm2745, %v3028, %v3032
        %v3035 = vshrl.u32 %v2714, 16
        %v3037 = vrot.slane %v3035, 4
        %v3038 = vshll.u32 %v2714, 16
        %v3040 = vrot.slane %v3038, 5
        %v3041 = vor.u32 %v3037, %v3040
        %v3042 = vrot.slane %v3041, 4
        %v3044 = vshll.u32 %v2715, 16
        %v3046 = vrot.slane %v3044, 5
        %v3047 = vsel %vm2745, %v3042, %v3046
        %v3048 = vshrl.u32 %v2715, 16
        %v3050 = vrot.slane %v3048, 4
        %v3051 = vor.u32 %v3050, %v3046
        %v3052 = vrot.slane %v3051, 4
        %v3054 = vshll.u32 %v2716, 16
        %v3056 = vrot.slane %v3054, 5
        %v3057 = vsel %vm2745, %v3052, %v3056
        %v3059 = vshrl.u32 %v2717, 16
        %v3061 = vrot.slane %v3059, 4
        %v3062 = vshll.u32 %v2717, 16
        %v3064 = vrot.slane %v3062, 5
        %v3065 = vor.u32 %v3061, %v3064
        %v3066 = vrot.slane %v3065, 4
        %v3068 = vshll.u32 %v2718, 16
        %v3070 = vrot.slane %v3068, 5
        %v3071 = vsel %vm2745, %v3066, %v3070
        %v3072 = vshrl.u32 %v2718, 16
        %v3074 = vrot.slane %v3072, 4
        %v3075 = vor.u32 %v3074, %v3070
        %v3076 = vrot.slane %v3075, 4
        %v3078 = vshll.u32 %v2719, 16
        %v3080 = vrot.slane %v3078, 5
        %v3081 = vsel %vm2745, %v3076, %v3080
        %v3083 = vshrl.u32 %v2720, 16
        %v3085 = vrot.slane %v3083, 4
        %v3086 = vshll.u32 %v2720, 16
        %v3088 = vrot.slane %v3086, 5
        %v3089 = vor.u32 %v3085, %v3088
        %v3090 = vrot.slane %v3089, 4
        %v3092 = vshll.u32 %v2721, 16
        %v3094 = vrot.slane %v3092, 5
        %v3095 = vsel %vm2745, %v3090, %v3094
        %v3096 = vshrl.u32 %v2721, 16
        %v3098 = vrot.slane %v3096, 4
        %v3099 = vor.u32 %v3098, %v3094
        %v3100 = vrot.slane %v3099, 4
        %v3102 = vshll.u32 %v2722, 16
        %v3104 = vrot.slane %v3102, 5
        %v3105 = vsel %vm2745, %v3100, %v3104
        %v3107 = vshrl.u32 %v2723, 16
        %v3109 = vrot.slane %v3107, 4
        %v3110 = vshll.u32 %v2723, 16
        %v3112 = vrot.slane %v3110, 5
        %v3113 = vor.u32 %v3109, %v3112
        %v3114 = vrot.slane %v3113, 4
        %v3116 = vshll.u32 %v2724, 16
        %v3118 = vrot.slane %v3116, 5
        %v3119 = vsel %vm2745, %v3114, %v3118
        %v3120 = vshrl.u32 %v2724, 16
        %v3122 = vrot.slane %v3120, 4
        %v3123 = vor.u32 %v3122, %v3118
        %v3124 = vrot.slane %v3123, 4
        %v3126 = vshll.u32 %v2725, 16
        %v3128 = vrot.slane %v3126, 5
        %v3129 = vsel %vm2745, %v3124, %v3128
        %v3130 = vunpack.c.l.b16 %v2759
        %v3131 = vunpack.c.l.b16 %v2769
        %v3132 = vunpack.c.l.b16 %v2783
        %v3133 = vunpack.c.l.b16 %v2793
        %v3134 = vunpack.c.l.b16 %v2807
        %v3135 = vunpack.c.l.b16 %v2817
        %v3136 = vunpack.c.l.b16 %v2831
        %v3137 = vunpack.c.l.b16 %v2841
        %v3138 = vunpack.c.l.b16 %v2855
        %v3139 = vunpack.c.l.b16 %v2865
        %v3140 = vunpack.c.l.b16 %v2879
        %v3141 = vunpack.c.l.b16 %v2889
        %v3142 = vunpack.c.l.b16 %v2903
        %v3143 = vunpack.c.l.b16 %v2913
        %v3144 = vunpack.c.l.b16 %v2927
        %v3145 = vunpack.c.l.b16 %v2937
        %v3146 = vunpack.c.l.b16 %v2951
        %v3147 = vunpack.c.l.b16 %v2961
        %v3148 = vunpack.c.l.b16 %v2975
        %v3149 = vunpack.c.l.b16 %v2985
        %v3150 = vunpack.c.l.b16 %v2999
        %v3151 = vunpack.c.l.b16 %v3009
        %v3152 = vunpack.c.l.b16 %v3023
        %v3153 = vunpack.c.l.b16 %v3033
        %v3154 = vunpack.c.l.b16 %v3047
        %v3155 = vunpack.c.l.b16 %v3057
        %v3156 = vunpack.c.l.b16 %v3071
        %v3157 = vunpack.c.l.b16 %v3081
        %v3158 = vunpack.c.l.b16 %v3095
        %v3159 = vunpack.c.l.b16 %v3105
        %v3160 = vunpack.c.l.b16 %v3119
        %v3161 = vunpack.c.l.b16 %v3129
        %v3162 = vpack.c.b16 %v3131, %v3130
        %v3163 = vpack.c.b16 %v3133, %v3132
        %v3164 = vpack.c.b16 %v3135, %v3134
        %v3165 = vpack.c.b16 %v3137, %v3136
        %v3166 = vpack.c.b16 %v3139, %v3138
        %v3167 = vpack.c.b16 %v3141, %v3140
        %v3168 = vpack.c.b16 %v3143, %v3142
        %v3169 = vpack.c.b16 %v3145, %v3144
        %v3170 = vpack.c.b16 %v3147, %v3146
        %v3171 = vpack.c.b16 %v3149, %v3148
        %v3172 = vpack.c.b16 %v3151, %v3150
        %v3173 = vpack.c.b16 %v3153, %v3152
        %v3174 = vpack.c.b16 %v3155, %v3154
        %v3175 = vpack.c.b16 %v3157, %v3156
        %v3176 = vpack.c.b16 %v3159, %v3158
        %v3177 = vpack.c.b16 %v3161, %v3160
        %v3210 = vunpack.c.l.b16 %v2727
        %v3211 = vunpack.c.l.b16 %v2728
        %v3212 = vunpack.c.l.b16 %v2729
        %v3213 = vunpack.c.l.b16 %v2730
        %v3214 = vunpack.c.l.b16 %v2731
        %v3215 = vunpack.c.l.b16 %v2732
        %v3216 = vunpack.c.l.b16 %v2733
        %v3217 = vunpack.c.l.b16 %v2734
        %v3218 = vunpack.c.l.b16 %v2735
        %v3219 = vunpack.c.l.b16 %v2736
        %v3220 = vunpack.c.l.b16 %v2737
        %v3221 = vunpack.c.l.b16 %v2738
        %v3222 = vunpack.c.l.b16 %v2739
        %v3223 = vunpack.c.l.b16 %v2740
        %v3224 = vunpack.c.l.b16 %v2741
        %v3225 = vunpack.c.l.b16 %v2742
        %v3226 = vpack.c.b16 %v3211, %v3210
        %v3227 = vpack.c.b16 %v3213, %v3212
        %v3228 = vpack.c.b16 %v3215, %v3214
        %v3229 = vpack.c.b16 %v3217, %v3216
        %v3230 = vpack.c.b16 %v3219, %v3218
        %v3231 = vpack.c.b16 %v3221, %v3220
        %v3232 = vpack.c.b16 %v3223, %v3222
        %v3233 = vpack.c.b16 %v3225, %v3224
        %3242 = vmatprep.subr.bf16.mxu0 0
        %3243 = vmatpush1.bf16.msra.mxu0 %v3226
        %3244 = vmatprep.subr.bf16.mxu0 0
        %3245 = vmatpush1.bf16.msra.mxu0 %v3227
        %3246 = vmatprep.subr.bf16.mxu0 0
        %3247 = vmatpush1.bf16.msra.mxu0 %v3228
        %3248 = vmatprep.subr.bf16.mxu0 0
        %3249 = vmatpush1.bf16.msra.mxu0 %v3229
        %3250 = vmatprep.subr.bf16.mxu0 0
        %3251 = vmatpush1.bf16.msra.mxu0 %v3230
        %3252 = vmatprep.subr.bf16.mxu0 0
        %3253 = vmatpush1.bf16.msra.mxu0 %v3231
        %3254 = vmatprep.subr.bf16.mxu0 0
        %3255 = vmatpush1.bf16.msra.mxu0 %v3232
        %3256 = vmatprep.subr.bf16.mxu0 0
        %3257 = vmatpush1.bf16.msra.mxu0 %v3233
        %3258 = vmatprep.subr.bf16.mxu0 0
        %3259 = vmatpush1.bf16.msra.mxu0 0
        %3260 = vmatprep.subr.bf16.mxu0 0
        %3261 = vmatpush1.bf16.msra.mxu0 0
        %3262 = vmatprep.subr.bf16.mxu0 0
        %3263 = vmatpush1.bf16.msra.mxu0 0
        %3264 = vmatprep.subr.bf16.mxu0 0
        %3265 = vmatpush1.bf16.msra.mxu0 0
        %3266 = vmatprep.subr.bf16.mxu0 0
        %3267 = vmatpush1.bf16.msra.mxu0 0
        %3268 = vmatprep.subr.bf16.mxu0 0
        %3269 = vmatpush1.bf16.msra.mxu0 0
        %3270 = vmatprep.subr.bf16.mxu0 0
        %3271 = vmatpush1.bf16.msra.mxu0 0
        %3272 = vmatprep.subr.bf16.mxu0 0
        %3273 = vmatpush1.bf16.msra.mxu0 0
        %3274 = vmatprep.mubr.bf16.mxu0 0
        %3275 = vmatmul.mubr.bf16.gmra.mrb[0].mxu0 %v3162
        %v3276 = vpop.f32.mrb[0].mxu0
        %v3277 = vadd.f32 %v1974, %v3276
        %v3278 = vpop.f32.mrb[0].mxu0
        %v3279 = vpop.f32.mrb[0].mxu0
        %v3280 = vadd.f32 %v1974, %v3279
        %v3281 = vpop.f32.mrb[0].mxu0
        %3282 = vmatprep.mubr.bf16.mxu0 0
        %3283 = vmatmul.mubr.bf16.gmra.mrb[0].mxu0 %v3163
        %v3284 = vpop.f32.mrb[0].mxu0
        %v3285 = vadd.f32 %v1974, %v3284
        %v3286 = vpop.f32.mrb[0].mxu0
        %v3287 = vpop.f32.mrb[0].mxu0
        %v3288 = vadd.f32 %v1974, %v3287
        %v3289 = vpop.f32.mrb[0].mxu0
        %3290 = vmatprep.mubr.bf16.mxu0 0
        %3291 = vmatmul.mubr.bf16.gmra.mrb[0].mxu0 %v3164
        %v3292 = vpop.f32.mrb[0].mxu0
        %v3293 = vadd.f32 %v1974, %v3292
        %v3294 = vpop.f32.mrb[0].mxu0
        %v3295 = vpop.f32.mrb[0].mxu0
        %v3296 = vadd.f32 %v1974, %v3295
        %v3297 = vpop.f32.mrb[0].mxu0
        %3298 = vmatprep.mubr.bf16.mxu0 0
        %3299 = vmatmul.mubr.bf16.gmra.mrb[0].mxu0 %v3165
        %v3300 = vpop.f32.mrb[0].mxu0
        %v3301 = vadd.f32 %v1974, %v3300
        %v3302 = vpop.f32.mrb[0].mxu0
        %v3303 = vpop.f32.mrb[0].mxu0
        %v3304 = vadd.f32 %v1974, %v3303
        %v3305 = vpop.f32.mrb[0].mxu0
        %3306 = vmatprep.mubr.bf16.mxu0 0
        %3307 = vmatmul.mubr.bf16.gmra.mrb[0].mxu0 %v3166
        %v3308 = vpop.f32.mrb[0].mxu0
        %v3309 = vadd.f32 %v1974, %v3308
        %v3310 = vpop.f32.mrb[0].mxu0
        %v3311 = vpop.f32.mrb[0].mxu0
        %v3312 = vadd.f32 %v1974, %v3311
        %v3313 = vpop.f32.mrb[0].mxu0
        %3314 = vmatprep.mubr.bf16.mxu0 0
        %3315 = vmatmul.mubr.bf16.gmra.mrb[0].mxu0 %v3167
        %v3316 = vpop.f32.mrb[0].mxu0
        %v3317 = vadd.f32 %v1974, %v3316
        %v3318 = vpop.f32.mrb[0].mxu0
        %v3319 = vpop.f32.mrb[0].mxu0
        %v3320 = vadd.f32 %v1974, %v3319
        %v3321 = vpop.f32.mrb[0].mxu0
        %3322 = vmatprep.mubr.bf16.mxu0 0
        %3323 = vmatmul.mubr.bf16.gmra.mrb[0].mxu0 %v3168
        %v3324 = vpop.f32.mrb[0].mxu0
        %v3325 = vadd.f32 %v1974, %v3324
        %v3326 = vpop.f32.mrb[0].mxu0
        %v3327 = vpop.f32.mrb[0].mxu0
        %v3328 = vadd.f32 %v1974, %v3327
        %v3329 = vpop.f32.mrb[0].mxu0
        %3330 = vmatprep.mubr.bf16.mxu0 0
        %3331 = vmatmul.mubr.bf16.gmra.mrb[0].mxu0 %v3169
        %v3332 = vpop.f32.mrb[0].mxu0
        %v3333 = vadd.f32 %v1974, %v3332
        %v3334 = vpop.f32.mrb[0].mxu0
        %v3335 = vpop.f32.mrb[0].mxu0
        %v3336 = vadd.f32 %v1974, %v3335
        %v3337 = vpop.f32.mrb[0].mxu0
        %3338 = vmatprep.mubr.bf16.mxu0 0
        %3339 = vmatmul.mubr.bf16.gmra.mrb[0].mxu0 %v3170
        %v3340 = vpop.f32.mrb[0].mxu0
        %v3341 = vadd.f32 %v1974, %v3340
        %v3342 = vpop.f32.mrb[0].mxu0
        %v3343 = vpop.f32.mrb[0].mxu0
        %v3344 = vadd.f32 %v1974, %v3343
        %v3345 = vpop.f32.mrb[0].mxu0
        %3346 = vmatprep.mubr.bf16.mxu0 0
        %3347 = vmatmul.mubr.bf16.gmra.mrb[0].mxu0 %v3171
        %v3348 = vpop.f32.mrb[0].mxu0
        %v3349 = vadd.f32 %v1974, %v3348
        %v3350 = vpop.f32.mrb[0].mxu0
        %v3351 = vpop.f32.mrb[0].mxu0
        %v3352 = vadd.f32 %v1974, %v3351
        %v3353 = vpop.f32.mrb[0].mxu0
        %3354 = vmatprep.mubr.bf16.mxu0 0
        %3355 = vmatmul.mubr.bf16.gmra.mrb[0].mxu0 %v3172
        %v3356 = vpop.f32.mrb[0].mxu0
        %v3357 = vadd.f32 %v1974, %v3356
        %v3358 = vpop.f32.mrb[0].mxu0
        %v3359 = vpop.f32.mrb[0].mxu0
        %v3360 = vadd.f32 %v1974, %v3359
        %v3361 = vpop.f32.mrb[0].mxu0
        %3362 = vmatprep.mubr.bf16.mxu0 0
        %3363 = vmatmul.mubr.bf16.gmra.mrb[0].mxu0 %v3173
        %v3364 = vpop.f32.mrb[0].mxu0
        %v3365 = vadd.f32 %v1974, %v3364
        %v3366 = vpop.f32.mrb[0].mxu0
        %v3367 = vpop.f32.mrb[0].mxu0
        %v3368 = vadd.f32 %v1974, %v3367
        %v3369 = vpop.f32.mrb[0].mxu0
        %3370 = vmatprep.mubr.bf16.mxu0 0
        %3371 = vmatmul.mubr.bf16.gmra.mrb[0].mxu0 %v3174
        %v3372 = vpop.f32.mrb[0].mxu0
        %v3373 = vadd.f32 %v1974, %v3372
        %v3374 = vpop.f32.mrb[0].mxu0
        %v3375 = vpop.f32.mrb[0].mxu0
        %v3376 = vadd.f32 %v1974, %v3375
        %v3377 = vpop.f32.mrb[0].mxu0
        %3378 = vmatprep.mubr.bf16.mxu0 0
        %3379 = vmatmul.mubr.bf16.gmra.mrb[0].mxu0 %v3175
        %v3380 = vpop.f32.mrb[0].mxu0
        %v3381 = vadd.f32 %v1974, %v3380
        %v3382 = vpop.f32.mrb[0].mxu0
        %v3383 = vpop.f32.mrb[0].mxu0
        %v3384 = vadd.f32 %v1974, %v3383
        %v3385 = vpop.f32.mrb[0].mxu0
        %3386 = vmatprep.mubr.bf16.mxu0 0
        %3387 = vmatmul.mubr.bf16.gmra.mrb[0].mxu0 %v3176
        %v3388 = vpop.f32.mrb[0].mxu0
        %v3389 = vadd.f32 %v1974, %v3388
        %v3390 = vpop.f32.mrb[0].mxu0
        %v3391 = vpop.f32.mrb[0].mxu0
        %v3392 = vadd.f32 %v1974, %v3391
        %v3393 = vpop.f32.mrb[0].mxu0
        %3394 = vmatprep.mubr.bf16.mxu0 0
        %3395 = vmatmul.mubr.bf16.gmra.mrb[0].mxu0 %v3177
        %v3396 = vpop.f32.mrb[0].mxu0
        %v3397 = vadd.f32 %v1974, %v3396
        %v3398 = vpop.f32.mrb[0].mxu0
        %v3399 = vpop.f32.mrb[0].mxu0
        %v3400 = vadd.f32 %v1974, %v3399
        %v3401 = vpop.f32.mrb[0].mxu0
        %3402 = vdwg.mxu0
        %v3403 = vmax.f32 %v3277, 0.0
        %v3404 = vmax.f32 %v3280, 0.0
        %v3405 = vmax.f32 %v3285, 0.0
        %v3406 = vmax.f32 %v3288, 0.0
        %v3407 = vmax.f32 %v3293, 0.0
        %v3408 = vmax.f32 %v3296, 0.0
        %v3409 = vmax.f32 %v3301, 0.0
        %v3410 = vmax.f32 %v3304, 0.0
        %v3411 = vmax.f32 %v3309, 0.0
        %v3412 = vmax.f32 %v3312, 0.0
        %v3413 = vmax.f32 %v3317, 0.0
        %v3414 = vmax.f32 %v3320, 0.0
        %v3415 = vmax.f32 %v3325, 0.0
        %v3416 = vmax.f32 %v3328, 0.0
        %v3417 = vmax.f32 %v3333, 0.0
        %v3418 = vmax.f32 %v3336, 0.0
        %v3419 = vmax.f32 %v3341, 0.0
        %v3420 = vmax.f32 %v3344, 0.0
        %v3421 = vmax.f32 %v3349, 0.0
        %v3422 = vmax.f32 %v3352, 0.0
        %v3423 = vmax.f32 %v3357, 0.0
        %v3424 = vmax.f32 %v3360, 0.0
        %v3425 = vmax.f32 %v3365, 0.0
        %v3426 = vmax.f32 %v3368, 0.0
        %v3427 = vmax.f32 %v3373, 0.0
        %v3428 = vmax.f32 %v3376, 0.0
        %v3429 = vmax.f32 %v3381, 0.0
        %v3430 = vmax.f32 %v3384, 0.0
        %v3431 = vmax.f32 %v3389, 0.0
        %v3432 = vmax.f32 %v3392, 0.0
        %v3433 = vmax.f32 %v3397, 0.0
        %v3434 = vmax.f32 %v3400, 0.0
        %v3435 = vpack.c.bf16 %v3404, %v3403
        %v3436 = vpack.c.bf16 %v3406, %v3405
        %v3437 = vpack.c.bf16 %v3408, %v3407
        %v3438 = vpack.c.bf16 %v3410, %v3409
        %v3439 = vpack.c.bf16 %v3412, %v3411
        %v3440 = vpack.c.bf16 %v3414, %v3413
        %v3441 = vpack.c.bf16 %v3416, %v3415
        %v3442 = vpack.c.bf16 %v3418, %v3417
        %v3443 = vpack.c.bf16 %v3420, %v3419
        %v3444 = vpack.c.bf16 %v3422, %v3421
        %v3445 = vpack.c.bf16 %v3424, %v3423
        %v3446 = vpack.c.bf16 %v3426, %v3425
        %v3447 = vpack.c.bf16 %v3428, %v3427
        %v3448 = vpack.c.bf16 %v3430, %v3429
        %v3449 = vpack.c.bf16 %v3432, %v3431
        %v3450 = vpack.c.bf16 %v3434, %v3433
        %3451 = vst.msk [vmem:[#allocation3] sm:$0xff] %vm2329, %v3435
        %3452 = vst.msk [vmem:[#allocation3 + $0x8] sm:$0xff] %vm2329, %v3436
        %3453 = vst.msk [vmem:[#allocation3 + $0x10] sm:$0xff] %vm2329, %v3437
        %3454 = vst.msk [vmem:[#allocation3 + $0x18] sm:$0xff] %vm2329, %v3438
        %3455 = vst.msk [vmem:[#allocation3 + $0x20] sm:$0xff] %vm2329, %v3439
        %3456 = vst.msk [vmem:[#allocation3 + $0x28] sm:$0xff] %vm2329, %v3440
        %3457 = vst.msk [vmem:[#allocation3 + $0x30] sm:$0xff] %vm2329, %v3441
        %3458 = vst.msk [vmem:[#allocation3 + $0x38] sm:$0xff] %vm2329, %v3442
        %3459 = vst.msk [vmem:[#allocation3 + $0x40] sm:$0xff] %vm2329, %v3443
        %3460 = vst.msk [vmem:[#allocation3 + $0x48] sm:$0xff] %vm2329, %v3444
        %3461 = vst.msk [vmem:[#allocation3 + $0x50] sm:$0xff] %vm2329, %v3445
        %3462 = vst.msk [vmem:[#allocation3 + $0x58] sm:$0xff] %vm2329, %v3446
        %3463 = vst.msk [vmem:[#allocation3 + $0x60] sm:$0xff] %vm2329, %v3447
        %3464 = vst.msk [vmem:[#allocation3 + $0x68] sm:$0xff] %vm2329, %v3448
        %3465 = vst.msk [vmem:[#allocation3 + $0x70] sm:$0xff] %vm2329, %v3449
        %3466 = vst.msk [vmem:[#allocation3 + $0x78] sm:$0xff] %vm2329, %v3450
        %v3467 = vld [vmem:[#allocation3] sm:$0xff]
        %v3468 = vld [vmem:[#allocation3 + $0x8] sm:$0xff]
        %v3469 = vld [vmem:[#allocation3 + $0x10] sm:$0xff]
        %v3470 = vld [vmem:[#allocation3 + $0x18] sm:$0xff]
        %v3471 = vld [vmem:[#allocation3 + $0x20] sm:$0xff]
        %v3472 = vld [vmem:[#allocation3 + $0x28] sm:$0xff]
        %v3473 = vld [vmem:[#allocation3 + $0x30] sm:$0xff]
        %v3474 = vld [vmem:[#allocation3 + $0x38] sm:$0xff]
        %v3475 = vld [vmem:[#allocation3 + $0x40] sm:$0xff]
        %v3476 = vld [vmem:[#allocation3 + $0x48] sm:$0xff]
        %v3477 = vld [vmem:[#allocation3 + $0x50] sm:$0xff]
        %v3478 = vld [vmem:[#allocation3 + $0x58] sm:$0xff]
        %v3479 = vld [vmem:[#allocation3 + $0x60] sm:$0xff]
        %v3480 = vld [vmem:[#allocation3 + $0x68] sm:$0xff]
        %v3481 = vld [vmem:[#allocation3 + $0x70] sm:$0xff]
        %v3482 = vld [vmem:[#allocation3 + $0x78] sm:$0xff]
        %v3484 = vsel %vm2404, %v3467, 0
        %v3487 = vsel %vm2404, %v3468, 0
        %v3490 = vsel %vm2404, %v3469, 0
        %v3493 = vsel %vm2404, %v3470, 0
        %v3496 = vsel %vm2404, %v3471, 0
        %v3499 = vsel %vm2404, %v3472, 0
        %v3502 = vsel %vm2404, %v3473, 0
        %v3505 = vsel %vm2404, %v3474, 0
        %v3508 = vsel %vm2404, %v3475, 0
        %v3511 = vsel %vm2404, %v3476, 0
        %v3514 = vsel %vm2404, %v3477, 0
        %v3517 = vsel %vm2404, %v3478, 0
        %v3520 = vsel %vm2404, %v3479, 0
        %v3523 = vsel %vm2404, %v3480, 0
        %v3526 = vsel %vm2404, %v3481, 0
        %v3529 = vsel %vm2404, %v3482, 0
        %3531 = vmatprep.subr.bf16.mxu0 0
        %3532 = vmatpush1.bf16.msra.mxu0 %v2392
        %3533 = vmatprep.subr.bf16.mxu0 0
        %3534 = vmatpush1.bf16.msra.mxu0 %v2393
        %3535 = vmatprep.subr.bf16.mxu0 0
        %3536 = vmatpush1.bf16.msra.mxu0 %v2394
        %3537 = vmatprep.subr.bf16.mxu0 0
        %3538 = vmatpush1.bf16.msra.mxu0 %v2395
        %3539 = vmatprep.subr.bf16.mxu0 0
        %3540 = vmatpush1.bf16.msra.mxu0 %v2396
        %3541 = vmatprep.subr.bf16.mxu0 0
        %3542 = vmatpush1.bf16.msra.mxu0 %v2397
        %3543 = vmatprep.subr.bf16.mxu0 0
        %3544 = vmatpush1.bf16.msra.mxu0 0
        %3545 = vmatprep.subr.bf16.mxu0 0
        %3546 = vmatpush1.bf16.msra.mxu0 0
        %3547 = vmatprep.subr.bf16.mxu0 0
        %3548 = vmatpush1.bf16.msra.mxu0 0
        %3549 = vmatprep.subr.bf16.mxu0 0
        %3550 = vmatpush1.bf16.msra.mxu0 0
        %3551 = vmatprep.subr.bf16.mxu0 0
        %3552 = vmatpush1.bf16.msra.mxu0 0
        %3553 = vmatprep.subr.bf16.mxu0 0
        %3554 = vmatpush1.bf16.msra.mxu0 0
        %3555 = vmatprep.subr.bf16.mxu0 0
        %3556 = vmatpush1.bf16.msra.mxu0 0
        %3557 = vmatprep.subr.bf16.mxu0 0
        %3558 = vmatpush1.bf16.msra.mxu0 0
        %3559 = vmatprep.subr.bf16.mxu0 0
        %3560 = vmatpush1.bf16.msra.mxu0 0
        %3561 = vmatprep.subr.bf16.mxu0 0
        %3562 = vmatpush1.bf16.msra.mxu0 0
        %3563 = vmatprep.mubr.bf16.mxu0 0
        %3564 = vmatmul.mubr.bf16.gmra.mrb[0].mxu0 %v3484
        %v3565 = vpop.f32.mrb[0].mxu0
        %v3566 = vadd.f32 %v2366, %v3565
        %v3567 = vpop.f32.mrb[0].mxu0
        %v3568 = vpop.f32.mrb[0].mxu0
        %v3569 = vadd.f32 %v2366, %v3568
        %v3570 = vpop.f32.mrb[0].mxu0
        %3571 = vmatprep.mubr.bf16.mxu0 0
        %3572 = vmatmul.mubr.bf16.gmra.mrb[0].mxu0 %v3487
        %v3573 = vpop.f32.mrb[0].mxu0
        %v3574 = vadd.f32 %v2366, %v3573
        %v3575 = vpop.f32.mrb[0].mxu0
        %v3576 = vpop.f32.mrb[0].mxu0
        %v3577 = vadd.f32 %v2366, %v3576
        %v3578 = vpop.f32.mrb[0].mxu0
        %3579 = vmatprep.mubr.bf16.mxu0 0
        %3580 = vmatmul.mubr.bf16.gmra.mrb[0].mxu0 %v3490
        %v3581 = vpop.f32.mrb[0].mxu0
        %v3582 = vadd.f32 %v2366, %v3581
        %v3583 = vpop.f32.mrb[0].mxu0
        %v3584 = vpop.f32.mrb[0].mxu0
        %v3585 = vadd.f32 %v2366, %v3584
        %v3586 = vpop.f32.mrb[0].mxu0
        %3587 = vmatprep.mubr.bf16.mxu0 0
        %3588 = vmatmul.mubr.bf16.gmra.mrb[0].mxu0 %v3493
        %v3589 = vpop.f32.mrb[0].mxu0
        %v3590 = vadd.f32 %v2366, %v3589
        %v3591 = vpop.f32.mrb[0].mxu0
        %v3592 = vpop.f32.mrb[0].mxu0
        %v3593 = vadd.f32 %v2366, %v3592
        %v3594 = vpop.f32.mrb[0].mxu0
        %3595 = vmatprep.mubr.bf16.mxu0 0
        %3596 = vmatmul.mubr.bf16.gmra.mrb[0].mxu0 %v3496
        %v3597 = vpop.f32.mrb[0].mxu0
        %v3598 = vadd.f32 %v2366, %v3597
        %v3599 = vpop.f32.mrb[0].mxu0
        %v3600 = vpop.f32.mrb[0].mxu0
        %v3601 = vadd.f32 %v2366, %v3600
        %v3602 = vpop.f32.mrb[0].mxu0
        %3603 = vmatprep.mubr.bf16.mxu0 0
        %3604 = vmatmul.mubr.bf16.gmra.mrb[0].mxu0 %v3499
        %v3605 = vpop.f32.mrb[0].mxu0
        %v3606 = vadd.f32 %v2366, %v3605
        %v3607 = vpop.f32.mrb[0].mxu0
        %v3608 = vpop.f32.mrb[0].mxu0
        %v3609 = vadd.f32 %v2366, %v3608
        %v3610 = vpop.f32.mrb[0].mxu0
        %3611 = vmatprep.mubr.bf16.mxu0 0
        %3612 = vmatmul.mubr.bf16.gmra.mrb[0].mxu0 %v3502
        %v3613 = vpop.f32.mrb[0].mxu0
        %v3614 = vadd.f32 %v2366, %v3613
        %v3615 = vpop.f32.mrb[0].mxu0
        %v3616 = vpop.f32.mrb[0].mxu0
        %v3617 = vadd.f32 %v2366, %v3616
        %v3618 = vpop.f32.mrb[0].mxu0
        %3619 = vmatprep.mubr.bf16.mxu0 0
        %3620 = vmatmul.mubr.bf16.gmra.mrb[0].mxu0 %v3505
        %v3621 = vpop.f32.mrb[0].mxu0
        %v3622 = vadd.f32 %v2366, %v3621
        %v3623 = vpop.f32.mrb[0].mxu0
        %v3624 = vpop.f32.mrb[0].mxu0
        %v3625 = vadd.f32 %v2366, %v3624
        %v3626 = vpop.f32.mrb[0].mxu0
        %3627 = vmatprep.mubr.bf16.mxu0 0
        %3628 = vmatmul.mubr.bf16.gmra.mrb[0].mxu0 %v3508
        %v3629 = vpop.f32.mrb[0].mxu0
        %v3630 = vadd.f32 %v2366, %v3629
        %v3631 = vpop.f32.mrb[0].mxu0
        %v3632 = vpop.f32.mrb[0].mxu0
        %v3633 = vadd.f32 %v2366, %v3632
        %v3634 = vpop.f32.mrb[0].mxu0
        %3635 = vmatprep.mubr.bf16.mxu0 0
        %3636 = vmatmul.mubr.bf16.gmra.mrb[0].mxu0 %v3511
        %v3637 = vpop.f32.mrb[0].mxu0
        %v3638 = vadd.f32 %v2366, %v3637
        %v3639 = vpop.f32.mrb[0].mxu0
        %v3640 = vpop.f32.mrb[0].mxu0
        %v3641 = vadd.f32 %v2366, %v3640
        %v3642 = vpop.f32.mrb[0].mxu0
        %3643 = vmatprep.mubr.bf16.mxu0 0
        %3644 = vmatmul.mubr.bf16.gmra.mrb[0].mxu0 %v3514
        %v3645 = vpop.f32.mrb[0].mxu0
        %v3646 = vadd.f32 %v2366, %v3645
        %v3647 = vpop.f32.mrb[0].mxu0
        %v3648 = vpop.f32.mrb[0].mxu0
        %v3649 = vadd.f32 %v2366, %v3648
        %v3650 = vpop.f32.mrb[0].mxu0
        %3651 = vmatprep.mubr.bf16.mxu0 0
        %3652 = vmatmul.mubr.bf16.gmra.mrb[0].mxu0 %v3517
        %v3653 = vpop.f32.mrb[0].mxu0
        %v3654 = vadd.f32 %v2366, %v3653
        %v3655 = vpop.f32.mrb[0].mxu0
        %v3656 = vpop.f32.mrb[0].mxu0
        %v3657 = vadd.f32 %v2366, %v3656
        %v3658 = vpop.f32.mrb[0].mxu0
        %3659 = vmatprep.mubr.bf16.mxu0 0
        %3660 = vmatmul.mubr.bf16.gmra.mrb[0].mxu0 %v3520
        %v3661 = vpop.f32.mrb[0].mxu0
        %v3662 = vadd.f32 %v2366, %v3661
        %v3663 = vpop.f32.mrb[0].mxu0
        %v3664 = vpop.f32.mrb[0].mxu0
        %v3665 = vadd.f32 %v2366, %v3664
        %v3666 = vpop.f32.mrb[0].mxu0
        %3667 = vmatprep.mubr.bf16.mxu0 0
        %3668 = vmatmul.mubr.bf16.gmra.mrb[0].mxu0 %v3523
        %v3669 = vpop.f32.mrb[0].mxu0
        %v3670 = vadd.f32 %v2366, %v3669
        %v3671 = vpop.f32.mrb[0].mxu0
        %v3672 = vpop.f32.mrb[0].mxu0
        %v3673 = vadd.f32 %v2366, %v3672
        %v3674 = vpop.f32.mrb[0].mxu0
        %3675 = vmatprep.mubr.bf16.mxu0 0
        %3676 = vmatmul.mubr.bf16.gmra.mrb[0].mxu0 %v3526
        %v3677 = vpop.f32.mrb[0].mxu0
        %v3678 = vadd.f32 %v2366, %v3677
        %v3679 = vpop.f32.mrb[0].mxu0
        %v3680 = vpop.f32.mrb[0].mxu0
        %v3681 = vadd.f32 %v2366, %v3680
        %v3682 = vpop.f32.mrb[0].mxu0
        %3683 = vmatprep.mubr.bf16.mxu0 0
        %3684 = vmatmul.mubr.bf16.gmra.mrb[0].mxu0 %v3529
        %v3685 = vpop.f32.mrb[0].mxu0
        %v3686 = vadd.f32 %v2366, %v3685
        %v3687 = vpop.f32.mrb[0].mxu0
        %v3688 = vpop.f32.mrb[0].mxu0
        %v3689 = vadd.f32 %v2366, %v3688
        %v3690 = vpop.f32.mrb[0].mxu0
        %3691 = vdwg.mxu0
        %v3692 = vmax.f32 %v3566, 0.0
        %v3693 = vmax.f32 %v3569, 0.0
        %v3694 = vmax.f32 %v3574, 0.0
        %v3695 = vmax.f32 %v3577, 0.0
        %v3696 = vmax.f32 %v3582, 0.0
        %v3697 = vmax.f32 %v3585, 0.0
        %v3698 = vmax.f32 %v3590, 0.0
        %v3699 = vmax.f32 %v3593, 0.0
        %v3700 = vmax.f32 %v3598, 0.0
        %v3701 = vmax.f32 %v3601, 0.0
        %v3702 = vmax.f32 %v3606, 0.0
        %v3703 = vmax.f32 %v3609, 0.0
        %v3704 = vmax.f32 %v3614, 0.0
        %v3705 = vmax.f32 %v3617, 0.0
        %v3706 = vmax.f32 %v3622, 0.0
        %v3707 = vmax.f32 %v3625, 0.0
        %v3708 = vmax.f32 %v3630, 0.0
        %v3709 = vmax.f32 %v3633, 0.0
        %v3710 = vmax.f32 %v3638, 0.0
        %v3711 = vmax.f32 %v3641, 0.0
        %v3712 = vmax.f32 %v3646, 0.0
        %v3713 = vmax.f32 %v3649, 0.0
        %v3714 = vmax.f32 %v3654, 0.0
        %v3715 = vmax.f32 %v3657, 0.0
        %v3716 = vmax.f32 %v3662, 0.0
        %v3717 = vmax.f32 %v3665, 0.0
        %v3718 = vmax.f32 %v3670, 0.0
        %v3719 = vmax.f32 %v3673, 0.0
        %v3720 = vmax.f32 %v3678, 0.0
        %v3721 = vmax.f32 %v3681, 0.0
        %v3722 = vmax.f32 %v3686, 0.0
        %v3723 = vmax.f32 %v3689, 0.0
        %s3724 = scalar_lea.vmem %s271, 256 [#allocation4]
        %3725 = vst [vmem:[%s3724] sm:$0xff] %v3692
        %3726 = vst [vmem:[%s3724 + $0x8] sm:$0xff] %v3693
        %3727 = vst [vmem:[%s3724 + $0x10] sm:$0xff] %v3694
        %3728 = vst [vmem:[%s3724 + $0x18] sm:$0xff] %v3695
        %3729 = vst [vmem:[%s3724 + $0x20] sm:$0xff] %v3696
        %3730 = vst [vmem:[%s3724 + $0x28] sm:$0xff] %v3697
        %3731 = vst [vmem:[%s3724 + $0x30] sm:$0xff] %v3698
        %3732 = vst [vmem:[%s3724 + $0x38] sm:$0xff] %v3699
        %3733 = vst [vmem:[%s3724 + $0x40] sm:$0xff] %v3700
        %3734 = vst [vmem:[%s3724 + $0x48] sm:$0xff] %v3701
        %3735 = vst [vmem:[%s3724 + $0x50] sm:$0xff] %v3702
        %3736 = vst [vmem:[%s3724 + $0x58] sm:$0xff] %v3703
        %3737 = vst [vmem:[%s3724 + $0x60] sm:$0xff] %v3704
        %3738 = vst [vmem:[%s3724 + $0x68] sm:$0xff] %v3705
        %3739 = vst [vmem:[%s3724 + $0x70] sm:$0xff] %v3706
        %3740 = vst [vmem:[%s3724 + $0x78] sm:$0xff] %v3707
        %3741 = vst [vmem:[%s3724 + $0x80] sm:$0xff] %v3708
        %3742 = vst [vmem:[%s3724 + $0x88] sm:$0xff] %v3709
        %3743 = vst [vmem:[%s3724 + $0x90] sm:$0xff] %v3710
        %3744 = vst [vmem:[%s3724 + $0x98] sm:$0xff] %v3711
        %3745 = vst [vmem:[%s3724 + $0xa0] sm:$0xff] %v3712
        %3746 = vst [vmem:[%s3724 + $0xa8] sm:$0xff] %v3713
        %3747 = vst [vmem:[%s3724 + $0xb0] sm:$0xff] %v3714
        %3748 = vst [vmem:[%s3724 + $0xb8] sm:$0xff] %v3715
        %3749 = vst [vmem:[%s3724 + $0xc0] sm:$0xff] %v3716
        %3750 = vst [vmem:[%s3724 + $0xc8] sm:$0xff] %v3717
        %3751 = vst [vmem:[%s3724 + $0xd0] sm:$0xff] %v3718
        %3752 = vst [vmem:[%s3724 + $0xd8] sm:$0xff] %v3719
        %3753 = vst [vmem:[%s3724 + $0xe0] sm:$0xff] %v3720
        %3754 = vst [vmem:[%s3724 + $0xe8] sm:$0xff] %v3721
        %3755 = vst [vmem:[%s3724 + $0xf0] sm:$0xff] %v3722
        %3756 = vst [vmem:[%s3724 + $0xf8] sm:$0xff] %v3723
        %v3757 = vld [vmem:[%s1205] sm:$0xf]
        %v3758 = vld [vmem:[%s1205 + $0x4] sm:$0xf]
        %v3759 = vld [vmem:[%s1205 + $0xc] sm:$0xf]
        %v3760 = vld [vmem:[%s1205 + $0x10] sm:$0xf]
        %v3761 = vld [vmem:[%s1205 + $0x18] sm:$0xf]
        %v3762 = vld [vmem:[%s1205 + $0x1c] sm:$0xf]
        %v3763 = vld [vmem:[%s1205 + $0x24] sm:$0xf]
        %v3764 = vld [vmem:[%s1205 + $0x28] sm:$0xf]
        %v3765 = vld [vmem:[%s1205 + $0x30] sm:$0xf]
        %v3766 = vld [vmem:[%s1205 + $0x34] sm:$0xf]
        %v3767 = vld [vmem:[%s1205 + $0x3c] sm:$0xf]
        %v3768 = vld [vmem:[%s1205 + $0x40] sm:$0xf]
        %v3769 = vld [vmem:[%s1205 + $0x48] sm:$0xf]
        %v3770 = vld [vmem:[%s1205 + $0x4c] sm:$0xf]
        %v3771 = vld [vmem:[%s1205 + $0x54] sm:$0xf]
        %v3772 = vld [vmem:[%s1205 + $0x58] sm:$0xf]
        %v3773 = vld [vmem:[%s1205 + $0x60] sm:$0xf]
        %v3774 = vld [vmem:[%s1205 + $0x64] sm:$0xf]
        %v3775 = vld [vmem:[%s1205 + $0x6c] sm:$0xf]
        %v3776 = vld [vmem:[%s1205 + $0x70] sm:$0xf]
        %v3777 = vld [vmem:[%s1205 + $0x78] sm:$0xf]
        %v3778 = vld [vmem:[%s1205 + $0x7c] sm:$0xf]
        %v3779 = vld [vmem:[%s1205 + $0x84] sm:$0xf]
        %v3780 = vld [vmem:[%s1205 + $0x88] sm:$0xf]
        %v3781 = vld [vmem:[%s1205 + $0x90] sm:$0xf]
        %v3782 = vld [vmem:[%s1205 + $0x94] sm:$0xf]
        %v3783 = vld [vmem:[%s1205 + $0x9c] sm:$0xf]
        %v3784 = vld [vmem:[%s1205 + $0xa0] sm:$0xf]
        %v3785 = vld [vmem:[%s1205 + $0xa8] sm:$0xf]
        %v3786 = vld [vmem:[%s1205 + $0xac] sm:$0xf]
        %v3787 = vld [vmem:[%s1205 + $0xb4] sm:$0xf]
        %v3788 = vld [vmem:[%s1205 + $0xb8] sm:$0xf]
        %s3789 = scalar_lea.vmem %s3, 128
        %v3790 = vld [vmem:[%s3789] sm:$0xf]
        %v3791 = vld [vmem:[%s3789 + $0x4] sm:$0xf]
        %v3792 = vld [vmem:[%s3789 + $0x8] sm:$0xf]
        %v3793 = vld [vmem:[%s3789 + $0xc] sm:$0xf]
        %v3794 = vld [vmem:[%s3789 + $0x10] sm:$0xf]
        %v3795 = vld [vmem:[%s3789 + $0x14] sm:$0xf]
        %v3796 = vld [vmem:[%s3789 + $0x18] sm:$0xf]
        %v3797 = vld [vmem:[%s3789 + $0x1c] sm:$0xf]
        %v3798 = vld [vmem:[%s3789 + $0x20] sm:$0xf]
        %v3799 = vld [vmem:[%s3789 + $0x24] sm:$0xf]
        %v3800 = vld [vmem:[%s3789 + $0x28] sm:$0xf]
        %v3801 = vld [vmem:[%s3789 + $0x2c] sm:$0xf]
        %v3802 = vld [vmem:[%s3789 + $0x30] sm:$0xf]
        %v3803 = vld [vmem:[%s3789 + $0x34] sm:$0xf]
        %v3804 = vld [vmem:[%s3789 + $0x38] sm:$0xf]
        %v3805 = vld [vmem:[%s3789 + $0x3c] sm:$0xf]
        %v3838 = vunpack.c.l.b16 %v3757
        %v3839 = vunpack.c.l.b16 %v3758
        %v3840 = vunpack.c.l.b16 %v3759
        %v3841 = vunpack.c.l.b16 %v3760
        %v3842 = vunpack.c.l.b16 %v3761
        %v3843 = vunpack.c.l.b16 %v3762
        %v3844 = vunpack.c.l.b16 %v3763
        %v3845 = vunpack.c.l.b16 %v3764
        %v3846 = vunpack.c.l.b16 %v3765
        %v3847 = vunpack.c.l.b16 %v3766
        %v3848 = vunpack.c.l.b16 %v3767
        %v3849 = vunpack.c.l.b16 %v3768
        %v3850 = vunpack.c.l.b16 %v3769
        %v3851 = vunpack.c.l.b16 %v3770
        %v3852 = vunpack.c.l.b16 %v3771
        %v3853 = vunpack.c.l.b16 %v3772
        %v3854 = vunpack.c.l.b16 %v3773
        %v3855 = vunpack.c.l.b16 %v3774
        %v3856 = vunpack.c.l.b16 %v3775
        %v3857 = vunpack.c.l.b16 %v3776
        %v3858 = vunpack.c.l.b16 %v3777
        %v3859 = vunpack.c.l.b16 %v3778
        %v3860 = vunpack.c.l.b16 %v3779
        %v3861 = vunpack.c.l.b16 %v3780
        %v3862 = vunpack.c.l.b16 %v3781
        %v3863 = vunpack.c.l.b16 %v3782
        %v3864 = vunpack.c.l.b16 %v3783
        %v3865 = vunpack.c.l.b16 %v3784
        %v3866 = vunpack.c.l.b16 %v3785
        %v3867 = vunpack.c.l.b16 %v3786
        %v3868 = vunpack.c.l.b16 %v3787
        %v3869 = vunpack.c.l.b16 %v3788
        %v3870 = vpack.c.b16 %v3839, %v3838
        %v3871 = vpack.c.b16 %v3841, %v3840
        %v3872 = vpack.c.b16 %v3843, %v3842
        %v3873 = vpack.c.b16 %v3845, %v3844
        %v3874 = vpack.c.b16 %v3847, %v3846
        %v3875 = vpack.c.b16 %v3849, %v3848
        %v3876 = vpack.c.b16 %v3851, %v3850
        %v3877 = vpack.c.b16 %v3853, %v3852
        %v3878 = vpack.c.b16 %v3855, %v3854
        %v3879 = vpack.c.b16 %v3857, %v3856
        %v3880 = vpack.c.b16 %v3859, %v3858
        %v3881 = vpack.c.b16 %v3861, %v3860
        %v3882 = vpack.c.b16 %v3863, %v3862
        %v3883 = vpack.c.b16 %v3865, %v3864
        %v3884 = vpack.c.b16 %v3867, %v3866
        %v3885 = vpack.c.b16 %v3869, %v3868
        %v3918 = vunpack.c.l.b16 %v3790
        %v3919 = vunpack.c.l.b16 %v3791
        %v3920 = vunpack.c.l.b16 %v3792
        %v3921 = vunpack.c.l.b16 %v3793
        %v3922 = vunpack.c.l.b16 %v3794
        %v3923 = vunpack.c.l.b16 %v3795
        %v3924 = vunpack.c.l.b16 %v3796
        %v3925 = vunpack.c.l.b16 %v3797
        %v3926 = vunpack.c.l.b16 %v3798
        %v3927 = vunpack.c.l.b16 %v3799
        %v3928 = vunpack.c.l.b16 %v3800
        %v3929 = vunpack.c.l.b16 %v3801
        %v3930 = vunpack.c.l.b16 %v3802
        %v3931 = vunpack.c.l.b16 %v3803
        %v3932 = vunpack.c.l.b16 %v3804
        %v3933 = vunpack.c.l.b16 %v3805
        %v3934 = vpack.c.b16 %v3919, %v3918
        %v3935 = vpack.c.b16 %v3921, %v3920
        %v3936 = vpack.c.b16 %v3923, %v3922
        %v3937 = vpack.c.b16 %v3925, %v3924
        %v3938 = vpack.c.b16 %v3927, %v3926
        %v3939 = vpack.c.b16 %v3929, %v3928
        %v3940 = vpack.c.b16 %v3931, %v3930
        %v3941 = vpack.c.b16 %v3933, %v3932
        %3950 = vmatprep.subr.bf16.mxu0 0
        %3951 = vmatpush1.bf16.msra.mxu0 %v3934
        %3952 = vmatprep.subr.bf16.mxu0 0
        %3953 = vmatpush1.bf16.msra.mxu0 %v3935
        %3954 = vmatprep.subr.bf16.mxu0 0
        %3955 = vmatpush1.bf16.msra.mxu0 %v3936
        %3956 = vmatprep.subr.bf16.mxu0 0
        %3957 = vmatpush1.bf16.msra.mxu0 %v3937
        %3958 = vmatprep.subr.bf16.mxu0 0
        %3959 = vmatpush1.bf16.msra.mxu0 %v3938
        %3960 = vmatprep.subr.bf16.mxu0 0
        %3961 = vmatpush1.bf16.msra.mxu0 %v3939
        %3962 = vmatprep.subr.bf16.mxu0 0
        %3963 = vmatpush1.bf16.msra.mxu0 %v3940
        %3964 = vmatprep.subr.bf16.mxu0 0
        %3965 = vmatpush1.bf16.msra.mxu0 %v3941
        %3966 = vmatprep.subr.bf16.mxu0 0
        %3967 = vmatpush1.bf16.msra.mxu0 0
        %3968 = vmatprep.subr.bf16.mxu0 0
        %3969 = vmatpush1.bf16.msra.mxu0 0
        %3970 = vmatprep.subr.bf16.mxu0 0
        %3971 = vmatpush1.bf16.msra.mxu0 0
        %3972 = vmatprep.subr.bf16.mxu0 0
        %3973 = vmatpush1.bf16.msra.mxu0 0
        %3974 = vmatprep.subr.bf16.mxu0 0
        %3975 = vmatpush1.bf16.msra.mxu0 0
        %3976 = vmatprep.subr.bf16.mxu0 0
        %3977 = vmatpush1.bf16.msra.mxu0 0
        %3978 = vmatprep.subr.bf16.mxu0 0
        %3979 = vmatpush1.bf16.msra.mxu0 0
        %3980 = vmatprep.subr.bf16.mxu0 0
        %3981 = vmatpush1.bf16.msra.mxu0 0
        %3982 = vmatprep.mubr.bf16.mxu0 0
        %3983 = vmatmul.mubr.bf16.gmra.mrb[0].mxu0 %v3870
        %v3984 = vpop.f32.mrb[0].mxu0
        %v3985 = vadd.f32 %v1974, %v3984
        %v3986 = vpop.f32.mrb[0].mxu0
        %v3987 = vpop.f32.mrb[0].mxu0
        %v3988 = vadd.f32 %v1974, %v3987
        %v3989 = vpop.f32.mrb[0].mxu0
        %3990 = vmatprep.mubr.bf16.mxu0 0
        %3991 = vmatmul.mubr.bf16.gmra.mrb[0].mxu0 %v3871
        %v3992 = vpop.f32.mrb[0].mxu0
        %v3993 = vadd.f32 %v1974, %v3992
        %v3994 = vpop.f32.mrb[0].mxu0
        %v3995 = vpop.f32.mrb[0].mxu0
        %v3996 = vadd.f32 %v1974, %v3995
        %v3997 = vpop.f32.mrb[0].mxu0
        %3998 = vmatprep.mubr.bf16.mxu0 0
        %3999 = vmatmul.mubr.bf16.gmra.mrb[0].mxu0 %v3872
        %v4000 = vpop.f32.mrb[0].mxu0
        %v4001 = vadd.f32 %v1974, %v4000
        %v4002 = vpop.f32.mrb[0].mxu0
        %v4003 = vpop.f32.mrb[0].mxu0
        %v4004 = vadd.f32 %v1974, %v4003
        %v4005 = vpop.f32.mrb[0].mxu0
        %4006 = vmatprep.mubr.bf16.mxu0 0
        %4007 = vmatmul.mubr.bf16.gmra.mrb[0].mxu0 %v3873
        %v4008 = vpop.f32.mrb[0].mxu0
        %v4009 = vadd.f32 %v1974, %v4008
        %v4010 = vpop.f32.mrb[0].mxu0
        %v4011 = vpop.f32.mrb[0].mxu0
        %v4012 = vadd.f32 %v1974, %v4011
        %v4013 = vpop.f32.mrb[0].mxu0
        %4014 = vmatprep.mubr.bf16.mxu0 0
        %4015 = vmatmul.mubr.bf16.gmra.mrb[0].mxu0 %v3874
        %v4016 = vpop.f32.mrb[0].mxu0
        %v4017 = vadd.f32 %v1974, %v4016
        %v4018 = vpop.f32.mrb[0].mxu0
        %v4019 = vpop.f32.mrb[0].mxu0
        %v4020 = vadd.f32 %v1974, %v4019
        %v4021 = vpop.f32.mrb[0].mxu0
        %4022 = vmatprep.mubr.bf16.mxu0 0
        %4023 = vmatmul.mubr.bf16.gmra.mrb[0].mxu0 %v3875
        %v4024 = vpop.f32.mrb[0].mxu0
        %v4025 = vadd.f32 %v1974, %v4024
        %v4026 = vpop.f32.mrb[0].mxu0
        %v4027 = vpop.f32.mrb[0].mxu0
        %v4028 = vadd.f32 %v1974, %v4027
        %v4029 = vpop.f32.mrb[0].mxu0
        %4030 = vmatprep.mubr.bf16.mxu0 0
        %4031 = vmatmul.mubr.bf16.gmra.mrb[0].mxu0 %v3876
        %v4032 = vpop.f32.mrb[0].mxu0
        %v4033 = vadd.f32 %v1974, %v4032
        %v4034 = vpop.f32.mrb[0].mxu0
        %v4035 = vpop.f32.mrb[0].mxu0
        %v4036 = vadd.f32 %v1974, %v4035
        %v4037 = vpop.f32.mrb[0].mxu0
        %4038 = vmatprep.mubr.bf16.mxu0 0
        %4039 = vmatmul.mubr.bf16.gmra.mrb[0].mxu0 %v3877
        %v4040 = vpop.f32.mrb[0].mxu0
        %v4041 = vadd.f32 %v1974, %v4040
        %v4042 = vpop.f32.mrb[0].mxu0
        %v4043 = vpop.f32.mrb[0].mxu0
        %v4044 = vadd.f32 %v1974, %v4043
        %v4045 = vpop.f32.mrb[0].mxu0
        %4046 = vmatprep.mubr.bf16.mxu0 0
        %4047 = vmatmul.mubr.bf16.gmra.mrb[0].mxu0 %v3878
        %v4048 = vpop.f32.mrb[0].mxu0
        %v4049 = vadd.f32 %v1974, %v4048
        %v4050 = vpop.f32.mrb[0].mxu0
        %v4051 = vpop.f32.mrb[0].mxu0
        %v4052 = vadd.f32 %v1974, %v4051
        %v4053 = vpop.f32.mrb[0].mxu0
        %4054 = vmatprep.mubr.bf16.mxu0 0
        %4055 = vmatmul.mubr.bf16.gmra.mrb[0].mxu0 %v3879
        %v4056 = vpop.f32.mrb[0].mxu0
        %v4057 = vadd.f32 %v1974, %v4056
        %v4058 = vpop.f32.mrb[0].mxu0
        %v4059 = vpop.f32.mrb[0].mxu0
        %v4060 = vadd.f32 %v1974, %v4059
        %v4061 = vpop.f32.mrb[0].mxu0
        %4062 = vmatprep.mubr.bf16.mxu0 0
        %4063 = vmatmul.mubr.bf16.gmra.mrb[0].mxu0 %v3880
        %v4064 = vpop.f32.mrb[0].mxu0
        %v4065 = vadd.f32 %v1974, %v4064
        %v4066 = vpop.f32.mrb[0].mxu0
        %v4067 = vpop.f32.mrb[0].mxu0
        %v4068 = vadd.f32 %v1974, %v4067
        %v4069 = vpop.f32.mrb[0].mxu0
        %4070 = vmatprep.mubr.bf16.mxu0 0
        %4071 = vmatmul.mubr.bf16.gmra.mrb[0].mxu0 %v3881
        %v4072 = vpop.f32.mrb[0].mxu0
        %v4073 = vadd.f32 %v1974, %v4072
        %v4074 = vpop.f32.mrb[0].mxu0
        %v4075 = vpop.f32.mrb[0].mxu0
        %v4076 = vadd.f32 %v1974, %v4075
        %v4077 = vpop.f32.mrb[0].mxu0
        %4078 = vmatprep.mubr.bf16.mxu0 0
        %4079 = vmatmul.mubr.bf16.gmra.mrb[0].mxu0 %v3882
        %v4080 = vpop.f32.mrb[0].mxu0
        %v4081 = vadd.f32 %v1974, %v4080
        %v4082 = vpop.f32.mrb[0].mxu0
        %v4083 = vpop.f32.mrb[0].mxu0
        %v4084 = vadd.f32 %v1974, %v4083
        %v4085 = vpop.f32.mrb[0].mxu0
        %4086 = vmatprep.mubr.bf16.mxu0 0
        %4087 = vmatmul.mubr.bf16.gmra.mrb[0].mxu0 %v3883
        %v4088 = vpop.f32.mrb[0].mxu0
        %v4089 = vadd.f32 %v1974, %v4088
        %v4090 = vpop.f32.mrb[0].mxu0
        %v4091 = vpop.f32.mrb[0].mxu0
        %v4092 = vadd.f32 %v1974, %v4091
        %v4093 = vpop.f32.mrb[0].mxu0
        %4094 = vmatprep.mubr.bf16.mxu0 0
        %4095 = vmatmul.mubr.bf16.gmra.mrb[0].mxu0 %v3884
        %v4096 = vpop.f32.mrb[0].mxu0
        %v4097 = vadd.f32 %v1974, %v4096
        %v4098 = vpop.f32.mrb[0].mxu0
        %v4099 = vpop.f32.mrb[0].mxu0
        %v4100 = vadd.f32 %v1974, %v4099
        %v4101 = vpop.f32.mrb[0].mxu0
        %4102 = vmatprep.mubr.bf16.mxu0 0
        %4103 = vmatmul.mubr.bf16.gmra.mrb[0].mxu0 %v3885
        %v4104 = vpop.f32.mrb[0].mxu0
        %v4105 = vadd.f32 %v1974, %v4104
        %v4106 = vpop.f32.mrb[0].mxu0
        %v4107 = vpop.f32.mrb[0].mxu0
        %v4108 = vadd.f32 %v1974, %v4107
        %v4109 = vpop.f32.mrb[0].mxu0
        %4110 = vdwg.mxu0
        %v4111 = vmax.f32 %v3985, 0.0
        %v4112 = vmax.f32 %v3988, 0.0
        %v4113 = vmax.f32 %v3993, 0.0
        %v4114 = vmax.f32 %v3996, 0.0
        %v4115 = vmax.f32 %v4001, 0.0
        %v4116 = vmax.f32 %v4004, 0.0
        %v4117 = vmax.f32 %v4009, 0.0
        %v4118 = vmax.f32 %v4012, 0.0
        %v4119 = vmax.f32 %v4017, 0.0
        %v4120 = vmax.f32 %v4020, 0.0
        %v4121 = vmax.f32 %v4025, 0.0
        %v4122 = vmax.f32 %v4028, 0.0
        %v4123 = vmax.f32 %v4033, 0.0
        %v4124 = vmax.f32 %v4036, 0.0
        %v4125 = vmax.f32 %v4041, 0.0
        %v4126 = vmax.f32 %v4044, 0.0
        %v4127 = vmax.f32 %v4049, 0.0
        %v4128 = vmax.f32 %v4052, 0.0
        %v4129 = vmax.f32 %v4057, 0.0
        %v4130 = vmax.f32 %v4060, 0.0
        %v4131 = vmax.f32 %v4065, 0.0
        %v4132 = vmax.f32 %v4068, 0.0
        %v4133 = vmax.f32 %v4073, 0.0
        %v4134 = vmax.f32 %v4076, 0.0
        %v4135 = vmax.f32 %v4081, 0.0
        %v4136 = vmax.f32 %v4084, 0.0
        %v4137 = vmax.f32 %v4089, 0.0
        %v4138 = vmax.f32 %v4092, 0.0
        %v4139 = vmax.f32 %v4097, 0.0
        %v4140 = vmax.f32 %v4100, 0.0
        %v4141 = vmax.f32 %v4105, 0.0
        %v4142 = vmax.f32 %v4108, 0.0
        %v4143 = vpack.c.bf16 %v4112, %v4111
        %v4144 = vpack.c.bf16 %v4114, %v4113
        %v4145 = vpack.c.bf16 %v4116, %v4115
        %v4146 = vpack.c.bf16 %v4118, %v4117
        %v4147 = vpack.c.bf16 %v4120, %v4119
        %v4148 = vpack.c.bf16 %v4122, %v4121
        %v4149 = vpack.c.bf16 %v4124, %v4123
        %v4150 = vpack.c.bf16 %v4126, %v4125
        %v4151 = vpack.c.bf16 %v4128, %v4127
        %v4152 = vpack.c.bf16 %v4130, %v4129
        %v4153 = vpack.c.bf16 %v4132, %v4131
        %v4154 = vpack.c.bf16 %v4134, %v4133
        %v4155 = vpack.c.bf16 %v4136, %v4135
        %v4156 = vpack.c.bf16 %v4138, %v4137
        %v4157 = vpack.c.bf16 %v4140, %v4139
        %v4158 = vpack.c.bf16 %v4142, %v4141
        %4159 = vst.msk [vmem:[#allocation3] sm:$0xff] %vm2329, %v4143
        %4160 = vst.msk [vmem:[#allocation3 + $0x8] sm:$0xff] %vm2329, %v4144
        %4161 = vst.msk [vmem:[#allocation3 + $0x10] sm:$0xff] %vm2329, %v4145
        %4162 = vst.msk [vmem:[#allocation3 + $0x18] sm:$0xff] %vm2329, %v4146
        %4163 = vst.msk [vmem:[#allocation3 + $0x20] sm:$0xff] %vm2329, %v4147
        %4164 = vst.msk [vmem:[#allocation3 + $0x28] sm:$0xff] %vm2329, %v4148
        %4165 = vst.msk [vmem:[#allocation3 + $0x30] sm:$0xff] %vm2329, %v4149
        %4166 = vst.msk [vmem:[#allocation3 + $0x38] sm:$0xff] %vm2329, %v4150
        %4167 = vst.msk [vmem:[#allocation3 + $0x40] sm:$0xff] %vm2329, %v4151
        %4168 = vst.msk [vmem:[#allocation3 + $0x48] sm:$0xff] %vm2329, %v4152
        %4169 = vst.msk [vmem:[#allocation3 + $0x50] sm:$0xff] %vm2329, %v4153
        %4170 = vst.msk [vmem:[#allocation3 + $0x58] sm:$0xff] %vm2329, %v4154
        %4171 = vst.msk [vmem:[#allocation3 + $0x60] sm:$0xff] %vm2329, %v4155
        %4172 = vst.msk [vmem:[#allocation3 + $0x68] sm:$0xff] %vm2329, %v4156
        %4173 = vst.msk [vmem:[#allocation3 + $0x70] sm:$0xff] %vm2329, %v4157
        %4174 = vst.msk [vmem:[#allocation3 + $0x78] sm:$0xff] %vm2329, %v4158
        %v4175 = vld [vmem:[#allocation3] sm:$0xff]
        %v4176 = vld [vmem:[#allocation3 + $0x8] sm:$0xff]
        %v4177 = vld [vmem:[#allocation3 + $0x10] sm:$0xff]
        %v4178 = vld [vmem:[#allocation3 + $0x18] sm:$0xff]
        %v4179 = vld [vmem:[#allocation3 + $0x20] sm:$0xff]
        %v4180 = vld [vmem:[#allocation3 + $0x28] sm:$0xff]
        %v4181 = vld [vmem:[#allocation3 + $0x30] sm:$0xff]
        %v4182 = vld [vmem:[#allocation3 + $0x38] sm:$0xff]
        %v4183 = vld [vmem:[#allocation3 + $0x40] sm:$0xff]
        %v4184 = vld [vmem:[#allocation3 + $0x48] sm:$0xff]
        %v4185 = vld [vmem:[#allocation3 + $0x50] sm:$0xff]
        %v4186 = vld [vmem:[#allocation3 + $0x58] sm:$0xff]
        %v4187 = vld [vmem:[#allocation3 + $0x60] sm:$0xff]
        %v4188 = vld [vmem:[#allocation3 + $0x68] sm:$0xff]
        %v4189 = vld [vmem:[#allocation3 + $0x70] sm:$0xff]
        %v4190 = vld [vmem:[#allocation3 + $0x78] sm:$0xff]
        %v4192 = vsel %vm2404, %v4175, 0
        %v4195 = vsel %vm2404, %v4176, 0
        %v4198 = vsel %vm2404, %v4177, 0
        %v4201 = vsel %vm2404, %v4178, 0
        %v4204 = vsel %vm2404, %v4179, 0
        %v4207 = vsel %vm2404, %v4180, 0
        %v4210 = vsel %vm2404, %v4181, 0
        %v4213 = vsel %vm2404, %v4182, 0
        %v4216 = vsel %vm2404, %v4183, 0
        %v4219 = vsel %vm2404, %v4184, 0
        %v4222 = vsel %vm2404, %v4185, 0
        %v4225 = vsel %vm2404, %v4186, 0
        %v4228 = vsel %vm2404, %v4187, 0
        %v4231 = vsel %vm2404, %v4188, 0
        %v4234 = vsel %vm2404, %v4189, 0
        %v4237 = vsel %vm2404, %v4190, 0
        %4239 = vmatprep.subr.bf16.mxu0 0
        %4240 = vmatpush1.bf16.msra.mxu0 %v2392
        %4241 = vmatprep.subr.bf16.mxu0 0
        %4242 = vmatpush1.bf16.msra.mxu0 %v2393
        %4243 = vmatprep.subr.bf16.mxu0 0
        %4244 = vmatpush1.bf16.msra.mxu0 %v2394
        %4245 = vmatprep.subr.bf16.mxu0 0
        %4246 = vmatpush1.bf16.msra.mxu0 %v2395
        %4247 = vmatprep.subr.bf16.mxu0 0
        %4248 = vmatpush1.bf16.msra.mxu0 %v2396
        %4249 = vmatprep.subr.bf16.mxu0 0
        %4250 = vmatpush1.bf16.msra.mxu0 %v2397
        %4251 = vmatprep.subr.bf16.mxu0 0
        %4252 = vmatpush1.bf16.msra.mxu0 0
        %4253 = vmatprep.subr.bf16.mxu0 0
        %4254 = vmatpush1.bf16.msra.mxu0 0
        %4255 = vmatprep.subr.bf16.mxu0 0
        %4256 = vmatpush1.bf16.msra.mxu0 0
        %4257 = vmatprep.subr.bf16.mxu0 0
        %4258 = vmatpush1.bf16.msra.mxu0 0
        %4259 = vmatprep.subr.bf16.mxu0 0
        %4260 = vmatpush1.bf16.msra.mxu0 0
        %4261 = vmatprep.subr.bf16.mxu0 0
        %4262 = vmatpush1.bf16.msra.mxu0 0
        %4263 = vmatprep.subr.bf16.mxu0 0
        %4264 = vmatpush1.bf16.msra.mxu0 0
        %4265 = vmatprep.subr.bf16.mxu0 0
        %4266 = vmatpush1.bf16.msra.mxu0 0
        %4267 = vmatprep.subr.bf16.mxu0 0
        %4268 = vmatpush1.bf16.msra.mxu0 0
        %4269 = vmatprep.subr.bf16.mxu0 0
        %4270 = vmatpush1.bf16.msra.mxu0 0
        %4271 = vmatprep.mubr.bf16.mxu0 0
        %4272 = vmatmul.mubr.bf16.gmra.mrb[0].mxu0 %v4192
        %v4273 = vpop.f32.mrb[0].mxu0
        %v4274 = vadd.f32 %v2366, %v4273
        %v4275 = vpop.f32.mrb[0].mxu0
        %v4276 = vpop.f32.mrb[0].mxu0
        %v4277 = vadd.f32 %v2366, %v4276
        %v4278 = vpop.f32.mrb[0].mxu0
        %4279 = vmatprep.mubr.bf16.mxu0 0
        %4280 = vmatmul.mubr.bf16.gmra.mrb[0].mxu0 %v4195
        %v4281 = vpop.f32.mrb[0].mxu0
        %v4282 = vadd.f32 %v2366, %v4281
        %v4283 = vpop.f32.mrb[0].mxu0
        %v4284 = vpop.f32.mrb[0].mxu0
        %v4285 = vadd.f32 %v2366, %v4284
        %v4286 = vpop.f32.mrb[0].mxu0
        %4287 = vmatprep.mubr.bf16.mxu0 0
        %4288 = vmatmul.mubr.bf16.gmra.mrb[0].mxu0 %v4198
        %v4289 = vpop.f32.mrb[0].mxu0
        %v4290 = vadd.f32 %v2366, %v4289
        %v4291 = vpop.f32.mrb[0].mxu0
        %v4292 = vpop.f32.mrb[0].mxu0
        %v4293 = vadd.f32 %v2366, %v4292
        %v4294 = vpop.f32.mrb[0].mxu0
        %4295 = vmatprep.mubr.bf16.mxu0 0
        %4296 = vmatmul.mubr.bf16.gmra.mrb[0].mxu0 %v4201
        %v4297 = vpop.f32.mrb[0].mxu0
        %v4298 = vadd.f32 %v2366, %v4297
        %v4299 = vpop.f32.mrb[0].mxu0
        %v4300 = vpop.f32.mrb[0].mxu0
        %v4301 = vadd.f32 %v2366, %v4300
        %v4302 = vpop.f32.mrb[0].mxu0
        %4303 = vmatprep.mubr.bf16.mxu0 0
        %4304 = vmatmul.mubr.bf16.gmra.mrb[0].mxu0 %v4204
        %v4305 = vpop.f32.mrb[0].mxu0
        %v4306 = vadd.f32 %v2366, %v4305
        %v4307 = vpop.f32.mrb[0].mxu0
        %v4308 = vpop.f32.mrb[0].mxu0
        %v4309 = vadd.f32 %v2366, %v4308
        %v4310 = vpop.f32.mrb[0].mxu0
        %4311 = vmatprep.mubr.bf16.mxu0 0
        %4312 = vmatmul.mubr.bf16.gmra.mrb[0].mxu0 %v4207
        %v4313 = vpop.f32.mrb[0].mxu0
        %v4314 = vadd.f32 %v2366, %v4313
        %v4315 = vpop.f32.mrb[0].mxu0
        %v4316 = vpop.f32.mrb[0].mxu0
        %v4317 = vadd.f32 %v2366, %v4316
        %v4318 = vpop.f32.mrb[0].mxu0
        %4319 = vmatprep.mubr.bf16.mxu0 0
        %4320 = vmatmul.mubr.bf16.gmra.mrb[0].mxu0 %v4210
        %v4321 = vpop.f32.mrb[0].mxu0
        %v4322 = vadd.f32 %v2366, %v4321
        %v4323 = vpop.f32.mrb[0].mxu0
        %v4324 = vpop.f32.mrb[0].mxu0
        %v4325 = vadd.f32 %v2366, %v4324
        %v4326 = vpop.f32.mrb[0].mxu0
        %4327 = vmatprep.mubr.bf16.mxu0 0
        %4328 = vmatmul.mubr.bf16.gmra.mrb[0].mxu0 %v4213
        %v4329 = vpop.f32.mrb[0].mxu0
        %v4330 = vadd.f32 %v2366, %v4329
        %v4331 = vpop.f32.mrb[0].mxu0
        %v4332 = vpop.f32.mrb[0].mxu0
        %v4333 = vadd.f32 %v2366, %v4332
        %v4334 = vpop.f32.mrb[0].mxu0
        %4335 = vmatprep.mubr.bf16.mxu0 0
        %4336 = vmatmul.mubr.bf16.gmra.mrb[0].mxu0 %v4216
        %v4337 = vpop.f32.mrb[0].mxu0
        %v4338 = vadd.f32 %v2366, %v4337
        %v4339 = vpop.f32.mrb[0].mxu0
        %v4340 = vpop.f32.mrb[0].mxu0
        %v4341 = vadd.f32 %v2366, %v4340
        %v4342 = vpop.f32.mrb[0].mxu0
        %4343 = vmatprep.mubr.bf16.mxu0 0
        %4344 = vmatmul.mubr.bf16.gmra.mrb[0].mxu0 %v4219
        %v4345 = vpop.f32.mrb[0].mxu0
        %v4346 = vadd.f32 %v2366, %v4345
        %v4347 = vpop.f32.mrb[0].mxu0
        %v4348 = vpop.f32.mrb[0].mxu0
        %v4349 = vadd.f32 %v2366, %v4348
        %v4350 = vpop.f32.mrb[0].mxu0
        %4351 = vmatprep.mubr.bf16.mxu0 0
        %4352 = vmatmul.mubr.bf16.gmra.mrb[0].mxu0 %v4222
        %v4353 = vpop.f32.mrb[0].mxu0
        %v4354 = vadd.f32 %v2366, %v4353
        %v4355 = vpop.f32.mrb[0].mxu0
        %v4356 = vpop.f32.mrb[0].mxu0
        %v4357 = vadd.f32 %v2366, %v4356
        %v4358 = vpop.f32.mrb[0].mxu0
        %4359 = vmatprep.mubr.bf16.mxu0 0
        %4360 = vmatmul.mubr.bf16.gmra.mrb[0].mxu0 %v4225
        %v4361 = vpop.f32.mrb[0].mxu0
        %v4362 = vadd.f32 %v2366, %v4361
        %v4363 = vpop.f32.mrb[0].mxu0
        %v4364 = vpop.f32.mrb[0].mxu0
        %v4365 = vadd.f32 %v2366, %v4364
        %v4366 = vpop.f32.mrb[0].mxu0
        %4367 = vmatprep.mubr.bf16.mxu0 0
        %4368 = vmatmul.mubr.bf16.gmra.mrb[0].mxu0 %v4228
        %v4369 = vpop.f32.mrb[0].mxu0
        %v4370 = vadd.f32 %v2366, %v4369
        %v4371 = vpop.f32.mrb[0].mxu0
        %v4372 = vpop.f32.mrb[0].mxu0
        %v4373 = vadd.f32 %v2366, %v4372
        %v4374 = vpop.f32.mrb[0].mxu0
        %4375 = vmatprep.mubr.bf16.mxu0 0
        %4376 = vmatmul.mubr.bf16.gmra.mrb[0].mxu0 %v4231
        %v4377 = vpop.f32.mrb[0].mxu0
        %v4378 = vadd.f32 %v2366, %v4377
        %v4379 = vpop.f32.mrb[0].mxu0
        %v4380 = vpop.f32.mrb[0].mxu0
        %v4381 = vadd.f32 %v2366, %v4380
        %v4382 = vpop.f32.mrb[0].mxu0
        %4383 = vmatprep.mubr.bf16.mxu0 0
        %4384 = vmatmul.mubr.bf16.gmra.mrb[0].mxu0 %v4234
        %v4385 = vpop.f32.mrb[0].mxu0
        %v4386 = vadd.f32 %v2366, %v4385
        %v4387 = vpop.f32.mrb[0].mxu0
        %v4388 = vpop.f32.mrb[0].mxu0
        %v4389 = vadd.f32 %v2366, %v4388
        %v4390 = vpop.f32.mrb[0].mxu0
        %4391 = vmatprep.mubr.bf16.mxu0 0
        %4392 = vmatmul.mubr.bf16.gmra.mrb[0].mxu0 %v4237
        %v4393 = vpop.f32.mrb[0].mxu0
        %v4394 = vadd.f32 %v2366, %v4393
        %v4395 = vpop.f32.mrb[0].mxu0
        %v4396 = vpop.f32.mrb[0].mxu0
        %v4397 = vadd.f32 %v2366, %v4396
        %v4398 = vpop.f32.mrb[0].mxu0
        %4399 = vdwg.mxu0
        %v4400 = vmax.f32 %v4274, 0.0
        %v4401 = vmax.f32 %v4277, 0.0
        %v4402 = vmax.f32 %v4282, 0.0
        %v4403 = vmax.f32 %v4285, 0.0
        %v4404 = vmax.f32 %v4290, 0.0
        %v4405 = vmax.f32 %v4293, 0.0
        %v4406 = vmax.f32 %v4298, 0.0
        %v4407 = vmax.f32 %v4301, 0.0
        %v4408 = vmax.f32 %v4306, 0.0
        %v4409 = vmax.f32 %v4309, 0.0
        %v4410 = vmax.f32 %v4314, 0.0
        %v4411 = vmax.f32 %v4317, 0.0
        %v4412 = vmax.f32 %v4322, 0.0
        %v4413 = vmax.f32 %v4325, 0.0
        %v4414 = vmax.f32 %v4330, 0.0
        %v4415 = vmax.f32 %v4333, 0.0
        %v4416 = vmax.f32 %v4338, 0.0
        %v4417 = vmax.f32 %v4341, 0.0
        %v4418 = vmax.f32 %v4346, 0.0
        %v4419 = vmax.f32 %v4349, 0.0
        %v4420 = vmax.f32 %v4354, 0.0
        %v4421 = vmax.f32 %v4357, 0.0
        %v4422 = vmax.f32 %v4362, 0.0
        %v4423 = vmax.f32 %v4365, 0.0
        %v4424 = vmax.f32 %v4370, 0.0
        %v4425 = vmax.f32 %v4373, 0.0
        %v4426 = vmax.f32 %v4378, 0.0
        %v4427 = vmax.f32 %v4381, 0.0
        %v4428 = vmax.f32 %v4386, 0.0
        %v4429 = vmax.f32 %v4389, 0.0
        %v4430 = vmax.f32 %v4394, 0.0
        %v4431 = vmax.f32 %v4397, 0.0
        %s4432 = scalar_lea.vmem %s271, 512 [#allocation4]
        %4433 = vst [vmem:[%s4432] sm:$0xff] %v4400
        %4434 = vst [vmem:[%s4432 + $0x8] sm:$0xff] %v4401
        %4435 = vst [vmem:[%s4432 + $0x10] sm:$0xff] %v4402
        %4436 = vst [vmem:[%s4432 + $0x18] sm:$0xff] %v4403
        %4437 = vst [vmem:[%s4432 + $0x20] sm:$0xff] %v4404
        %4438 = vst [vmem:[%s4432 + $0x28] sm:$0xff] %v4405
        %4439 = vst [vmem:[%s4432 + $0x30] sm:$0xff] %v4406
        %4440 = vst [vmem:[%s4432 + $0x38] sm:$0xff] %v4407
        %4441 = vst [vmem:[%s4432 + $0x40] sm:$0xff] %v4408
        %4442 = vst [vmem:[%s4432 + $0x48] sm:$0xff] %v4409
        %4443 = vst [vmem:[%s4432 + $0x50] sm:$0xff] %v4410
        %4444 = vst [vmem:[%s4432 + $0x58] sm:$0xff] %v4411
        %4445 = vst [vmem:[%s4432 + $0x60] sm:$0xff] %v4412
        %4446 = vst [vmem:[%s4432 + $0x68] sm:$0xff] %v4413
        %4447 = vst [vmem:[%s4432 + $0x70] sm:$0xff] %v4414
        %4448 = vst [vmem:[%s4432 + $0x78] sm:$0xff] %v4415
        %4449 = vst [vmem:[%s4432 + $0x80] sm:$0xff] %v4416
        %4450 = vst [vmem:[%s4432 + $0x88] sm:$0xff] %v4417
        %4451 = vst [vmem:[%s4432 + $0x90] sm:$0xff] %v4418
        %4452 = vst [vmem:[%s4432 + $0x98] sm:$0xff] %v4419
        %4453 = vst [vmem:[%s4432 + $0xa0] sm:$0xff] %v4420
        %4454 = vst [vmem:[%s4432 + $0xa8] sm:$0xff] %v4421
        %4455 = vst [vmem:[%s4432 + $0xb0] sm:$0xff] %v4422
        %4456 = vst [vmem:[%s4432 + $0xb8] sm:$0xff] %v4423
        %4457 = vst [vmem:[%s4432 + $0xc0] sm:$0xff] %v4424
        %4458 = vst [vmem:[%s4432 + $0xc8] sm:$0xff] %v4425
        %4459 = vst [vmem:[%s4432 + $0xd0] sm:$0xff] %v4426
        %4460 = vst [vmem:[%s4432 + $0xd8] sm:$0xff] %v4427
        %4461 = vst [vmem:[%s4432 + $0xe0] sm:$0xff] %v4428
        %4462 = vst [vmem:[%s4432 + $0xe8] sm:$0xff] %v4429
        %4463 = vst [vmem:[%s4432 + $0xf0] sm:$0xff] %v4430
        %4464 = vst [vmem:[%s4432 + $0xf8] sm:$0xff] %v4431
        %v4465 = vld [vmem:[%s1205] sm:$0xf]
        %v4466 = vld [vmem:[%s1205 + $0x4] sm:$0xf]
        %v4467 = vld [vmem:[%s1205 + $0x8] sm:$0x1]
        %v4468 = vld [vmem:[%s1205 + $0xc] sm:$0xf]
        %v4469 = vld [vmem:[%s1205 + $0x10] sm:$0xf]
        %v4470 = vld [vmem:[%s1205 + $0x14] sm:$0x1]
        %v4471 = vld [vmem:[%s1205 + $0x18] sm:$0xf]
        %v4472 = vld [vmem:[%s1205 + $0x1c] sm:$0xf]
        %v4473 = vld [vmem:[%s1205 + $0x20] sm:$0x1]
        %v4474 = vld [vmem:[%s1205 + $0x24] sm:$0xf]
        %v4475 = vld [vmem:[%s1205 + $0x28] sm:$0xf]
        %v4476 = vld [vmem:[%s1205 + $0x2c] sm:$0x1]
        %v4477 = vld [vmem:[%s1205 + $0x30] sm:$0xf]
        %v4478 = vld [vmem:[%s1205 + $0x34] sm:$0xf]
        %v4479 = vld [vmem:[%s1205 + $0x38] sm:$0x1]
        %v4480 = vld [vmem:[%s1205 + $0x3c] sm:$0xf]
        %v4481 = vld [vmem:[%s1205 + $0x40] sm:$0xf]
        %v4482 = vld [vmem:[%s1205 + $0x44] sm:$0x1]
        %v4483 = vld [vmem:[%s1205 + $0x48] sm:$0xf]
        %v4484 = vld [vmem:[%s1205 + $0x4c] sm:$0xf]
        %v4485 = vld [vmem:[%s1205 + $0x50] sm:$0x1]
        %v4486 = vld [vmem:[%s1205 + $0x54] sm:$0xf]
        %v4487 = vld [vmem:[%s1205 + $0x58] sm:$0xf]
        %v4488 = vld [vmem:[%s1205 + $0x5c] sm:$0x1]
        %v4489 = vld [vmem:[%s1205 + $0x60] sm:$0xf]
        %v4490 = vld [vmem:[%s1205 + $0x64] sm:$0xf]
        %v4491 = vld [vmem:[%s1205 + $0x68] sm:$0x1]
        %v4492 = vld [vmem:[%s1205 + $0x6c] sm:$0xf]
        %v4493 = vld [vmem:[%s1205 + $0x70] sm:$0xf]
        %v4494 = vld [vmem:[%s1205 + $0x74] sm:$0x1]
        %v4495 = vld [vmem:[%s1205 + $0x78] sm:$0xf]
        %v4496 = vld [vmem:[%s1205 + $0x7c] sm:$0xf]
        %v4497 = vld [vmem:[%s1205 + $0x80] sm:$0x1]
        %v4498 = vld [vmem:[%s1205 + $0x84] sm:$0xf]
        %v4499 = vld [vmem:[%s1205 + $0x88] sm:$0xf]
        %v4500 = vld [vmem:[%s1205 + $0x8c] sm:$0x1]
        %v4501 = vld [vmem:[%s1205 + $0x90] sm:$0xf]
        %v4502 = vld [vmem:[%s1205 + $0x94] sm:$0xf]
        %v4503 = vld [vmem:[%s1205 + $0x98] sm:$0x1]
        %v4504 = vld [vmem:[%s1205 + $0x9c] sm:$0xf]
        %v4505 = vld [vmem:[%s1205 + $0xa0] sm:$0xf]
        %v4506 = vld [vmem:[%s1205 + $0xa4] sm:$0x1]
        %v4507 = vld [vmem:[%s1205 + $0xa8] sm:$0xf]
        %v4508 = vld [vmem:[%s1205 + $0xac] sm:$0xf]
        %v4509 = vld [vmem:[%s1205 + $0xb0] sm:$0x1]
        %v4510 = vld [vmem:[%s1205 + $0xb4] sm:$0xf]
        %v4511 = vld [vmem:[%s1205 + $0xb8] sm:$0xf]
        %v4512 = vld [vmem:[%s1205 + $0xbc] sm:$0x1]
        %s4513 = scalar_lea.vmem %s3, 192
        %v4514 = vld [vmem:[%s4513] sm:$0xf]
        %v4515 = vld [vmem:[%s4513 + $0x4] sm:$0xf]
        %v4516 = vld [vmem:[%s4513 + $0x8] sm:$0xf]
        %v4517 = vld [vmem:[%s4513 + $0xc] sm:$0xf]
        %v4518 = vld [vmem:[%s4513 + $0x10] sm:$0xf]
        %v4519 = vld [vmem:[%s4513 + $0x14] sm:$0xf]
        %v4520 = vld [vmem:[%s4513 + $0x18] sm:$0xf]
        %v4521 = vld [vmem:[%s4513 + $0x1c] sm:$0xf]
        %v4522 = vld [vmem:[%s4513 + $0x20] sm:$0xf]
        %v4523 = vld [vmem:[%s4513 + $0x24] sm:$0xf]
        %v4524 = vld [vmem:[%s4513 + $0x28] sm:$0xf]
        %v4525 = vld [vmem:[%s4513 + $0x2c] sm:$0xf]
        %v4526 = vld [vmem:[%s4513 + $0x30] sm:$0xf]
        %v4527 = vld [vmem:[%s4513 + $0x34] sm:$0xf]
        %v4528 = vld [vmem:[%s4513 + $0x38] sm:$0xf]
        %v4529 = vld [vmem:[%s4513 + $0x3c] sm:$0xf]
        %v4531 = vshrl.u32 %v4465, 16
        %v4533 = vrot.slane %v4531, 4
        %v4534 = vshll.u32 %v4465, 16
        %v4536 = vrot.slane %v4534, 5
        %v4537 = vor.u32 %v4533, %v4536
        %v4538 = vrot.slane %v4537, 4
        %v4540 = vshll.u32 %v4466, 16
        %v4542 = vrot.slane %v4540, 5
        %v4543 = vsel %vm2745, %v4538, %v4542
        %v4544 = vshrl.u32 %v4466, 16
        %v4546 = vrot.slane %v4544, 4
        %v4547 = vor.u32 %v4546, %v4542
        %v4548 = vrot.slane %v4547, 4
        %v4550 = vshll.u32 %v4467, 16
        %v4552 = vrot.slane %v4550, 5
        %v4553 = vsel %vm2745, %v4548, %v4552
        %v4555 = vshrl.u32 %v4468, 16
        %v4557 = vrot.slane %v4555, 4
        %v4558 = vshll.u32 %v4468, 16
        %v4560 = vrot.slane %v4558, 5
        %v4561 = vor.u32 %v4557, %v4560
        %v4562 = vrot.slane %v4561, 4
        %v4564 = vshll.u32 %v4469, 16
        %v4566 = vrot.slane %v4564, 5
        %v4567 = vsel %vm2745, %v4562, %v4566
        %v4568 = vshrl.u32 %v4469, 16
        %v4570 = vrot.slane %v4568, 4
        %v4571 = vor.u32 %v4570, %v4566
        %v4572 = vrot.slane %v4571, 4
        %v4574 = vshll.u32 %v4470, 16
        %v4576 = vrot.slane %v4574, 5
        %v4577 = vsel %vm2745, %v4572, %v4576
        %v4579 = vshrl.u32 %v4471, 16
        %v4581 = vrot.slane %v4579, 4
        %v4582 = vshll.u32 %v4471, 16
        %v4584 = vrot.slane %v4582, 5
        %v4585 = vor.u32 %v4581, %v4584
        %v4586 = vrot.slane %v4585, 4
        %v4588 = vshll.u32 %v4472, 16
        %v4590 = vrot.slane %v4588, 5
        %v4591 = vsel %vm2745, %v4586, %v4590
        %v4592 = vshrl.u32 %v4472, 16
        %v4594 = vrot.slane %v4592, 4
        %v4595 = vor.u32 %v4594, %v4590
        %v4596 = vrot.slane %v4595, 4
        %v4598 = vshll.u32 %v4473, 16
        %v4600 = vrot.slane %v4598, 5
        %v4601 = vsel %vm2745, %v4596, %v4600
        %v4603 = vshrl.u32 %v4474, 16
        %v4605 = vrot.slane %v4603, 4
        %v4606 = vshll.u32 %v4474, 16
        %v4608 = vrot.slane %v4606, 5
        %v4609 = vor.u32 %v4605, %v4608
        %v4610 = vrot.slane %v4609, 4
        %v4612 = vshll.u32 %v4475, 16
        %v4614 = vrot.slane %v4612, 5
        %v4615 = vsel %vm2745, %v4610, %v4614
        %v4616 = vshrl.u32 %v4475, 16
        %v4618 = vrot.slane %v4616, 4
        %v4619 = vor.u32 %v4618, %v4614
        %v4620 = vrot.slane %v4619, 4
        %v4622 = vshll.u32 %v4476, 16
        %v4624 = vrot.slane %v4622, 5
        %v4625 = vsel %vm2745, %v4620, %v4624
        %v4627 = vshrl.u32 %v4477, 16
        %v4629 = vrot.slane %v4627, 4
        %v4630 = vshll.u32 %v4477, 16
        %v4632 = vrot.slane %v4630, 5
        %v4633 = vor.u32 %v4629, %v4632
        %v4634 = vrot.slane %v4633, 4
        %v4636 = vshll.u32 %v4478, 16
        %v4638 = vrot.slane %v4636, 5
        %v4639 = vsel %vm2745, %v4634, %v4638
        %v4640 = vshrl.u32 %v4478, 16
        %v4642 = vrot.slane %v4640, 4
        %v4643 = vor.u32 %v4642, %v4638
        %v4644 = vrot.slane %v4643, 4
        %v4646 = vshll.u32 %v4479, 16
        %v4648 = vrot.slane %v4646, 5
        %v4649 = vsel %vm2745, %v4644, %v4648
        %v4651 = vshrl.u32 %v4480, 16
        %v4653 = vrot.slane %v4651, 4
        %v4654 = vshll.u32 %v4480, 16
        %v4656 = vrot.slane %v4654, 5
        %v4657 = vor.u32 %v4653, %v4656
        %v4658 = vrot.slane %v4657, 4
        %v4660 = vshll.u32 %v4481, 16
        %v4662 = vrot.slane %v4660, 5
        %v4663 = vsel %vm2745, %v4658, %v4662
        %v4664 = vshrl.u32 %v4481, 16
        %v4666 = vrot.slane %v4664, 4
        %v4667 = vor.u32 %v4666, %v4662
        %v4668 = vrot.slane %v4667, 4
        %v4670 = vshll.u32 %v4482, 16
        %v4672 = vrot.slane %v4670, 5
        %v4673 = vsel %vm2745, %v4668, %v4672
        %v4675 = vshrl.u32 %v4483, 16
        %v4677 = vrot.slane %v4675, 4
        %v4678 = vshll.u32 %v4483, 16
        %v4680 = vrot.slane %v4678, 5
        %v4681 = vor.u32 %v4677, %v4680
        %v4682 = vrot.slane %v4681, 4
        %v4684 = vshll.u32 %v4484, 16
        %v4686 = vrot.slane %v4684, 5
        %v4687 = vsel %vm2745, %v4682, %v4686
        %v4688 = vshrl.u32 %v4484, 16
        %v4690 = vrot.slane %v4688, 4
        %v4691 = vor.u32 %v4690, %v4686
        %v4692 = vrot.slane %v4691, 4
        %v4694 = vshll.u32 %v4485, 16
        %v4696 = vrot.slane %v4694, 5
        %v4697 = vsel %vm2745, %v4692, %v4696
        %v4699 = vshrl.u32 %v4486, 16
        %v4701 = vrot.slane %v4699, 4
        %v4702 = vshll.u32 %v4486, 16
        %v4704 = vrot.slane %v4702, 5
        %v4705 = vor.u32 %v4701, %v4704
        %v4706 = vrot.slane %v4705, 4
        %v4708 = vshll.u32 %v4487, 16
        %v4710 = vrot.slane %v4708, 5
        %v4711 = vsel %vm2745, %v4706, %v4710
        %v4712 = vshrl.u32 %v4487, 16
        %v4714 = vrot.slane %v4712, 4
        %v4715 = vor.u32 %v4714, %v4710
        %v4716 = vrot.slane %v4715, 4
        %v4718 = vshll.u32 %v4488, 16
        %v4720 = vrot.slane %v4718, 5
        %v4721 = vsel %vm2745, %v4716, %v4720
        %v4723 = vshrl.u32 %v4489, 16
        %v4725 = vrot.slane %v4723, 4
        %v4726 = vshll.u32 %v4489, 16
        %v4728 = vrot.slane %v4726, 5
        %v4729 = vor.u32 %v4725, %v4728
        %v4730 = vrot.slane %v4729, 4
        %v4732 = vshll.u32 %v4490, 16
        %v4734 = vrot.slane %v4732, 5
        %v4735 = vsel %vm2745, %v4730, %v4734
        %v4736 = vshrl.u32 %v4490, 16
        %v4738 = vrot.slane %v4736, 4
        %v4739 = vor.u32 %v4738, %v4734
        %v4740 = vrot.slane %v4739, 4
        %v4742 = vshll.u32 %v4491, 16
        %v4744 = vrot.slane %v4742, 5
        %v4745 = vsel %vm2745, %v4740, %v4744
        %v4747 = vshrl.u32 %v4492, 16
        %v4749 = vrot.slane %v4747, 4
        %v4750 = vshll.u32 %v4492, 16
        %v4752 = vrot.slane %v4750, 5
        %v4753 = vor.u32 %v4749, %v4752
        %v4754 = vrot.slane %v4753, 4
        %v4756 = vshll.u32 %v4493, 16
        %v4758 = vrot.slane %v4756, 5
        %v4759 = vsel %vm2745, %v4754, %v4758
        %v4760 = vshrl.u32 %v4493, 16
        %v4762 = vrot.slane %v4760, 4
        %v4763 = vor.u32 %v4762, %v4758
        %v4764 = vrot.slane %v4763, 4
        %v4766 = vshll.u32 %v4494, 16
        %v4768 = vrot.slane %v4766, 5
        %v4769 = vsel %vm2745, %v4764, %v4768
        %v4771 = vshrl.u32 %v4495, 16
        %v4773 = vrot.slane %v4771, 4
        %v4774 = vshll.u32 %v4495, 16
        %v4776 = vrot.slane %v4774, 5
        %v4777 = vor.u32 %v4773, %v4776
        %v4778 = vrot.slane %v4777, 4
        %v4780 = vshll.u32 %v4496, 16
        %v4782 = vrot.slane %v4780, 5
        %v4783 = vsel %vm2745, %v4778, %v4782
        %v4784 = vshrl.u32 %v4496, 16
        %v4786 = vrot.slane %v4784, 4
        %v4787 = vor.u32 %v4786, %v4782
        %v4788 = vrot.slane %v4787, 4
        %v4790 = vshll.u32 %v4497, 16
        %v4792 = vrot.slane %v4790, 5
        %v4793 = vsel %vm2745, %v4788, %v4792
        %v4795 = vshrl.u32 %v4498, 16
        %v4797 = vrot.slane %v4795, 4
        %v4798 = vshll.u32 %v4498, 16
        %v4800 = vrot.slane %v4798, 5
        %v4801 = vor.u32 %v4797, %v4800
        %v4802 = vrot.slane %v4801, 4
        %v4804 = vshll.u32 %v4499, 16
        %v4806 = vrot.slane %v4804, 5
        %v4807 = vsel %vm2745, %v4802, %v4806
        %v4808 = vshrl.u32 %v4499, 16
        %v4810 = vrot.slane %v4808, 4
        %v4811 = vor.u32 %v4810, %v4806
        %v4812 = vrot.slane %v4811, 4
        %v4814 = vshll.u32 %v4500, 16
        %v4816 = vrot.slane %v4814, 5
        %v4817 = vsel %vm2745, %v4812, %v4816
        %v4819 = vshrl.u32 %v4501, 16
        %v4821 = vrot.slane %v4819, 4
        %v4822 = vshll.u32 %v4501, 16
        %v4824 = vrot.slane %v4822, 5
        %v4825 = vor.u32 %v4821, %v4824
        %v4826 = vrot.slane %v4825, 4
        %v4828 = vshll.u32 %v4502, 16
        %v4830 = vrot.slane %v4828, 5
        %v4831 = vsel %vm2745, %v4826, %v4830
        %v4832 = vshrl.u32 %v4502, 16
        %v4834 = vrot.slane %v4832, 4
        %v4835 = vor.u32 %v4834, %v4830
        %v4836 = vrot.slane %v4835, 4
        %v4838 = vshll.u32 %v4503, 16
        %v4840 = vrot.slane %v4838, 5
        %v4841 = vsel %vm2745, %v4836, %v4840
        %v4843 = vshrl.u32 %v4504, 16
        %v4845 = vrot.slane %v4843, 4
        %v4846 = vshll.u32 %v4504, 16
        %v4848 = vrot.slane %v4846, 5
        %v4849 = vor.u32 %v4845, %v4848
        %v4850 = vrot.slane %v4849, 4
        %v4852 = vshll.u32 %v4505, 16
        %v4854 = vrot.slane %v4852, 5
        %v4855 = vsel %vm2745, %v4850, %v4854
        %v4856 = vshrl.u32 %v4505, 16
        %v4858 = vrot.slane %v4856, 4
        %v4859 = vor.u32 %v4858, %v4854
        %v4860 = vrot.slane %v4859, 4
        %v4862 = vshll.u32 %v4506, 16
        %v4864 = vrot.slane %v4862, 5
        %v4865 = vsel %vm2745, %v4860, %v4864
        %v4867 = vshrl.u32 %v4507, 16
        %v4869 = vrot.slane %v4867, 4
        %v4870 = vshll.u32 %v4507, 16
        %v4872 = vrot.slane %v4870, 5
        %v4873 = vor.u32 %v4869, %v4872
        %v4874 = vrot.slane %v4873, 4
        %v4876 = vshll.u32 %v4508, 16
        %v4878 = vrot.slane %v4876, 5
        %v4879 = vsel %vm2745, %v4874, %v4878
        %v4880 = vshrl.u32 %v4508, 16
        %v4882 = vrot.slane %v4880, 4
        %v4883 = vor.u32 %v4882, %v4878
        %v4884 = vrot.slane %v4883, 4
        %v4886 = vshll.u32 %v4509, 16
        %v4888 = vrot.slane %v4886, 5
        %v4889 = vsel %vm2745, %v4884, %v4888
        %v4891 = vshrl.u32 %v4510, 16
        %v4893 = vrot.slane %v4891, 4
        %v4894 = vshll.u32 %v4510, 16
        %v4896 = vrot.slane %v4894, 5
        %v4897 = vor.u32 %v4893, %v4896
        %v4898 = vrot.slane %v4897, 4
        %v4900 = vshll.u32 %v4511, 16
        %v4902 = vrot.slane %v4900, 5
        %v4903 = vsel %vm2745, %v4898, %v4902
        %v4904 = vshrl.u32 %v4511, 16
        %v4906 = vrot.slane %v4904, 4
        %v4907 = vor.u32 %v4906, %v4902
        %v4908 = vrot.slane %v4907, 4
        %v4910 = vshll.u32 %v4512, 16
        %v4912 = vrot.slane %v4910, 5
        %v4913 = vsel %vm2745, %v4908, %v4912
        %v4914 = vunpack.c.l.b16 %v4543
        %v4915 = vunpack.c.l.b16 %v4553
        %v4916 = vunpack.c.l.b16 %v4567
        %v4917 = vunpack.c.l.b16 %v4577
        %v4918 = vunpack.c.l.b16 %v4591
        %v4919 = vunpack.c.l.b16 %v4601
        %v4920 = vunpack.c.l.b16 %v4615
        %v4921 = vunpack.c.l.b16 %v4625
        %v4922 = vunpack.c.l.b16 %v4639
        %v4923 = vunpack.c.l.b16 %v4649
        %v4924 = vunpack.c.l.b16 %v4663
        %v4925 = vunpack.c.l.b16 %v4673
        %v4926 = vunpack.c.l.b16 %v4687
        %v4927 = vunpack.c.l.b16 %v4697
        %v4928 = vunpack.c.l.b16 %v4711
        %v4929 = vunpack.c.l.b16 %v4721
        %v4930 = vunpack.c.l.b16 %v4735
        %v4931 = vunpack.c.l.b16 %v4745
        %v4932 = vunpack.c.l.b16 %v4759
        %v4933 = vunpack.c.l.b16 %v4769
        %v4934 = vunpack.c.l.b16 %v4783
        %v4935 = vunpack.c.l.b16 %v4793
        %v4936 = vunpack.c.l.b16 %v4807
        %v4937 = vunpack.c.l.b16 %v4817
        %v4938 = vunpack.c.l.b16 %v4831
        %v4939 = vunpack.c.l.b16 %v4841
        %v4940 = vunpack.c.l.b16 %v4855
        %v4941 = vunpack.c.l.b16 %v4865
        %v4942 = vunpack.c.l.b16 %v4879
        %v4943 = vunpack.c.l.b16 %v4889
        %v4944 = vunpack.c.l.b16 %v4903
        %v4945 = vunpack.c.l.b16 %v4913
        %v4946 = vpack.c.b16 %v4915, %v4914
        %v4947 = vpack.c.b16 %v4917, %v4916
        %v4948 = vpack.c.b16 %v4919, %v4918
        %v4949 = vpack.c.b16 %v4921, %v4920
        %v4950 = vpack.c.b16 %v4923, %v4922
        %v4951 = vpack.c.b16 %v4925, %v4924
        %v4952 = vpack.c.b16 %v4927, %v4926
        %v4953 = vpack.c.b16 %v4929, %v4928
        %v4954 = vpack.c.b16 %v4931, %v4930
        %v4955 = vpack.c.b16 %v4933, %v4932
        %v4956 = vpack.c.b16 %v4935, %v4934
        %v4957 = vpack.c.b16 %v4937, %v4936
        %v4958 = vpack.c.b16 %v4939, %v4938
        %v4959 = vpack.c.b16 %v4941, %v4940
        %v4960 = vpack.c.b16 %v4943, %v4942
        %v4961 = vpack.c.b16 %v4945, %v4944
        %v4994 = vunpack.c.l.b16 %v4514
        %v4995 = vunpack.c.l.b16 %v4515
        %v4996 = vunpack.c.l.b16 %v4516
        %v4997 = vunpack.c.l.b16 %v4517
        %v4998 = vunpack.c.l.b16 %v4518
        %v4999 = vunpack.c.l.b16 %v4519
        %v5000 = vunpack.c.l.b16 %v4520
        %v5001 = vunpack.c.l.b16 %v4521
        %v5002 = vunpack.c.l.b16 %v4522
        %v5003 = vunpack.c.l.b16 %v4523
        %v5004 = vunpack.c.l.b16 %v4524
        %v5005 = vunpack.c.l.b16 %v4525
        %v5006 = vunpack.c.l.b16 %v4526
        %v5007 = vunpack.c.l.b16 %v4527
        %v5008 = vunpack.c.l.b16 %v4528
        %v5009 = vunpack.c.l.b16 %v4529
        %v5010 = vpack.c.b16 %v4995, %v4994
        %v5011 = vpack.c.b16 %v4997, %v4996
        %v5012 = vpack.c.b16 %v4999, %v4998
        %v5013 = vpack.c.b16 %v5001, %v5000
        %v5014 = vpack.c.b16 %v5003, %v5002
        %v5015 = vpack.c.b16 %v5005, %v5004
        %v5016 = vpack.c.b16 %v5007, %v5006
        %v5017 = vpack.c.b16 %v5009, %v5008
        %5026 = vmatprep.subr.bf16.mxu0 0
        %5027 = vmatpush1.bf16.msra.mxu0 %v5010
        %5028 = vmatprep.subr.bf16.mxu0 0
        %5029 = vmatpush1.bf16.msra.mxu0 %v5011
        %5030 = vmatprep.subr.bf16.mxu0 0
        %5031 = vmatpush1.bf16.msra.mxu0 %v5012
        %5032 = vmatprep.subr.bf16.mxu0 0
        %5033 = vmatpush1.bf16.msra.mxu0 %v5013
        %5034 = vmatprep.subr.bf16.mxu0 0
        %5035 = vmatpush1.bf16.msra.mxu0 %v5014
        %5036 = vmatprep.subr.bf16.mxu0 0
        %5037 = vmatpush1.bf16.msra.mxu0 %v5015
        %5038 = vmatprep.subr.bf16.mxu0 0
        %5039 = vmatpush1.bf16.msra.mxu0 %v5016
        %5040 = vmatprep.subr.bf16.mxu0 0
        %5041 = vmatpush1.bf16.msra.mxu0 %v5017
        %5042 = vmatprep.subr.bf16.mxu0 0
        %5043 = vmatpush1.bf16.msra.mxu0 0
        %5044 = vmatprep.subr.bf16.mxu0 0
        %5045 = vmatpush1.bf16.msra.mxu0 0
        %5046 = vmatprep.subr.bf16.mxu0 0
        %5047 = vmatpush1.bf16.msra.mxu0 0
        %5048 = vmatprep.subr.bf16.mxu0 0
        %5049 = vmatpush1.bf16.msra.mxu0 0
        %5050 = vmatprep.subr.bf16.mxu0 0
        %5051 = vmatpush1.bf16.msra.mxu0 0
        %5052 = vmatprep.subr.bf16.mxu0 0
        %5053 = vmatpush1.bf16.msra.mxu0 0
        %5054 = vmatprep.subr.bf16.mxu0 0
        %5055 = vmatpush1.bf16.msra.mxu0 0
        %5056 = vmatprep.subr.bf16.mxu0 0
        %5057 = vmatpush1.bf16.msra.mxu0 0
        %5058 = vmatprep.mubr.bf16.mxu0 0
        %5059 = vmatmul.mubr.bf16.gmra.mrb[0].mxu0 %v4946
        %v5060 = vpop.f32.mrb[0].mxu0
        %v5061 = vadd.f32 %v1974, %v5060
        %v5062 = vpop.f32.mrb[0].mxu0
        %v5063 = vpop.f32.mrb[0].mxu0
        %v5064 = vadd.f32 %v1974, %v5063
        %v5065 = vpop.f32.mrb[0].mxu0
        %5066 = vmatprep.mubr.bf16.mxu0 0
        %5067 = vmatmul.mubr.bf16.gmra.mrb[0].mxu0 %v4947
        %v5068 = vpop.f32.mrb[0].mxu0
        %v5069 = vadd.f32 %v1974, %v5068
        %v5070 = vpop.f32.mrb[0].mxu0
        %v5071 = vpop.f32.mrb[0].mxu0
        %v5072 = vadd.f32 %v1974, %v5071
        %v5073 = vpop.f32.mrb[0].mxu0
        %5074 = vmatprep.mubr.bf16.mxu0 0
        %5075 = vmatmul.mubr.bf16.gmra.mrb[0].mxu0 %v4948
        %v5076 = vpop.f32.mrb[0].mxu0
        %v5077 = vadd.f32 %v1974, %v5076
        %v5078 = vpop.f32.mrb[0].mxu0
        %v5079 = vpop.f32.mrb[0].mxu0
        %v5080 = vadd.f32 %v1974, %v5079
        %v5081 = vpop.f32.mrb[0].mxu0
        %5082 = vmatprep.mubr.bf16.mxu0 0
        %5083 = vmatmul.mubr.bf16.gmra.mrb[0].mxu0 %v4949
        %v5084 = vpop.f32.mrb[0].mxu0
        %v5085 = vadd.f32 %v1974, %v5084
        %v5086 = vpop.f32.mrb[0].mxu0
        %v5087 = vpop.f32.mrb[0].mxu0
        %v5088 = vadd.f32 %v1974, %v5087
        %v5089 = vpop.f32.mrb[0].mxu0
        %5090 = vmatprep.mubr.bf16.mxu0 0
        %5091 = vmatmul.mubr.bf16.gmra.mrb[0].mxu0 %v4950
        %v5092 = vpop.f32.mrb[0].mxu0
        %v5093 = vadd.f32 %v1974, %v5092
        %v5094 = vpop.f32.mrb[0].mxu0
        %v5095 = vpop.f32.mrb[0].mxu0
        %v5096 = vadd.f32 %v1974, %v5095
        %v5097 = vpop.f32.mrb[0].mxu0
        %5098 = vmatprep.mubr.bf16.mxu0 0
        %5099 = vmatmul.mubr.bf16.gmra.mrb[0].mxu0 %v4951
        %v5100 = vpop.f32.mrb[0].mxu0
        %v5101 = vadd.f32 %v1974, %v5100
        %v5102 = vpop.f32.mrb[0].mxu0
        %v5103 = vpop.f32.mrb[0].mxu0
        %v5104 = vadd.f32 %v1974, %v5103
        %v5105 = vpop.f32.mrb[0].mxu0
        %5106 = vmatprep.mubr.bf16.mxu0 0
        %5107 = vmatmul.mubr.bf16.gmra.mrb[0].mxu0 %v4952
        %v5108 = vpop.f32.mrb[0].mxu0
        %v5109 = vadd.f32 %v1974, %v5108
        %v5110 = vpop.f32.mrb[0].mxu0
        %v5111 = vpop.f32.mrb[0].mxu0
        %v5112 = vadd.f32 %v1974, %v5111
        %v5113 = vpop.f32.mrb[0].mxu0
        %5114 = vmatprep.mubr.bf16.mxu0 0
        %5115 = vmatmul.mubr.bf16.gmra.mrb[0].mxu0 %v4953
        %v5116 = vpop.f32.mrb[0].mxu0
        %v5117 = vadd.f32 %v1974, %v5116
        %v5118 = vpop.f32.mrb[0].mxu0
        %v5119 = vpop.f32.mrb[0].mxu0
        %v5120 = vadd.f32 %v1974, %v5119
        %v5121 = vpop.f32.mrb[0].mxu0
        %5122 = vmatprep.mubr.bf16.mxu0 0
        %5123 = vmatmul.mubr.bf16.gmra.mrb[0].mxu0 %v4954
        %v5124 = vpop.f32.mrb[0].mxu0
        %v5125 = vadd.f32 %v1974, %v5124
        %v5126 = vpop.f32.mrb[0].mxu0
        %v5127 = vpop.f32.mrb[0].mxu0
        %v5128 = vadd.f32 %v1974, %v5127
        %v5129 = vpop.f32.mrb[0].mxu0
        %5130 = vmatprep.mubr.bf16.mxu0 0
        %5131 = vmatmul.mubr.bf16.gmra.mrb[0].mxu0 %v4955
        %v5132 = vpop.f32.mrb[0].mxu0
        %v5133 = vadd.f32 %v1974, %v5132
        %v5134 = vpop.f32.mrb[0].mxu0
        %v5135 = vpop.f32.mrb[0].mxu0
        %v5136 = vadd.f32 %v1974, %v5135
        %v5137 = vpop.f32.mrb[0].mxu0
        %5138 = vmatprep.mubr.bf16.mxu0 0
        %5139 = vmatmul.mubr.bf16.gmra.mrb[0].mxu0 %v4956
        %v5140 = vpop.f32.mrb[0].mxu0
        %v5141 = vadd.f32 %v1974, %v5140
        %v5142 = vpop.f32.mrb[0].mxu0
        %v5143 = vpop.f32.mrb[0].mxu0
        %v5144 = vadd.f32 %v1974, %v5143
        %v5145 = vpop.f32.mrb[0].mxu0
        %5146 = vmatprep.mubr.bf16.mxu0 0
        %5147 = vmatmul.mubr.bf16.gmra.mrb[0].mxu0 %v4957
        %v5148 = vpop.f32.mrb[0].mxu0
        %v5149 = vadd.f32 %v1974, %v5148
        %v5150 = vpop.f32.mrb[0].mxu0
        %v5151 = vpop.f32.mrb[0].mxu0
        %v5152 = vadd.f32 %v1974, %v5151
        %v5153 = vpop.f32.mrb[0].mxu0
        %5154 = vmatprep.mubr.bf16.mxu0 0
        %5155 = vmatmul.mubr.bf16.gmra.mrb[0].mxu0 %v4958
        %v5156 = vpop.f32.mrb[0].mxu0
        %v5157 = vadd.f32 %v1974, %v5156
        %v5158 = vpop.f32.mrb[0].mxu0
        %v5159 = vpop.f32.mrb[0].mxu0
        %v5160 = vadd.f32 %v1974, %v5159
        %v5161 = vpop.f32.mrb[0].mxu0
        %5162 = vmatprep.mubr.bf16.mxu0 0
        %5163 = vmatmul.mubr.bf16.gmra.mrb[0].mxu0 %v4959
        %v5164 = vpop.f32.mrb[0].mxu0
        %v5165 = vadd.f32 %v1974, %v5164
        %v5166 = vpop.f32.mrb[0].mxu0
        %v5167 = vpop.f32.mrb[0].mxu0
        %v5168 = vadd.f32 %v1974, %v5167
        %v5169 = vpop.f32.mrb[0].mxu0
        %5170 = vmatprep.mubr.bf16.mxu0 0
        %5171 = vmatmul.mubr.bf16.gmra.mrb[0].mxu0 %v4960
        %v5172 = vpop.f32.mrb[0].mxu0
        %v5173 = vadd.f32 %v1974, %v5172
        %v5174 = vpop.f32.mrb[0].mxu0
        %v5175 = vpop.f32.mrb[0].mxu0
        %v5176 = vadd.f32 %v1974, %v5175
        %v5177 = vpop.f32.mrb[0].mxu0
        %5178 = vmatprep.mubr.bf16.mxu0 0
        %5179 = vmatmul.mubr.bf16.gmra.mrb[0].mxu0 %v4961
        %v5180 = vpop.f32.mrb[0].mxu0
        %v5181 = vadd.f32 %v1974, %v5180
        %v5182 = vpop.f32.mrb[0].mxu0
        %v5183 = vpop.f32.mrb[0].mxu0
        %v5184 = vadd.f32 %v1974, %v5183
        %v5185 = vpop.f32.mrb[0].mxu0
        %5186 = vdwg.mxu0
        %v5187 = vmax.f32 %v5061, 0.0
        %v5188 = vmax.f32 %v5064, 0.0
        %v5189 = vmax.f32 %v5069, 0.0
        %v5190 = vmax.f32 %v5072, 0.0
        %v5191 = vmax.f32 %v5077, 0.0
        %v5192 = vmax.f32 %v5080, 0.0
        %v5193 = vmax.f32 %v5085, 0.0
        %v5194 = vmax.f32 %v5088, 0.0
        %v5195 = vmax.f32 %v5093, 0.0
        %v5196 = vmax.f32 %v5096, 0.0
        %v5197 = vmax.f32 %v5101, 0.0
        %v5198 = vmax.f32 %v5104, 0.0
        %v5199 = vmax.f32 %v5109, 0.0
        %v5200 = vmax.f32 %v5112, 0.0
        %v5201 = vmax.f32 %v5117, 0.0
        %v5202 = vmax.f32 %v5120, 0.0
        %v5203 = vmax.f32 %v5125, 0.0
        %v5204 = vmax.f32 %v5128, 0.0
        %v5205 = vmax.f32 %v5133, 0.0
        %v5206 = vmax.f32 %v5136, 0.0
        %v5207 = vmax.f32 %v5141, 0.0
        %v5208 = vmax.f32 %v5144, 0.0
        %v5209 = vmax.f32 %v5149, 0.0
        %v5210 = vmax.f32 %v5152, 0.0
        %v5211 = vmax.f32 %v5157, 0.0
        %v5212 = vmax.f32 %v5160, 0.0
        %v5213 = vmax.f32 %v5165, 0.0
        %v5214 = vmax.f32 %v5168, 0.0
        %v5215 = vmax.f32 %v5173, 0.0
        %v5216 = vmax.f32 %v5176, 0.0
        %v5217 = vmax.f32 %v5181, 0.0
        %v5218 = vmax.f32 %v5184, 0.0
        %v5219 = vpack.c.bf16 %v5188, %v5187
        %v5220 = vpack.c.bf16 %v5190, %v5189
        %v5221 = vpack.c.bf16 %v5192, %v5191
        %v5222 = vpack.c.bf16 %v5194, %v5193
        %v5223 = vpack.c.bf16 %v5196, %v5195
        %v5224 = vpack.c.bf16 %v5198, %v5197
        %v5225 = vpack.c.bf16 %v5200, %v5199
        %v5226 = vpack.c.bf16 %v5202, %v5201
        %v5227 = vpack.c.bf16 %v5204, %v5203
        %v5228 = vpack.c.bf16 %v5206, %v5205
        %v5229 = vpack.c.bf16 %v5208, %v5207
        %v5230 = vpack.c.bf16 %v5210, %v5209
        %v5231 = vpack.c.bf16 %v5212, %v5211
        %v5232 = vpack.c.bf16 %v5214, %v5213
        %v5233 = vpack.c.bf16 %v5216, %v5215
        %v5234 = vpack.c.bf16 %v5218, %v5217
        %5235 = vst.msk [vmem:[#allocation3] sm:$0xff] %vm2329, %v5219
        %5236 = vst.msk [vmem:[#allocation3 + $0x8] sm:$0xff] %vm2329, %v5220
        %5237 = vst.msk [vmem:[#allocation3 + $0x10] sm:$0xff] %vm2329, %v5221
        %5238 = vst.msk [vmem:[#allocation3 + $0x18] sm:$0xff] %vm2329, %v5222
        %5239 = vst.msk [vmem:[#allocation3 + $0x20] sm:$0xff] %vm2329, %v5223
        %5240 = vst.msk [vmem:[#allocation3 + $0x28] sm:$0xff] %vm2329, %v5224
        %5241 = vst.msk [vmem:[#allocation3 + $0x30] sm:$0xff] %vm2329, %v5225
        %5242 = vst.msk [vmem:[#allocation3 + $0x38] sm:$0xff] %vm2329, %v5226
        %5243 = vst.msk [vmem:[#allocation3 + $0x40] sm:$0xff] %vm2329, %v5227
        %5244 = vst.msk [vmem:[#allocation3 + $0x48] sm:$0xff] %vm2329, %v5228
        %5245 = vst.msk [vmem:[#allocation3 + $0x50] sm:$0xff] %vm2329, %v5229
        %5246 = vst.msk [vmem:[#allocation3 + $0x58] sm:$0xff] %vm2329, %v5230
        %5247 = vst.msk [vmem:[#allocation3 + $0x60] sm:$0xff] %vm2329, %v5231
        %5248 = vst.msk [vmem:[#allocation3 + $0x68] sm:$0xff] %vm2329, %v5232
        %5249 = vst.msk [vmem:[#allocation3 + $0x70] sm:$0xff] %vm2329, %v5233
        %5250 = vst.msk [vmem:[#allocation3 + $0x78] sm:$0xff] %vm2329, %v5234
        %v5251 = vld [vmem:[#allocation3] sm:$0xff]
        %v5252 = vld [vmem:[#allocation3 + $0x8] sm:$0xff]
        %v5253 = vld [vmem:[#allocation3 + $0x10] sm:$0xff]
        %v5254 = vld [vmem:[#allocation3 + $0x18] sm:$0xff]
        %v5255 = vld [vmem:[#allocation3 + $0x20] sm:$0xff]
        %v5256 = vld [vmem:[#allocation3 + $0x28] sm:$0xff]
        %v5257 = vld [vmem:[#allocation3 + $0x30] sm:$0xff]
        %v5258 = vld [vmem:[#allocation3 + $0x38] sm:$0xff]
        %v5259 = vld [vmem:[#allocation3 + $0x40] sm:$0xff]
        %v5260 = vld [vmem:[#allocation3 + $0x48] sm:$0xff]
        %v5261 = vld [vmem:[#allocation3 + $0x50] sm:$0xff]
        %v5262 = vld [vmem:[#allocation3 + $0x58] sm:$0xff]
        %v5263 = vld [vmem:[#allocation3 + $0x60] sm:$0xff]
        %v5264 = vld [vmem:[#allocation3 + $0x68] sm:$0xff]
        %v5265 = vld [vmem:[#allocation3 + $0x70] sm:$0xff]
        %v5266 = vld [vmem:[#allocation3 + $0x78] sm:$0xff]
        %v5268 = vsel %vm2404, %v5251, 0
        %v5271 = vsel %vm2404, %v5252, 0
        %v5274 = vsel %vm2404, %v5253, 0
        %v5277 = vsel %vm2404, %v5254, 0
        %v5280 = vsel %vm2404, %v5255, 0
        %v5283 = vsel %vm2404, %v5256, 0
        %v5286 = vsel %vm2404, %v5257, 0
        %v5289 = vsel %vm2404, %v5258, 0
        %v5292 = vsel %vm2404, %v5259, 0
        %v5295 = vsel %vm2404, %v5260, 0
        %v5298 = vsel %vm2404, %v5261, 0
        %v5301 = vsel %vm2404, %v5262, 0
        %v5304 = vsel %vm2404, %v5263, 0
        %v5307 = vsel %vm2404, %v5264, 0
        %v5310 = vsel %vm2404, %v5265, 0
        %v5313 = vsel %vm2404, %v5266, 0
        %5315 = vmatprep.subr.bf16.mxu0 0
        %5316 = vmatpush1.bf16.msra.mxu0 %v2392
        %5317 = vmatprep.subr.bf16.mxu0 0
        %5318 = vmatpush1.bf16.msra.mxu0 %v2393
        %5319 = vmatprep.subr.bf16.mxu0 0
        %5320 = vmatpush1.bf16.msra.mxu0 %v2394
        %5321 = vmatprep.subr.bf16.mxu0 0
        %5322 = vmatpush1.bf16.msra.mxu0 %v2395
        %5323 = vmatprep.subr.bf16.mxu0 0
        %5324 = vmatpush1.bf16.msra.mxu0 %v2396
        %5325 = vmatprep.subr.bf16.mxu0 0
        %5326 = vmatpush1.bf16.msra.mxu0 %v2397
        %5327 = vmatprep.subr.bf16.mxu0 0
        %5328 = vmatpush1.bf16.msra.mxu0 0
        %5329 = vmatprep.subr.bf16.mxu0 0
        %5330 = vmatpush1.bf16.msra.mxu0 0
        %5331 = vmatprep.subr.bf16.mxu0 0
        %5332 = vmatpush1.bf16.msra.mxu0 0
        %5333 = vmatprep.subr.bf16.mxu0 0
        %5334 = vmatpush1.bf16.msra.mxu0 0
        %5335 = vmatprep.subr.bf16.mxu0 0
        %5336 = vmatpush1.bf16.msra.mxu0 0
        %5337 = vmatprep.subr.bf16.mxu0 0
        %5338 = vmatpush1.bf16.msra.mxu0 0
        %5339 = vmatprep.subr.bf16.mxu0 0
        %5340 = vmatpush1.bf16.msra.mxu0 0
        %5341 = vmatprep.subr.bf16.mxu0 0
        %5342 = vmatpush1.bf16.msra.mxu0 0
        %5343 = vmatprep.subr.bf16.mxu0 0
        %5344 = vmatpush1.bf16.msra.mxu0 0
        %5345 = vmatprep.subr.bf16.mxu0 0
        %5346 = vmatpush1.bf16.msra.mxu0 0
        %5347 = vmatprep.mubr.bf16.mxu0 0
        %5348 = vmatmul.mubr.bf16.gmra.mrb[0].mxu0 %v5268
        %v5349 = vpop.f32.mrb[0].mxu0
        %v5350 = vadd.f32 %v2366, %v5349
        %v5351 = vpop.f32.mrb[0].mxu0
        %v5352 = vpop.f32.mrb[0].mxu0
        %v5353 = vadd.f32 %v2366, %v5352
        %v5354 = vpop.f32.mrb[0].mxu0
        %5355 = vmatprep.mubr.bf16.mxu0 0
        %5356 = vmatmul.mubr.bf16.gmra.mrb[0].mxu0 %v5271
        %v5357 = vpop.f32.mrb[0].mxu0
        %v5358 = vadd.f32 %v2366, %v5357
        %v5359 = vpop.f32.mrb[0].mxu0
        %v5360 = vpop.f32.mrb[0].mxu0
        %v5361 = vadd.f32 %v2366, %v5360
        %v5362 = vpop.f32.mrb[0].mxu0
        %5363 = vmatprep.mubr.bf16.mxu0 0
        %5364 = vmatmul.mubr.bf16.gmra.mrb[0].mxu0 %v5274
        %v5365 = vpop.f32.mrb[0].mxu0
        %v5366 = vadd.f32 %v2366, %v5365
        %v5367 = vpop.f32.mrb[0].mxu0
        %v5368 = vpop.f32.mrb[0].mxu0
        %v5369 = vadd.f32 %v2366, %v5368
        %v5370 = vpop.f32.mrb[0].mxu0
        %5371 = vmatprep.mubr.bf16.mxu0 0
        %5372 = vmatmul.mubr.bf16.gmra.mrb[0].mxu0 %v5277
        %v5373 = vpop.f32.mrb[0].mxu0
        %v5374 = vadd.f32 %v2366, %v5373
        %v5375 = vpop.f32.mrb[0].mxu0
        %v5376 = vpop.f32.mrb[0].mxu0
        %v5377 = vadd.f32 %v2366, %v5376
        %v5378 = vpop.f32.mrb[0].mxu0
        %5379 = vmatprep.mubr.bf16.mxu0 0
        %5380 = vmatmul.mubr.bf16.gmra.mrb[0].mxu0 %v5280
        %v5381 = vpop.f32.mrb[0].mxu0
        %v5382 = vadd.f32 %v2366, %v5381
        %v5383 = vpop.f32.mrb[0].mxu0
        %v5384 = vpop.f32.mrb[0].mxu0
        %v5385 = vadd.f32 %v2366, %v5384
        %v5386 = vpop.f32.mrb[0].mxu0
        %5387 = vmatprep.mubr.bf16.mxu0 0
        %5388 = vmatmul.mubr.bf16.gmra.mrb[0].mxu0 %v5283
        %v5389 = vpop.f32.mrb[0].mxu0
        %v5390 = vadd.f32 %v2366, %v5389
        %v5391 = vpop.f32.mrb[0].mxu0
        %v5392 = vpop.f32.mrb[0].mxu0
        %v5393 = vadd.f32 %v2366, %v5392
        %v5394 = vpop.f32.mrb[0].mxu0
        %5395 = vmatprep.mubr.bf16.mxu0 0
        %5396 = vmatmul.mubr.bf16.gmra.mrb[0].mxu0 %v5286
        %v5397 = vpop.f32.mrb[0].mxu0
        %v5398 = vadd.f32 %v2366, %v5397
        %v5399 = vpop.f32.mrb[0].mxu0
        %v5400 = vpop.f32.mrb[0].mxu0
        %v5401 = vadd.f32 %v2366, %v5400
        %v5402 = vpop.f32.mrb[0].mxu0
        %5403 = vmatprep.mubr.bf16.mxu0 0
        %5404 = vmatmul.mubr.bf16.gmra.mrb[0].mxu0 %v5289
        %v5405 = vpop.f32.mrb[0].mxu0
        %v5406 = vadd.f32 %v2366, %v5405
        %v5407 = vpop.f32.mrb[0].mxu0
        %v5408 = vpop.f32.mrb[0].mxu0
        %v5409 = vadd.f32 %v2366, %v5408
        %v5410 = vpop.f32.mrb[0].mxu0
        %5411 = vmatprep.mubr.bf16.mxu0 0
        %5412 = vmatmul.mubr.bf16.gmra.mrb[0].mxu0 %v5292
        %v5413 = vpop.f32.mrb[0].mxu0
        %v5414 = vadd.f32 %v2366, %v5413
        %v5415 = vpop.f32.mrb[0].mxu0
        %v5416 = vpop.f32.mrb[0].mxu0
        %v5417 = vadd.f32 %v2366, %v5416
        %v5418 = vpop.f32.mrb[0].mxu0
        %5419 = vmatprep.mubr.bf16.mxu0 0
        %5420 = vmatmul.mubr.bf16.gmra.mrb[0].mxu0 %v5295
        %v5421 = vpop.f32.mrb[0].mxu0
        %v5422 = vadd.f32 %v2366, %v5421
        %v5423 = vpop.f32.mrb[0].mxu0
        %v5424 = vpop.f32.mrb[0].mxu0
        %v5425 = vadd.f32 %v2366, %v5424
        %v5426 = vpop.f32.mrb[0].mxu0
        %5427 = vmatprep.mubr.bf16.mxu0 0
        %5428 = vmatmul.mubr.bf16.gmra.mrb[0].mxu0 %v5298
        %v5429 = vpop.f32.mrb[0].mxu0
        %v5430 = vadd.f32 %v2366, %v5429
        %v5431 = vpop.f32.mrb[0].mxu0
        %v5432 = vpop.f32.mrb[0].mxu0
        %v5433 = vadd.f32 %v2366, %v5432
        %v5434 = vpop.f32.mrb[0].mxu0
        %5435 = vmatprep.mubr.bf16.mxu0 0
        %5436 = vmatmul.mubr.bf16.gmra.mrb[0].mxu0 %v5301
        %v5437 = vpop.f32.mrb[0].mxu0
        %v5438 = vadd.f32 %v2366, %v5437
        %v5439 = vpop.f32.mrb[0].mxu0
        %v5440 = vpop.f32.mrb[0].mxu0
        %v5441 = vadd.f32 %v2366, %v5440
        %v5442 = vpop.f32.mrb[0].mxu0
        %5443 = vmatprep.mubr.bf16.mxu0 0
        %5444 = vmatmul.mubr.bf16.gmra.mrb[0].mxu0 %v5304
        %v5445 = vpop.f32.mrb[0].mxu0
        %v5446 = vadd.f32 %v2366, %v5445
        %v5447 = vpop.f32.mrb[0].mxu0
        %v5448 = vpop.f32.mrb[0].mxu0
        %v5449 = vadd.f32 %v2366, %v5448
        %v5450 = vpop.f32.mrb[0].mxu0
        %5451 = vmatprep.mubr.bf16.mxu0 0
        %5452 = vmatmul.mubr.bf16.gmra.mrb[0].mxu0 %v5307
        %v5453 = vpop.f32.mrb[0].mxu0
        %v5454 = vadd.f32 %v2366, %v5453
        %v5455 = vpop.f32.mrb[0].mxu0
        %v5456 = vpop.f32.mrb[0].mxu0
        %v5457 = vadd.f32 %v2366, %v5456
        %v5458 = vpop.f32.mrb[0].mxu0
        %5459 = vmatprep.mubr.bf16.mxu0 0
        %5460 = vmatmul.mubr.bf16.gmra.mrb[0].mxu0 %v5310
        %v5461 = vpop.f32.mrb[0].mxu0
        %v5462 = vadd.f32 %v2366, %v5461
        %v5463 = vpop.f32.mrb[0].mxu0
        %v5464 = vpop.f32.mrb[0].mxu0
        %v5465 = vadd.f32 %v2366, %v5464
        %v5466 = vpop.f32.mrb[0].mxu0
        %5467 = vmatprep.mubr.bf16.mxu0 0
        %5468 = vmatmul.mubr.bf16.gmra.mrb[0].mxu0 %v5313
        %v5469 = vpop.f32.mrb[0].mxu0
        %v5470 = vadd.f32 %v2366, %v5469
        %v5471 = vpop.f32.mrb[0].mxu0
        %v5472 = vpop.f32.mrb[0].mxu0
        %v5473 = vadd.f32 %v2366, %v5472
        %v5474 = vpop.f32.mrb[0].mxu0
        %5475 = vdwg.mxu0
        %v5476 = vmax.f32 %v5350, 0.0
        %v5477 = vmax.f32 %v5353, 0.0
        %v5478 = vmax.f32 %v5358, 0.0
        %v5479 = vmax.f32 %v5361, 0.0
        %v5480 = vmax.f32 %v5366, 0.0
        %v5481 = vmax.f32 %v5369, 0.0
        %v5482 = vmax.f32 %v5374, 0.0
        %v5483 = vmax.f32 %v5377, 0.0
        %v5484 = vmax.f32 %v5382, 0.0
        %v5485 = vmax.f32 %v5385, 0.0
        %v5486 = vmax.f32 %v5390, 0.0
        %v5487 = vmax.f32 %v5393, 0.0
        %v5488 = vmax.f32 %v5398, 0.0
        %v5489 = vmax.f32 %v5401, 0.0
        %v5490 = vmax.f32 %v5406, 0.0
        %v5491 = vmax.f32 %v5409, 0.0
        %v5492 = vmax.f32 %v5414, 0.0
        %v5493 = vmax.f32 %v5417, 0.0
        %v5494 = vmax.f32 %v5422, 0.0
        %v5495 = vmax.f32 %v5425, 0.0
        %v5496 = vmax.f32 %v5430, 0.0
        %v5497 = vmax.f32 %v5433, 0.0
        %v5498 = vmax.f32 %v5438, 0.0
        %v5499 = vmax.f32 %v5441, 0.0
        %v5500 = vmax.f32 %v5446, 0.0
        %v5501 = vmax.f32 %v5449, 0.0
        %v5502 = vmax.f32 %v5454, 0.0
        %v5503 = vmax.f32 %v5457, 0.0
        %v5504 = vmax.f32 %v5462, 0.0
        %v5505 = vmax.f32 %v5465, 0.0
        %v5506 = vmax.f32 %v5470, 0.0
        %v5507 = vmax.f32 %v5473, 0.0
        %s5508 = scalar_lea.vmem %s271, 768 [#allocation4]
        %5509 = vst [vmem:[%s5508] sm:$0xff] %v5476
        %5510 = vst [vmem:[%s5508 + $0x8] sm:$0xff] %v5477
        %5511 = vst [vmem:[%s5508 + $0x10] sm:$0xff] %v5478
        %5512 = vst [vmem:[%s5508 + $0x18] sm:$0xff] %v5479
        %5513 = vst [vmem:[%s5508 + $0x20] sm:$0xff] %v5480
        %5514 = vst [vmem:[%s5508 + $0x28] sm:$0xff] %v5481
        %5515 = vst [vmem:[%s5508 + $0x30] sm:$0xff] %v5482
        %5516 = vst [vmem:[%s5508 + $0x38] sm:$0xff] %v5483
        %5517 = vst [vmem:[%s5508 + $0x40] sm:$0xff] %v5484
        %5518 = vst [vmem:[%s5508 + $0x48] sm:$0xff] %v5485
        %5519 = vst [vmem:[%s5508 + $0x50] sm:$0xff] %v5486
        %5520 = vst [vmem:[%s5508 + $0x58] sm:$0xff] %v5487
        %5521 = vst [vmem:[%s5508 + $0x60] sm:$0xff] %v5488
        %5522 = vst [vmem:[%s5508 + $0x68] sm:$0xff] %v5489
        %5523 = vst [vmem:[%s5508 + $0x70] sm:$0xff] %v5490
        %5524 = vst [vmem:[%s5508 + $0x78] sm:$0xff] %v5491
        %5525 = vst [vmem:[%s5508 + $0x80] sm:$0xff] %v5492
        %5526 = vst [vmem:[%s5508 + $0x88] sm:$0xff] %v5493
        %5527 = vst [vmem:[%s5508 + $0x90] sm:$0xff] %v5494
        %5528 = vst [vmem:[%s5508 + $0x98] sm:$0xff] %v5495
        %5529 = vst [vmem:[%s5508 + $0xa0] sm:$0xff] %v5496
        %5530 = vst [vmem:[%s5508 + $0xa8] sm:$0xff] %v5497
        %5531 = vst [vmem:[%s5508 + $0xb0] sm:$0xff] %v5498
        %5532 = vst [vmem:[%s5508 + $0xb8] sm:$0xff] %v5499
        %5533 = vst [vmem:[%s5508 + $0xc0] sm:$0xff] %v5500
        %5534 = vst [vmem:[%s5508 + $0xc8] sm:$0xff] %v5501
        %5535 = vst [vmem:[%s5508 + $0xd0] sm:$0xff] %v5502
        %5536 = vst [vmem:[%s5508 + $0xd8] sm:$0xff] %v5503
        %5537 = vst [vmem:[%s5508 + $0xe0] sm:$0xff] %v5504
        %5538 = vst [vmem:[%s5508 + $0xe8] sm:$0xff] %v5505
        %5539 = vst [vmem:[%s5508 + $0xf0] sm:$0xff] %v5506
        %5540 = vst [vmem:[%s5508 + $0xf8] sm:$0xff] %v5507
        %s5541 = sand.u32 %s181, 1
        %s5542 = scalar_lea.sflag [#allocation5], %s5541
        %s5543 = sand.u32 %s181, 1
        %s5544 = smul.addr %s5543, 1024
        %s5545 = scalar_lea.vmem [#allocation4], %s5544
        // Predicated region
        $region49: #{tpu_custom_call.1} parent=47 // pred_check
          %p5546 = pneg %p191
        $region50: #{tpu_custom_call.1} parent=47 // pred_check_branch
          %5548 = sbr.rel (%p5546) target = $region52
        $region51: #{tpu_custom_call.1} parent=47 // pred_region
          %s5550 = ssub.s32 16384, 16384
          %5551 = vsyncadd %s5542, %s5550
          %s5552 = smul.addr %s21, 128
          %s5553 = smul.addr %s5552, 128
          %s5554 = scalar_lea.hbm %s7, %s5553
          %s5555 = sshll.u32 %s5545, 4
          %s5556 = int_to_ptr.vmem [resolvable:$true] %s5555
          %5561 = dma.vmem_to_hbm [thread:$0]  %s5556, 16384, %s5554, %s5542, 128, 128, 8
        $region52: #{tpu_custom_call.1} parent=47 // pred_fallthru
          _
      $region48: #{tpu_custom_call.1} parent=5 // pred_fallthru
        _
      %p5562 = scmp.le.s32.totalorder 2, %s16
      // Predicated region
      $region53: #{tpu_custom_call.1} parent=5 // pred_check
        %p5563 = pneg %p5562
      $region54: #{tpu_custom_call.1} parent=5 // pred_check_branch
        %5565 = sbr.rel (%p5563) target = $region56
      $region55: #{tpu_custom_call.1} parent=5 // pred_region
        %s5566 = ssub.s32 %s16, 2
        // Predicated region
        $region57: #{tpu_custom_call.1} parent=55 // pred_check
          %p5567 = pneg %p197
        $region58: #{tpu_custom_call.1} parent=55 // pred_check_branch
          %5569 = sbr.rel (%p5567) target = $region60
        $region59: #{tpu_custom_call.1} parent=55 // pred_region
          %s5570 = sand.u32 %s182, 1
          %s5571 = scalar_lea.sflag [#allocation5], %s5570
          %s5572 = sand.u32 %s182, 1
          %s5573 = smul.addr %s5572, 1024
          %s5574 = scalar_lea.vmem [#allocation4], %s5573
          %5575 = dma.done %s5571, 16384
        $region60: #{tpu_custom_call.1} parent=55 // pred_fallthru
          _
      $region56: #{tpu_custom_call.1} parent=5 // pred_fallthru
        _
    $region6: #{tpu_custom_call.1} parent=1 // loop_footer
      %s20 = sadd.s32 1, %s16
    $region7: #{tpu_custom_call.1} parent=1 // loop_footer_branch
      %15 = sbr.rel target = $region3
    $region8: #{tpu_custom_call.1} parent=1 // loop_exit
      _
    %5576 = vsyncpa [#allocation5], 1
    %s5577 = scalar_lea.sflag [#allocation5], 1
    %5578 = vsyncpa %s5577, 1

</llo_original>
